<compile_context>
chip_gen: v7x
topology: tpu7x:2x2x1
jax: 0.10.0
libtpu: 0.0.40
codegen_flags: <defaults>
</compile_context>

<pallas_src>
import jax
import jax.numpy as jnp
from jax import lax
from jax.experimental import pallas as pl
from jax.experimental.pallas import tpu as pltpu

EMBD_DIM = 256   # GraphUNet(6, 256, ...) -> embedding channels
HIDDEN = 256     # embedding_decoder_mlp hidden width
TM = 512         # pairs per grid step (lane axis)


def _decoder_kernel(ii_ref, jj_ref, tabT_ref, w1_ref, b1_ref, w2_ref, b2_ref,
                    w3_ref, b3_ref, out_ref):
    v = tabT_ref.shape[1]      # number of vertices (table columns)
    tm = ii_ref.shape[1]       # pairs in this tile (lane axis)

    # --- fused gather: difference one-hot, contracted with the VMEM table ---
    # sel[:, p] has +1 at row i_p and -1 at row j_p, so
    #   d[:, p] = table[:, i_p] - table[:, j_p]   (exact: f32 accumulation of bf16 rows)
    row_ids = lax.broadcasted_iota(jnp.int32, (v, tm), 0)
    sel = (jnp.where(row_ids == ii_ref[...], 1.0, 0.0)
           - jnp.where(row_ids == jj_ref[...], 1.0, 0.0)).astype(jnp.bfloat16)
    d = jnp.dot(tabT_ref[...], sel, preferred_element_type=jnp.float32)   # (C, TM)

    # (embd_i - embd_j) ** 2 on the VPU, then bf16 operands for the MXU
    x = (d * d).astype(jnp.bfloat16)

    h1 = jnp.dot(w1_ref[...], x, preferred_element_type=jnp.float32) + b1_ref[...]
    h1 = jnp.maximum(h1, 0.0).astype(jnp.bfloat16)
    h2 = jnp.dot(w2_ref[...], h1, preferred_element_type=jnp.float32) + b2_ref[...]
    h2 = jnp.maximum(h2, 0.0)

    # final 256 -> 1 layer: VPU mul + cross-sublane reduce (MXU N=1 pass avoided);
    # result is lane-dense (1, TM)
    out_ref[...] = (jnp.sum(h2 * w3_ref[...].astype(jnp.float32), axis=0,
                            keepdims=True) + b3_ref[...])


@jax.jit
def _decoder_mlp_pallas(idx_i, idx_j, table_t, w1, b1, w2, b2, w3, b3):
    m = idx_i.shape[1]                      # padded number of pairs
    v = table_t.shape[1]                    # number of vertices
    grid = (m // TM,)
    const = lambda mi: (0, 0)               # grid-invariant (weights / table)
    pair = lambda mi: (0, mi)               # lane-dense pair tiles

    return pl.pallas_call(
        _decoder_kernel,
        out_shape=jax.ShapeDtypeStruct((1, m), jnp.float32),
        grid_spec=pltpu.PrefetchScalarGridSpec(
            num_scalar_prefetch=0,
            grid=grid,
            in_specs=[
                pl.BlockSpec((1, TM), pair),              # p indices (int32)
                pl.BlockSpec((1, TM), pair),              # q indices (int32)
                pl.BlockSpec((EMBD_DIM, v), const),       # embedding table (C, V), VMEM-resident
                pl.BlockSpec((HIDDEN, EMBD_DIM), const),  # w1 (out, in) bf16
                pl.BlockSpec((HIDDEN, 1), const),         # b1 f32
                pl.BlockSpec((HIDDEN, HIDDEN), const),    # w2 bf16
                pl.BlockSpec((HIDDEN, 1), const),         # b2 f32
                pl.BlockSpec((HIDDEN, 1), const),         # w3 bf16 (column)
                pl.BlockSpec((1, 1), const),              # b3 f32
            ],
            out_specs=pl.BlockSpec((1, TM), pair),
        ),
        compiler_params=pltpu.CompilerParams(
            dimension_semantics=("parallel",),            # shards tiles across v7x TCs
            vmem_limit_bytes=32 * 1024 * 1024),
    )(idx_i, idx_j, table_t, w1, b1, w2, b2, w3, b3)


class PretrainedModelPallas:
    """JAX/Pallas port of PretrainedModel.forward (the embd_decoder_func hot path).

    Weights are stored in the torch (out, in) layout as bf16 (MXU operands);
    biases stay f32 (accumulation dtype). The embedding table is stored
    transposed (C, V) in bf16 so the fused-gather matmul is row-major on the MXU.
    Decoder MLP parameters are initialized deterministically in-script
    (no checkpoint load).
    """

    def __init__(self, key):
        k1, k2, k3, k4, k5 = jax.random.split(key, 5)
        s1 = 1.0 / jnp.sqrt(EMBD_DIM)
        s2 = 1.0 / jnp.sqrt(HIDDEN)
        self.w1 = jax.random.uniform(k1, (HIDDEN, EMBD_DIM), jnp.float32,
                                     -s1, s1).astype(jnp.bfloat16)
        self.b1 = jax.random.uniform(k4, (HIDDEN, 1), jnp.float32, -s1, s1)
        self.w2 = jax.random.uniform(k2, (HIDDEN, HIDDEN), jnp.float32,
                                     -s2, s2).astype(jnp.bfloat16)
        self.b2 = jax.random.uniform(k5, (HIDDEN, 1), jnp.float32, -s2, s2)
        self.w3 = jax.random.uniform(k3, (HIDDEN, 1), jnp.float32,
                                     -s2, s2).astype(jnp.bfloat16)
        self.b3 = jnp.zeros((1, 1), jnp.float32)
        self.embds = None   # (EMBD_DIM, n_vertices) bf16 after precompute()

    def precompute(self, embds):
        # TODO(synk): GraphUNet/HGraph encoder not ported; take precomputed (V, C) embeddings.
        self.embds = jnp.asarray(embds, jnp.float32).T.astype(jnp.bfloat16)

    def forward(self, p_vertices, q_vertices):
        assert self.embds is not None, "Please call precompute() first!"
        i = jnp.asarray(p_vertices, jnp.int32).reshape(1, -1)
        j = jnp.asarray(q_vertices, jnp.int32).reshape(1, -1)
        m = i.shape[1]
        m_pad = ((m + TM - 1) // TM) * TM
        if m_pad != m:
            pad = ((0, 0), (0, m_pad - m))
            i = jnp.pad(i, pad)   # padded pairs use index 0 and are sliced off below
            j = jnp.pad(j, pad)
        pred = _decoder_mlp_pallas(i, j, self.embds, self.w1, self.b1,
                                   self.w2, self.b2, self.w3, self.b3)
        return pred[0, :m]        # squeeze(-1)


def _reference(embds_t, i, j, w1, b1, w2, b2, w3, b3):
    """Pure-JAX f32 reference using the (bf16-stored) parameters."""
    emb = embds_t.astype(jnp.float32).T                   # (V, C)
    x = (emb[i] - emb[j]) ** 2                            # (M, C)
    h1 = jnp.maximum(x @ w1.astype(jnp.float32).T + b1[:, 0], 0.0)
    h2 = jnp.maximum(h1 @ w2.astype(jnp.float32).T + b2[:, 0], 0.0)
    return h2 @ w3.astype(jnp.float32)[:, 0] + b3[0, 0]


if __name__ == "__main__":
    key = jax.random.PRNGKey(0)
    k_model, k_embd, k_i, k_j = jax.random.split(key, 4)

    model = PretrainedModelPallas(k_model)

    n_vertices = 200          # small mesh (table comfortably VMEM-resident)
    n_pairs = 1000            # pads to 1024 -> grid=(2,): both v7x TCs get work

    embds = jax.random.normal(k_embd, (n_vertices, EMBD_DIM), jnp.float32)
    model.precompute(embds)

    p_vertices = jax.random.randint(k_i, (n_pairs,), 0, n_vertices, jnp.int32)
    q_vertices = jax.random.randint(k_j, (n_pairs,), 0, n_vertices, jnp.int32)

    pred = model.forward(p_vertices, q_vertices)
    pred = jax.block_until_ready(pred)

    ref = _reference(model.embds, p_vertices, q_vertices, model.w1, model.b1,
                     model.w2, model.b2, model.w3, model.b3)
    assert pred.shape == (n_pairs,)
    max_err = float(jnp.max(jnp.abs(pred - ref)))
    # bf16 matmul operands with f32 accumulation -> relaxed tolerance vs f32 reference
    assert jnp.allclose(pred, ref, atol=3e-2, rtol=3e-2), f"max abs err {max_err}"

    print("KERNEL_OK")
</pallas_src>

<mosaic_0001>
module attributes {stable_mosaic.version = 11 : i64} {
  func.func @_decoder_kernel(%arg0: i32, %arg1: memref<1x512xi32, #tpu.memory_space<vmem>>, %arg2: memref<1x512xi32, #tpu.memory_space<vmem>>, %arg3: memref<256x200xbf16, #tpu.memory_space<vmem>>, %arg4: memref<256x256xbf16, #tpu.memory_space<vmem>>, %arg5: memref<256x1xf32, #tpu.memory_space<vmem>>, %arg6: memref<256x256xbf16, #tpu.memory_space<vmem>>, %arg7: memref<256x1xf32, #tpu.memory_space<vmem>>, %arg8: memref<256x1xbf16, #tpu.memory_space<vmem>>, %arg9: memref<1x1xf32, #tpu.memory_space<vmem>>, %arg10: memref<1x512xf32, #tpu.memory_space<vmem>>) attributes {dimension_semantics = [#tpu.dimension_semantics<parallel>], iteration_bounds = array<i64: 2>, scalar_prefetch = 0 : i64, scratch_operands = 0 : i64, tpu.core_type = #tpu.core_type<tc>, window_params = [{transform_indices = @transform_0, window_bounds = array<i64: 1, 512>}, {transform_indices = @transform_1, window_bounds = array<i64: 1, 512>}, {pipeline_mode = #tpu.pipeline_mode<synchronous>, transform_indices = @transform_2, window_bounds = array<i64: 256, 200>}, {pipeline_mode = #tpu.pipeline_mode<synchronous>, transform_indices = @transform_3, window_bounds = array<i64: 256, 256>}, {pipeline_mode = #tpu.pipeline_mode<synchronous>, transform_indices = @transform_4, window_bounds = array<i64: 256, 1>}, {pipeline_mode = #tpu.pipeline_mode<synchronous>, transform_indices = @transform_5, window_bounds = array<i64: 256, 256>}, {pipeline_mode = #tpu.pipeline_mode<synchronous>, transform_indices = @transform_6, window_bounds = array<i64: 256, 1>}, {pipeline_mode = #tpu.pipeline_mode<synchronous>, transform_indices = @transform_7, window_bounds = array<i64: 256, 1>}, {pipeline_mode = #tpu.pipeline_mode<synchronous>, transform_indices = @transform_8, window_bounds = array<i64: 1, 1>}, {transform_indices = @transform_9, window_bounds = array<i64: 1, 512>}]} {
    %0 = tpu.iota {dimensions = array<i32: 0>} : vector<200x512xi32>
    %c0 = arith.constant 0 : index
    %c0_0 = arith.constant 0 : index
    %1 = vector.load %arg1[%c0, %c0_0] : memref<1x512xi32, #tpu.memory_space<vmem>>, vector<1x512xi32>
    %2 = vector.broadcast %1 : vector<1x512xi32> to vector<200x512xi32>
    %3 = arith.cmpi eq, %0, %2 : vector<200x512xi32>
    %cst = arith.constant 1.000000e+00 : f32
    %cst_1 = arith.constant 0.000000e+00 : f32
    %4 = vector.broadcast %cst : f32 to vector<200x512xf32>
    %5 = vector.broadcast %cst_1 : f32 to vector<200x512xf32>
    %6 = arith.select %3, %4, %5 : vector<200x512xi1>, vector<200x512xf32>
    %c0_2 = arith.constant 0 : index
    %c0_3 = arith.constant 0 : index
    %7 = vector.load %arg2[%c0_2, %c0_3] : memref<1x512xi32, #tpu.memory_space<vmem>>, vector<1x512xi32>
    %8 = vector.broadcast %7 : vector<1x512xi32> to vector<200x512xi32>
    %9 = arith.cmpi eq, %0, %8 : vector<200x512xi32>
    %cst_4 = arith.constant 1.000000e+00 : f32
    %cst_5 = arith.constant 0.000000e+00 : f32
    %10 = vector.broadcast %cst_4 : f32 to vector<200x512xf32>
    %11 = vector.broadcast %cst_5 : f32 to vector<200x512xf32>
    %12 = arith.select %9, %10, %11 : vector<200x512xi1>, vector<200x512xf32>
    %13 = arith.subf %6, %12 : vector<200x512xf32>
    %14 = arith.truncf %13 : vector<200x512xf32> to vector<200x512xbf16>
    %c0_6 = arith.constant 0 : index
    %c0_7 = arith.constant 0 : index
    %15 = vector.load %arg3[%c0_6, %c0_7] : memref<256x200xbf16, #tpu.memory_space<vmem>>, vector<256x200xbf16>
    %cst_8 = arith.constant dense<0.000000e+00> : vector<256x512xf32>
    %16 = tpu.matmul %15, %14, %cst_8 {dimension_numbers = #tpu.dot_dimension_numbers<[1], [0], [0], [1], [0, 0, 1, 1], [], []>} : vector<256x200xbf16>, vector<200x512xbf16>, vector<256x512xf32> -> vector<256x512xf32>
    %17 = arith.mulf %16, %16 : vector<256x512xf32>
    %18 = arith.truncf %17 : vector<256x512xf32> to vector<256x512xbf16>
    %c0_9 = arith.constant 0 : index
    %c0_10 = arith.constant 0 : index
    %19 = vector.load %arg4[%c0_9, %c0_10] : memref<256x256xbf16, #tpu.memory_space<vmem>>, vector<256x256xbf16>
    %cst_11 = arith.constant dense<0.000000e+00> : vector<256x512xf32>
    %20 = tpu.matmul %19, %18, %cst_11 {dimension_numbers = #tpu.dot_dimension_numbers<[1], [0], [0], [1], [0, 0, 1, 1], [], []>} : vector<256x256xbf16>, vector<256x512xbf16>, vector<256x512xf32> -> vector<256x512xf32>
    %c0_12 = arith.constant 0 : index
    %c0_13 = arith.constant 0 : index
    %21 = vector.load %arg5[%c0_12, %c0_13] : memref<256x1xf32, #tpu.memory_space<vmem>>, vector<256x1xf32>
    %22 = vector.broadcast %21 : vector<256x1xf32> to vector<256x512xf32>
    %23 = arith.addf %20, %22 : vector<256x512xf32>
    %cst_14 = arith.constant 0.000000e+00 : f32
    %24 = vector.broadcast %cst_14 : f32 to vector<256x512xf32>
    %25 = arith.maximumf %23, %24 : vector<256x512xf32>
    %26 = arith.truncf %25 : vector<256x512xf32> to vector<256x512xbf16>
    %c0_15 = arith.constant 0 : index
    %c0_16 = arith.constant 0 : index
    %27 = vector.load %arg6[%c0_15, %c0_16] : memref<256x256xbf16, #tpu.memory_space<vmem>>, vector<256x256xbf16>
    %cst_17 = arith.constant dense<0.000000e+00> : vector<256x512xf32>
    %28 = tpu.matmul %27, %26, %cst_17 {dimension_numbers = #tpu.dot_dimension_numbers<[1], [0], [0], [1], [0, 0, 1, 1], [], []>} : vector<256x256xbf16>, vector<256x512xbf16>, vector<256x512xf32> -> vector<256x512xf32>
    %c0_18 = arith.constant 0 : index
    %c0_19 = arith.constant 0 : index
    %29 = vector.load %arg7[%c0_18, %c0_19] : memref<256x1xf32, #tpu.memory_space<vmem>>, vector<256x1xf32>
    %30 = vector.broadcast %29 : vector<256x1xf32> to vector<256x512xf32>
    %31 = arith.addf %28, %30 : vector<256x512xf32>
    %cst_20 = arith.constant 0.000000e+00 : f32
    %32 = vector.broadcast %cst_20 : f32 to vector<256x512xf32>
    %33 = arith.maximumf %31, %32 : vector<256x512xf32>
    %c0_21 = arith.constant 0 : index
    %c0_22 = arith.constant 0 : index
    %34 = vector.load %arg8[%c0_21, %c0_22] : memref<256x1xbf16, #tpu.memory_space<vmem>>, vector<256x1xbf16>
    %35 = arith.extf %34 : vector<256x1xbf16> to vector<256x1xf32>
    %36 = vector.broadcast %35 : vector<256x1xf32> to vector<256x512xf32>
    %37 = arith.mulf %33, %36 : vector<256x512xf32>
    %cst_23 = arith.constant dense<0.000000e+00> : vector<512xf32>
    %38 = vector.multi_reduction <add>, %37, %cst_23 [0] : vector<256x512xf32> to vector<512xf32>
    %39 = vector.shape_cast %38 : vector<512xf32> to vector<1x512xf32>
    %c0_24 = arith.constant 0 : index
    %c0_25 = arith.constant 0 : index
    %40 = vector.load %arg9[%c0_24, %c0_25] : memref<1x1xf32, #tpu.memory_space<vmem>>, vector<1x1xf32>
    %41 = vector.broadcast %40 : vector<1x1xf32> to vector<1x512xf32>
    %42 = arith.addf %39, %41 : vector<1x512xf32>
    %c0_26 = arith.constant 0 : index
    %c0_27 = arith.constant 0 : index
    %43 = vector.load %arg10[%c0_26, %c0_27] : memref<1x512xf32, #tpu.memory_space<vmem>>, vector<1x512xf32>
    tpu.vector_store %arg10[%c0_26, %c0_27], %42 {strides = array<i32>} : memref<1x512xf32, #tpu.memory_space<vmem>>, vector<1x512xf32>,
    return
  }
  func.func @transform_0(%arg0: i32) -> (i32, i32) {
    %c0_i32 = arith.constant 0 : i32
    %c0_i32_0 = arith.constant 0 : i32
    return %c0_i32, %arg0 : i32, i32
  }
  func.func @transform_1(%arg0: i32) -> (i32, i32) {
    %c0_i32 = arith.constant 0 : i32
    %c0_i32_0 = arith.constant 0 : i32
    return %c0_i32, %arg0 : i32, i32
  }
  func.func @transform_2(%arg0: i32) -> (i32, i32) {
    %c0_i32 = arith.constant 0 : i32
    %c0_i32_0 = arith.constant 0 : i32
    %c0_i32_1 = arith.constant 0 : i32
    return %c0_i32, %c0_i32_0 : i32, i32
  }
  func.func @transform_3(%arg0: i32) -> (i32, i32) {
    %c0_i32 = arith.constant 0 : i32
    %c0_i32_0 = arith.constant 0 : i32
    %c0_i32_1 = arith.constant 0 : i32
    return %c0_i32, %c0_i32_0 : i32, i32
  }
  func.func @transform_4(%arg0: i32) -> (i32, i32) {
    %c0_i32 = arith.constant 0 : i32
    %c0_i32_0 = arith.constant 0 : i32
    %c0_i32_1 = arith.constant 0 : i32
    return %c0_i32, %c0_i32_0 : i32, i32
  }
  func.func @transform_5(%arg0: i32) -> (i32, i32) {
    %c0_i32 = arith.constant 0 : i32
    %c0_i32_0 = arith.constant 0 : i32
    %c0_i32_1 = arith.constant 0 : i32
    return %c0_i32, %c0_i32_0 : i32, i32
  }
  func.func @transform_6(%arg0: i32) -> (i32, i32) {
    %c0_i32 = arith.constant 0 : i32
    %c0_i32_0 = arith.constant 0 : i32
    %c0_i32_1 = arith.constant 0 : i32
    return %c0_i32, %c0_i32_0 : i32, i32
  }
  func.func @transform_7(%arg0: i32) -> (i32, i32) {
    %c0_i32 = arith.constant 0 : i32
    %c0_i32_0 = arith.constant 0 : i32
    %c0_i32_1 = arith.constant 0 : i32
    return %c0_i32, %c0_i32_0 : i32, i32
  }
  func.func @transform_8(%arg0: i32) -> (i32, i32) {
    %c0_i32 = arith.constant 0 : i32
    %c0_i32_0 = arith.constant 0 : i32
    %c0_i32_1 = arith.constant 0 : i32
    return %c0_i32, %c0_i32_0 : i32, i32
  }
  func.func @transform_9(%arg0: i32) -> (i32, i32) {
    %c0_i32 = arith.constant 0 : i32
    %c0_i32_0 = arith.constant 0 : i32
    return %c0_i32, %arg0 : i32, i32
  }
}

</mosaic_0001>

<llo_original>
// kernel: _decoder_mlp_pallas.1
$region0: #{_decoder_mlp_pallas.1}
  #allocation0 [shape = 'u32[]', space=smem, size = 0x4, offset = 0x4, fixed_abs, tag = 'smem constant byte address 0x4 - core index']
  #allocation1 [shape = 'u32[144,128]{1,0:T(1,128)}', space=vmem, size = 0x12000, scoped, tag = 'internal scratch']
  #allocation2 [shape = 'f32[1,1]{1,0:T(1,128)S(1)}', space=vmem, size = 0x200, scoped, tag = 'scoped memory for _decoder_mlp_pallas.1']
  %s0 = inlined_call_operand.vmem [shape: s32[1,1024], index: 0, kind: input, shape index: {}]
  %s1 = inlined_call_operand.vmem [shape: s32[1,1024], index: 1, kind: input, shape index: {}]
  %s2 = inlined_call_operand.vmem [shape: bf16[256,200], index: 2, kind: input, shape index: {}]
  %s3 = inlined_call_operand.vmem [shape: bf16[256,256], index: 3, kind: input, shape index: {}]
  %s4 = inlined_call_operand.vmem [shape: f32[256,1], index: 4, kind: input, shape index: {}]
  %s5 = inlined_call_operand.vmem [shape: bf16[256,256], index: 5, kind: input, shape index: {}]
  %s6 = inlined_call_operand.vmem [shape: f32[256,1], index: 6, kind: input, shape index: {}]
  %s7 = inlined_call_operand.vmem [shape: bf16[256,1], index: 7, kind: input, shape index: {}]
  %s8 = inlined_call_operand.<no memory space> [shape: f32[1,1], index: 8, kind: input, shape index: {}]
  %s9 = inlined_call_operand.hbm [shape: f32[1,1024], index: 9, kind: output, shape index: {}]
  %s10 = sld [smem:[#allocation0]]
  $region69: #{_decoder_mlp_pallas.1} parent=0
    _
  %s12 = ssub.s32 1, %s10
  %s13 = scalar_select 0, %s12, %s10
  %v14 = vstv %s8
  %15 = vst [vmem:[#allocation2] sm:$0x1] %v14
  $region1: #{_decoder_mlp_pallas.1} parent=0
    #allocation3 [shape = 'u8[4096]{0}', space=vmem, size = 0x1000, scoped, tag = 'output window, operand 0']
    #allocation4 [shape = 's32[2]{0}', space=sflag, size = 0x8, scoped, tag = 'scoped memory for _decoder_mlp_pallas.1']
    %16 = vsyncpa [#allocation4], 0
    %s17 = scalar_lea.sflag [#allocation4], 1
    %18 = vsyncpa %s17, 0
    loop: start=0, step=1, limit=4
    $region2: #{_decoder_mlp_pallas.1} parent=1 // loop_pre_header
      _
    $region3: #{_decoder_mlp_pallas.1} parent=1 // loop_header
      %s20 = sphi 0, %s24
      %p21 = scmp.ge.s32.totalorder %s20, 4
      %s30 = sphi 0, %s32
      %s33 = sphi 0, %s30
      %s34 = sphi 0, %s33
      %s50 = sphi 0, %s34
      %s56 = sphi 0, %s58
      %s59 = sphi 0, %s56
      %s60 = sphi 0, %s59
      %s76 = sphi 0, %s60
      %s80 = sphi 0, %s80
      %s82 = sphi 0, %s80
      %s83 = sphi 0, %s82
      %s97 = sphi 0, %s83
      %s101 = sphi 0, %s101
      %s103 = sphi 0, %s101
      %s104 = sphi 0, %s103
      %s118 = sphi 0, %s104
      %s122 = sphi 0, %s122
      %s124 = sphi 0, %s122
      %s125 = sphi 0, %s124
      %s139 = sphi 0, %s125
      %s143 = sphi 0, %s143
      %s145 = sphi 0, %s143
      %s146 = sphi 0, %s145
      %s160 = sphi 0, %s146
      %s164 = sphi 0, %s164
      %s166 = sphi 0, %s164
      %s167 = sphi 0, %s166
      %s181 = sphi 0, %s167
      %s185 = sphi 0, %s185
      %s187 = sphi 0, %s185
      %s188 = sphi 0, %s187
      %s202 = sphi 0, %s188
      %s206 = sphi 0, %s206
      %s208 = sphi 0, %s206
      %s209 = sphi 0, %s208
      %s223 = sphi 0, %s209
      %s229 = sphi 0, %s231
      %s232 = sphi 0, %s229
      %s233 = sphi 0, %s232
      %s249 = sphi 0, %s233
    $region4: #{_decoder_mlp_pallas.1} parent=1 // loop_header_branch
      %23 = sbr.rel (%p21) target = $region8
    $region5: #{_decoder_mlp_pallas.1} parent=1 // loop_body
      %s25 = ssub.s32 %s20, 1
      %s26 = ssub.s32 %s20, 2
      %s27 = sadd.s32 %s20, 1
      %s28 = ssub.s32 %s20, %s27
      %p29 = scmp.eq.s32.totalorder %s28, 0
      %s31 = sadd.s32 %s30, 1
      %s32 = scalar_select %p29, %s30, %s31
      %p35 = pneg %p29
      %p36 = scmp.eq.s32.totalorder %s20, 1
      %p37 = por %p35, %p36
      %p38 = scmp.ne.s32.totalorder %s30, %s33
      %p39 = scmp.eq.s32.totalorder %s20, 0
      %p40 = por %p38, %p39
      %p41 = scmp.ne.s32.totalorder %s30, %s33
      %p42 = scmp.eq.s32.totalorder %s25, 1
      %p43 = por %p41, %p42
      %p44 = scmp.ne.s32.totalorder %s33, %s34
      %p45 = scmp.eq.s32.totalorder %s25, 0
      %p46 = por %p44, %p45
      %p47 = scmp.ne.s32.totalorder %s33, %s34
      %p48 = scmp.eq.s32.totalorder %s26, 1
      %p49 = por %p47, %p48
      %p51 = scmp.ne.s32.totalorder %s34, %s50
      %p52 = scmp.eq.s32.totalorder %s26, 0
      %p53 = por %p51, %p52
      %s54 = ssub.s32 %s20, %s27
      %p55 = scmp.eq.s32.totalorder %s54, 0
      %s57 = sadd.s32 %s56, 1
      %s58 = scalar_select %p55, %s56, %s57
      %p61 = pneg %p55
      %p62 = scmp.eq.s32.totalorder %s20, 1
      %p63 = por %p61, %p62
      %p64 = scmp.ne.s32.totalorder %s56, %s59
      %p65 = scmp.eq.s32.totalorder %s20, 0
      %p66 = por %p64, %p65
      %p67 = scmp.ne.s32.totalorder %s56, %s59
      %p68 = scmp.eq.s32.totalorder %s25, 1
      %p69 = por %p67, %p68
      %p70 = scmp.ne.s32.totalorder %s59, %s60
      %p71 = scmp.eq.s32.totalorder %s25, 0
      %p72 = por %p70, %p71
      %p73 = scmp.ne.s32.totalorder %s59, %s60
      %p74 = scmp.eq.s32.totalorder %s26, 1
      %p75 = por %p73, %p74
      %p77 = scmp.ne.s32.totalorder %s60, %s76
      %p78 = scmp.eq.s32.totalorder %s26, 0
      %p79 = por %p77, %p78
      %s81 = sadd.s32 %s80, 1
      %p84 = scmp.eq.s32.totalorder %s20, 1
      %p85 = scmp.ne.s32.totalorder %s80, %s82
      %p86 = scmp.eq.s32.totalorder %s20, 0
      %p87 = por %p85, %p86
      %p88 = scmp.ne.s32.totalorder %s80, %s82
      %p89 = scmp.eq.s32.totalorder %s25, 1
      %p90 = por %p88, %p89
      %p91 = scmp.ne.s32.totalorder %s82, %s83
      %p92 = scmp.eq.s32.totalorder %s25, 0
      %p93 = por %p91, %p92
      %p94 = scmp.ne.s32.totalorder %s82, %s83
      %p95 = scmp.eq.s32.totalorder %s26, 1
      %p96 = por %p94, %p95
      %p98 = scmp.ne.s32.totalorder %s83, %s97
      %p99 = scmp.eq.s32.totalorder %s26, 0
      %p100 = por %p98, %p99
      %s102 = sadd.s32 %s101, 1
      %p105 = scmp.eq.s32.totalorder %s20, 1
      %p106 = scmp.ne.s32.totalorder %s101, %s103
      %p107 = scmp.eq.s32.totalorder %s20, 0
      %p108 = por %p106, %p107
      %p109 = scmp.ne.s32.totalorder %s101, %s103
      %p110 = scmp.eq.s32.totalorder %s25, 1
      %p111 = por %p109, %p110
      %p112 = scmp.ne.s32.totalorder %s103, %s104
      %p113 = scmp.eq.s32.totalorder %s25, 0
      %p114 = por %p112, %p113
      %p115 = scmp.ne.s32.totalorder %s103, %s104
      %p116 = scmp.eq.s32.totalorder %s26, 1
      %p117 = por %p115, %p116
      %p119 = scmp.ne.s32.totalorder %s104, %s118
      %p120 = scmp.eq.s32.totalorder %s26, 0
      %p121 = por %p119, %p120
      %s123 = sadd.s32 %s122, 1
      %p126 = scmp.eq.s32.totalorder %s20, 1
      %p127 = scmp.ne.s32.totalorder %s122, %s124
      %p128 = scmp.eq.s32.totalorder %s20, 0
      %p129 = por %p127, %p128
      %p130 = scmp.ne.s32.totalorder %s122, %s124
      %p131 = scmp.eq.s32.totalorder %s25, 1
      %p132 = por %p130, %p131
      %p133 = scmp.ne.s32.totalorder %s124, %s125
      %p134 = scmp.eq.s32.totalorder %s25, 0
      %p135 = por %p133, %p134
      %p136 = scmp.ne.s32.totalorder %s124, %s125
      %p137 = scmp.eq.s32.totalorder %s26, 1
      %p138 = por %p136, %p137
      %p140 = scmp.ne.s32.totalorder %s125, %s139
      %p141 = scmp.eq.s32.totalorder %s26, 0
      %p142 = por %p140, %p141
      %s144 = sadd.s32 %s143, 1
      %p147 = scmp.eq.s32.totalorder %s20, 1
      %p148 = scmp.ne.s32.totalorder %s143, %s145
      %p149 = scmp.eq.s32.totalorder %s20, 0
      %p150 = por %p148, %p149
      %p151 = scmp.ne.s32.totalorder %s143, %s145
      %p152 = scmp.eq.s32.totalorder %s25, 1
      %p153 = por %p151, %p152
      %p154 = scmp.ne.s32.totalorder %s145, %s146
      %p155 = scmp.eq.s32.totalorder %s25, 0
      %p156 = por %p154, %p155
      %p157 = scmp.ne.s32.totalorder %s145, %s146
      %p158 = scmp.eq.s32.totalorder %s26, 1
      %p159 = por %p157, %p158
      %p161 = scmp.ne.s32.totalorder %s146, %s160
      %p162 = scmp.eq.s32.totalorder %s26, 0
      %p163 = por %p161, %p162
      %s165 = sadd.s32 %s164, 1
      %p168 = scmp.eq.s32.totalorder %s20, 1
      %p169 = scmp.ne.s32.totalorder %s164, %s166
      %p170 = scmp.eq.s32.totalorder %s20, 0
      %p171 = por %p169, %p170
      %p172 = scmp.ne.s32.totalorder %s164, %s166
      %p173 = scmp.eq.s32.totalorder %s25, 1
      %p174 = por %p172, %p173
      %p175 = scmp.ne.s32.totalorder %s166, %s167
      %p176 = scmp.eq.s32.totalorder %s25, 0
      %p177 = por %p175, %p176
      %p178 = scmp.ne.s32.totalorder %s166, %s167
      %p179 = scmp.eq.s32.totalorder %s26, 1
      %p180 = por %p178, %p179
      %p182 = scmp.ne.s32.totalorder %s167, %s181
      %p183 = scmp.eq.s32.totalorder %s26, 0
      %p184 = por %p182, %p183
      %s186 = sadd.s32 %s185, 1
      %p189 = scmp.eq.s32.totalorder %s20, 1
      %p190 = scmp.ne.s32.totalorder %s185, %s187
      %p191 = scmp.eq.s32.totalorder %s20, 0
      %p192 = por %p190, %p191
      %p193 = scmp.ne.s32.totalorder %s185, %s187
      %p194 = scmp.eq.s32.totalorder %s25, 1
      %p195 = por %p193, %p194
      %p196 = scmp.ne.s32.totalorder %s187, %s188
      %p197 = scmp.eq.s32.totalorder %s25, 0
      %p198 = por %p196, %p197
      %p199 = scmp.ne.s32.totalorder %s187, %s188
      %p200 = scmp.eq.s32.totalorder %s26, 1
      %p201 = por %p199, %p200
      %p203 = scmp.ne.s32.totalorder %s188, %s202
      %p204 = scmp.eq.s32.totalorder %s26, 0
      %p205 = por %p203, %p204
      %s207 = sadd.s32 %s206, 1
      %p210 = scmp.eq.s32.totalorder %s20, 1
      %p211 = scmp.ne.s32.totalorder %s206, %s208
      %p212 = scmp.eq.s32.totalorder %s20, 0
      %p213 = por %p211, %p212
      %p214 = scmp.ne.s32.totalorder %s206, %s208
      %p215 = scmp.eq.s32.totalorder %s25, 1
      %p216 = por %p214, %p215
      %p217 = scmp.ne.s32.totalorder %s208, %s209
      %p218 = scmp.eq.s32.totalorder %s25, 0
      %p219 = por %p217, %p218
      %p220 = scmp.ne.s32.totalorder %s208, %s209
      %p221 = scmp.eq.s32.totalorder %s26, 1
      %p222 = por %p220, %p221
      %p224 = scmp.ne.s32.totalorder %s209, %s223
      %p225 = scmp.eq.s32.totalorder %s26, 0
      %p226 = por %p224, %p225
      %s227 = ssub.s32 %s20, %s27
      %p228 = scmp.eq.s32.totalorder %s227, 0
      %s230 = sadd.s32 %s229, 1
      %s231 = scalar_select %p228, %s229, %s230
      %p234 = pneg %p228
      %p235 = scmp.eq.s32.totalorder %s20, 1
      %p236 = por %p234, %p235
      %p237 = scmp.ne.s32.totalorder %s229, %s232
      %p238 = scmp.eq.s32.totalorder %s20, 0
      %p239 = por %p237, %p238
      %p240 = scmp.ne.s32.totalorder %s229, %s232
      %p241 = scmp.eq.s32.totalorder %s25, 1
      %p242 = por %p240, %p241
      %p243 = scmp.ne.s32.totalorder %s232, %s233
      %p244 = scmp.eq.s32.totalorder %s25, 0
      %p245 = por %p243, %p244
      %p246 = scmp.ne.s32.totalorder %s232, %s233
      %p247 = scmp.eq.s32.totalorder %s26, 1
      %p248 = por %p246, %p247
      %p250 = scmp.ne.s32.totalorder %s233, %s249
      %p251 = scmp.eq.s32.totalorder %s26, 0
      %p252 = por %p250, %p251
      %p253 = scmp.le.s32.totalorder 1, %s20
      %p254 = scmp.lt.s32.totalorder %s20, 3
      %p255 = pnand %p253, %p254
      %p256 = pneg %p255
      // Predicated region
      $region9: #{_decoder_mlp_pallas.1} parent=5 // pred_check
        _
      $region10: #{_decoder_mlp_pallas.1} parent=5 // pred_check_branch
        %258 = sbr.rel (%p255) target = $region12
      $region11: #{_decoder_mlp_pallas.1} parent=5 // pred_region
        %s259 = ssub.s32 %s20, 1
        // Predicated region
        $region13: #{_decoder_mlp_pallas.1} parent=11 // pred_check
          %p260 = pneg %p93
        $region14: #{_decoder_mlp_pallas.1} parent=11 // pred_check_branch
          %262 = sbr.rel (%p260) target = $region16
        $region15: #{_decoder_mlp_pallas.1} parent=11 // pred_region
          _
        $region16: #{_decoder_mlp_pallas.1} parent=11 // pred_fallthru
          _
        // Predicated region
        $region17: #{_decoder_mlp_pallas.1} parent=11 // pred_check
          %p263 = pneg %p114
        $region18: #{_decoder_mlp_pallas.1} parent=11 // pred_check_branch
          %265 = sbr.rel (%p263) target = $region20
        $region19: #{_decoder_mlp_pallas.1} parent=11 // pred_region
          _
        $region20: #{_decoder_mlp_pallas.1} parent=11 // pred_fallthru
          _
        // Predicated region
        $region21: #{_decoder_mlp_pallas.1} parent=11 // pred_check
          %p266 = pneg %p135
        $region22: #{_decoder_mlp_pallas.1} parent=11 // pred_check_branch
          %268 = sbr.rel (%p266) target = $region24
        $region23: #{_decoder_mlp_pallas.1} parent=11 // pred_region
          _
        $region24: #{_decoder_mlp_pallas.1} parent=11 // pred_fallthru
          _
        // Predicated region
        $region25: #{_decoder_mlp_pallas.1} parent=11 // pred_check
          %p269 = pneg %p156
        $region26: #{_decoder_mlp_pallas.1} parent=11 // pred_check_branch
          %271 = sbr.rel (%p269) target = $region28
        $region27: #{_decoder_mlp_pallas.1} parent=11 // pred_region
          _
        $region28: #{_decoder_mlp_pallas.1} parent=11 // pred_fallthru
          _
        // Predicated region
        $region29: #{_decoder_mlp_pallas.1} parent=11 // pred_check
          %p272 = pneg %p177
        $region30: #{_decoder_mlp_pallas.1} parent=11 // pred_check_branch
          %274 = sbr.rel (%p272) target = $region32
        $region31: #{_decoder_mlp_pallas.1} parent=11 // pred_region
          _
        $region32: #{_decoder_mlp_pallas.1} parent=11 // pred_fallthru
          _
        // Predicated region
        $region33: #{_decoder_mlp_pallas.1} parent=11 // pred_check
          %p275 = pneg %p198
        $region34: #{_decoder_mlp_pallas.1} parent=11 // pred_check_branch
          %277 = sbr.rel (%p275) target = $region36
        $region35: #{_decoder_mlp_pallas.1} parent=11 // pred_region
          _
        $region36: #{_decoder_mlp_pallas.1} parent=11 // pred_fallthru
          _
        // Predicated region
        $region37: #{_decoder_mlp_pallas.1} parent=11 // pred_check
          %p278 = pneg %p219
        $region38: #{_decoder_mlp_pallas.1} parent=11 // pred_check_branch
          %280 = sbr.rel (%p278) target = $region40
        $region39: #{_decoder_mlp_pallas.1} parent=11 // pred_region
          _
        $region40: #{_decoder_mlp_pallas.1} parent=11 // pred_fallthru
          _
      $region12: #{_decoder_mlp_pallas.1} parent=5 // pred_fallthru
        _
      %p281 = scmp.lt.s32.totalorder %s20, 2
      // Predicated region
      $region41: #{_decoder_mlp_pallas.1} parent=5 // pred_check
        %p282 = pneg %p281
      $region42: #{_decoder_mlp_pallas.1} parent=5 // pred_check_branch
        %284 = sbr.rel (%p282) target = $region44
      $region43: #{_decoder_mlp_pallas.1} parent=5 // pred_region
        // Predicated region
        $region45: #{_decoder_mlp_pallas.1} parent=43 // pred_check
          %p285 = pneg %p40
        $region46: #{_decoder_mlp_pallas.1} parent=43 // pred_check_branch
          %287 = sbr.rel (%p285) target = $region48
        $region47: #{_decoder_mlp_pallas.1} parent=43 // pred_region
          %s288 = smul.u32 4, %s20
          %p289 = scmp.lt.s32.totalorder %s288, 7
          %s290 = scalar_select %p289, %s288, 7
          %s291 = scalar_lea.vmem %s0, %s290
          %s292 = smul.u32 4, %s20
        $region48: #{_decoder_mlp_pallas.1} parent=43 // pred_fallthru
          _
        // Predicated region
        $region49: #{_decoder_mlp_pallas.1} parent=43 // pred_check
          %p293 = pneg %p66
        $region50: #{_decoder_mlp_pallas.1} parent=43 // pred_check_branch
          %295 = sbr.rel (%p293) target = $region52
        $region51: #{_decoder_mlp_pallas.1} parent=43 // pred_region
          %s296 = smul.u32 4, %s20
          %p297 = scmp.lt.s32.totalorder %s296, 7
          %s298 = scalar_select %p297, %s296, 7
          %s299 = scalar_lea.vmem %s1, %s298
          %s300 = smul.u32 4, %s20
        $region52: #{_decoder_mlp_pallas.1} parent=43 // pred_fallthru
          _
      $region44: #{_decoder_mlp_pallas.1} parent=5 // pred_fallthru
        _
      %p301 = scmp.le.s32.totalorder 1, %s20
      %p302 = scmp.lt.s32.totalorder %s20, 3
      %p303 = pnand %p301, %p302
      %p304 = pneg %p303
      // Predicated region
      $region53: #{_decoder_mlp_pallas.1} parent=5 // pred_check
        _
      $region54: #{_decoder_mlp_pallas.1} parent=5 // pred_check_branch
        %306 = sbr.rel (%p303) target = $region56
      $region55: #{_decoder_mlp_pallas.1} parent=5 // pred_region
        %s307 = ssub.s32 %s20, 1
        %s308 = smul.u32 4, %s25
        %p309 = scmp.lt.s32.totalorder %s308, 7
        %s310 = scalar_select %p309, %s308, 7
        %s311 = scalar_lea.vmem %s0, %s310
        %p312 = pneg %p46
        %p313 = pneg %p43
        %s314 = smul.u32 4, %s25
        %p315 = scmp.lt.s32.totalorder %s314, 7
        %s316 = scalar_select %p315, %s314, 7
        %s317 = scalar_lea.vmem %s1, %s316
        %p318 = pneg %p72
        %p319 = pneg %p69
        %p320 = pneg %p93
        %p321 = pneg %p90
        %p322 = pneg %p114
        %p323 = pneg %p111
        %p324 = pneg %p135
        %p325 = pneg %p132
        %p326 = pneg %p156
        %p327 = pneg %p153
        %p328 = pneg %p177
        %p329 = pneg %p174
        %p330 = pneg %p198
        %p331 = pneg %p195
        %p332 = pneg %p219
        %p333 = pneg %p216
        %p334 = pneg %p245
        %p335 = pneg %p242
        %s336 = sand.u32 %s232, 1
        %s337 = scalar_lea.sflag [#allocation4], %s336
        %s338 = sand.u32 %s232, 1
        %s339 = smul.addr %s338, 4
        %s340 = scalar_lea.vmem [#allocation3], %s339
        %s341 = smul.u32 4, %s25
        %p342 = scmp.lt.s32.totalorder %s341, 7
        %s343 = scalar_select %p342, %s341, 7
        %s344 = scalar_lea.vmem %s0, %s343
        %s345 = smul.u32 4, %s25
        %s346 = smul.u32 4, %s25
        %p347 = scmp.lt.s32.totalorder %s346, 7
        %s348 = scalar_select %p347, %s346, 7
        %s349 = scalar_lea.vmem %s1, %s348
        %s350 = smul.u32 4, %s25
        %s351 = smul.u32 4, %s25
        %v353 = vlaneseq
        %v354 = vshrl.u32 %v353, 7
        %v355 = vadd.s32 %v354, 8
        %v356 = vadd.s32 %v354, 16
        %v357 = vadd.s32 %v354, 24
        %v358 = vadd.s32 %v354, 32
        %v359 = vadd.s32 %v354, 40
        %v360 = vadd.s32 %v354, 48
        %v361 = vadd.s32 %v354, 56
        %v362 = vadd.s32 %v354, 64
        %v363 = vadd.s32 %v354, 72
        %v364 = vadd.s32 %v354, 80
        %v365 = vadd.s32 %v354, 88
        %v366 = vadd.s32 %v354, 96
        %v367 = vadd.s32 %v354, 104
        %v368 = vadd.s32 %v354, 112
        %v369 = vadd.s32 %v354, 120
        %v370 = vadd.s32 %v354, 128
        %v371 = vadd.s32 %v354, 136
        %v372 = vadd.s32 %v354, 144
        %v373 = vadd.s32 %v354, 152
        %v374 = vadd.s32 %v354, 160
        %v375 = vadd.s32 %v354, 168
        %v376 = vadd.s32 %v354, 176
        %v377 = vadd.s32 %v354, 184
        %v378 = vadd.s32 %v354, 192
        %v379 = vld [vmem:[%s344] sm:$0xf]
        %v380 = vlaneseq
        %v381 = vshrl.u32 %v380, 7
        %v382 = vsub.s32 0, %v381
        %v383 = vrot.slane %v379, %v382
        %v384 = vlaneseq
        %v385 = vshrl.u32 %v384, 7
        %v386 = vsub.s32 1, %v385
        %v387 = vrot.slane %v379, %v386
        %v388 = vlaneseq
        %v389 = vshrl.u32 %v388, 7
        %v390 = vsub.s32 2, %v389
        %v391 = vrot.slane %v379, %v390
        %v392 = vlaneseq
        %v393 = vshrl.u32 %v392, 7
        %v394 = vsub.s32 3, %v393
        %v395 = vrot.slane %v379, %v394
        %vm396 = vcmp.eq.s32.totalorder %v354, %v383
        %vm397 = vcmp.eq.s32.totalorder %v354, %v387
        %vm398 = vcmp.eq.s32.totalorder %v354, %v391
        %vm399 = vcmp.eq.s32.totalorder %v354, %v395
        %vm400 = vcmp.eq.s32.totalorder %v355, %v383
        %vm401 = vcmp.eq.s32.totalorder %v355, %v387
        %vm402 = vcmp.eq.s32.totalorder %v355, %v391
        %vm403 = vcmp.eq.s32.totalorder %v355, %v395
        %vm404 = vcmp.eq.s32.totalorder %v356, %v383
        %vm405 = vcmp.eq.s32.totalorder %v356, %v387
        %vm406 = vcmp.eq.s32.totalorder %v356, %v391
        %vm407 = vcmp.eq.s32.totalorder %v356, %v395
        %vm408 = vcmp.eq.s32.totalorder %v357, %v383
        %vm409 = vcmp.eq.s32.totalorder %v357, %v387
        %vm410 = vcmp.eq.s32.totalorder %v357, %v391
        %vm411 = vcmp.eq.s32.totalorder %v357, %v395
        %vm412 = vcmp.eq.s32.totalorder %v358, %v383
        %vm413 = vcmp.eq.s32.totalorder %v358, %v387
        %vm414 = vcmp.eq.s32.totalorder %v358, %v391
        %vm415 = vcmp.eq.s32.totalorder %v358, %v395
        %vm416 = vcmp.eq.s32.totalorder %v359, %v383
        %vm417 = vcmp.eq.s32.totalorder %v359, %v387
        %vm418 = vcmp.eq.s32.totalorder %v359, %v391
        %vm419 = vcmp.eq.s32.totalorder %v359, %v395
        %vm420 = vcmp.eq.s32.totalorder %v360, %v383
        %vm421 = vcmp.eq.s32.totalorder %v360, %v387
        %vm422 = vcmp.eq.s32.totalorder %v360, %v391
        %vm423 = vcmp.eq.s32.totalorder %v360, %v395
        %vm424 = vcmp.eq.s32.totalorder %v361, %v383
        %vm425 = vcmp.eq.s32.totalorder %v361, %v387
        %vm426 = vcmp.eq.s32.totalorder %v361, %v391
        %vm427 = vcmp.eq.s32.totalorder %v361, %v395
        %vm428 = vcmp.eq.s32.totalorder %v362, %v383
        %vm429 = vcmp.eq.s32.totalorder %v362, %v387
        %vm430 = vcmp.eq.s32.totalorder %v362, %v391
        %vm431 = vcmp.eq.s32.totalorder %v362, %v395
        %vm432 = vcmp.eq.s32.totalorder %v363, %v383
        %vm433 = vcmp.eq.s32.totalorder %v363, %v387
        %vm434 = vcmp.eq.s32.totalorder %v363, %v391
        %vm435 = vcmp.eq.s32.totalorder %v363, %v395
        %vm436 = vcmp.eq.s32.totalorder %v364, %v383
        %vm437 = vcmp.eq.s32.totalorder %v364, %v387
        %vm438 = vcmp.eq.s32.totalorder %v364, %v391
        %vm439 = vcmp.eq.s32.totalorder %v364, %v395
        %vm440 = vcmp.eq.s32.totalorder %v365, %v383
        %vm441 = vcmp.eq.s32.totalorder %v365, %v387
        %vm442 = vcmp.eq.s32.totalorder %v365, %v391
        %vm443 = vcmp.eq.s32.totalorder %v365, %v395
        %vm444 = vcmp.eq.s32.totalorder %v366, %v383
        %vm445 = vcmp.eq.s32.totalorder %v366, %v387
        %vm446 = vcmp.eq.s32.totalorder %v366, %v391
        %vm447 = vcmp.eq.s32.totalorder %v366, %v395
        %vm448 = vcmp.eq.s32.totalorder %v367, %v383
        %vm449 = vcmp.eq.s32.totalorder %v367, %v387
        %vm450 = vcmp.eq.s32.totalorder %v367, %v391
        %vm451 = vcmp.eq.s32.totalorder %v367, %v395
        %vm452 = vcmp.eq.s32.totalorder %v368, %v383
        %vm453 = vcmp.eq.s32.totalorder %v368, %v387
        %vm454 = vcmp.eq.s32.totalorder %v368, %v391
        %vm455 = vcmp.eq.s32.totalorder %v368, %v395
        %vm456 = vcmp.eq.s32.totalorder %v369, %v383
        %vm457 = vcmp.eq.s32.totalorder %v369, %v387
        %vm458 = vcmp.eq.s32.totalorder %v369, %v391
        %vm459 = vcmp.eq.s32.totalorder %v369, %v395
        %vm460 = vcmp.eq.s32.totalorder %v370, %v383
        %vm461 = vcmp.eq.s32.totalorder %v370, %v387
        %vm462 = vcmp.eq.s32.totalorder %v370, %v391
        %vm463 = vcmp.eq.s32.totalorder %v370, %v395
        %vm464 = vcmp.eq.s32.totalorder %v371, %v383
        %vm465 = vcmp.eq.s32.totalorder %v371, %v387
        %vm466 = vcmp.eq.s32.totalorder %v371, %v391
        %vm467 = vcmp.eq.s32.totalorder %v371, %v395
        %vm468 = vcmp.eq.s32.totalorder %v372, %v383
        %vm469 = vcmp.eq.s32.totalorder %v372, %v387
        %vm470 = vcmp.eq.s32.totalorder %v372, %v391
        %vm471 = vcmp.eq.s32.totalorder %v372, %v395
        %vm472 = vcmp.eq.s32.totalorder %v373, %v383
        %vm473 = vcmp.eq.s32.totalorder %v373, %v387
        %vm474 = vcmp.eq.s32.totalorder %v373, %v391
        %vm475 = vcmp.eq.s32.totalorder %v373, %v395
        %vm476 = vcmp.eq.s32.totalorder %v374, %v383
        %vm477 = vcmp.eq.s32.totalorder %v374, %v387
        %vm478 = vcmp.eq.s32.totalorder %v374, %v391
        %vm479 = vcmp.eq.s32.totalorder %v374, %v395
        %vm480 = vcmp.eq.s32.totalorder %v375, %v383
        %vm481 = vcmp.eq.s32.totalorder %v375, %v387
        %vm482 = vcmp.eq.s32.totalorder %v375, %v391
        %vm483 = vcmp.eq.s32.totalorder %v375, %v395
        %vm484 = vcmp.eq.s32.totalorder %v376, %v383
        %vm485 = vcmp.eq.s32.totalorder %v376, %v387
        %vm486 = vcmp.eq.s32.totalorder %v376, %v391
        %vm487 = vcmp.eq.s32.totalorder %v376, %v395
        %vm488 = vcmp.eq.s32.totalorder %v377, %v383
        %vm489 = vcmp.eq.s32.totalorder %v377, %v387
        %vm490 = vcmp.eq.s32.totalorder %v377, %v391
        %vm491 = vcmp.eq.s32.totalorder %v377, %v395
        %vm492 = vcmp.eq.s32.totalorder %v378, %v383
        %vm493 = vcmp.eq.s32.totalorder %v378, %v387
        %vm494 = vcmp.eq.s32.totalorder %v378, %v391
        %vm495 = vcmp.eq.s32.totalorder %v378, %v395
        %v496 = vsel %vm396, 1.0, 0.0
        %v497 = vsel %vm397, 1.0, 0.0
        %v498 = vsel %vm398, 1.0, 0.0
        %v499 = vsel %vm399, 1.0, 0.0
        %v500 = vsel %vm400, 1.0, 0.0
        %v501 = vsel %vm401, 1.0, 0.0
        %v502 = vsel %vm402, 1.0, 0.0
        %v503 = vsel %vm403, 1.0, 0.0
        %v504 = vsel %vm404, 1.0, 0.0
        %v505 = vsel %vm405, 1.0, 0.0
        %v506 = vsel %vm406, 1.0, 0.0
        %v507 = vsel %vm407, 1.0, 0.0
        %v508 = vsel %vm408, 1.0, 0.0
        %v509 = vsel %vm409, 1.0, 0.0
        %v510 = vsel %vm410, 1.0, 0.0
        %v511 = vsel %vm411, 1.0, 0.0
        %v512 = vsel %vm412, 1.0, 0.0
        %v513 = vsel %vm413, 1.0, 0.0
        %v514 = vsel %vm414, 1.0, 0.0
        %v515 = vsel %vm415, 1.0, 0.0
        %v516 = vsel %vm416, 1.0, 0.0
        %v517 = vsel %vm417, 1.0, 0.0
        %v518 = vsel %vm418, 1.0, 0.0
        %v519 = vsel %vm419, 1.0, 0.0
        %v520 = vsel %vm420, 1.0, 0.0
        %v521 = vsel %vm421, 1.0, 0.0
        %v522 = vsel %vm422, 1.0, 0.0
        %v523 = vsel %vm423, 1.0, 0.0
        %v524 = vsel %vm424, 1.0, 0.0
        %v525 = vsel %vm425, 1.0, 0.0
        %v526 = vsel %vm426, 1.0, 0.0
        %v527 = vsel %vm427, 1.0, 0.0
        %v528 = vsel %vm428, 1.0, 0.0
        %v529 = vsel %vm429, 1.0, 0.0
        %v530 = vsel %vm430, 1.0, 0.0
        %v531 = vsel %vm431, 1.0, 0.0
        %v532 = vsel %vm432, 1.0, 0.0
        %v533 = vsel %vm433, 1.0, 0.0
        %v534 = vsel %vm434, 1.0, 0.0
        %v535 = vsel %vm435, 1.0, 0.0
        %v536 = vsel %vm436, 1.0, 0.0
        %v537 = vsel %vm437, 1.0, 0.0
        %v538 = vsel %vm438, 1.0, 0.0
        %v539 = vsel %vm439, 1.0, 0.0
        %v540 = vsel %vm440, 1.0, 0.0
        %v541 = vsel %vm441, 1.0, 0.0
        %v542 = vsel %vm442, 1.0, 0.0
        %v543 = vsel %vm443, 1.0, 0.0
        %v544 = vsel %vm444, 1.0, 0.0
        %v545 = vsel %vm445, 1.0, 0.0
        %v546 = vsel %vm446, 1.0, 0.0
        %v547 = vsel %vm447, 1.0, 0.0
        %v548 = vsel %vm448, 1.0, 0.0
        %v549 = vsel %vm449, 1.0, 0.0
        %v550 = vsel %vm450, 1.0, 0.0
        %v551 = vsel %vm451, 1.0, 0.0
        %v552 = vsel %vm452, 1.0, 0.0
        %v553 = vsel %vm453, 1.0, 0.0
        %v554 = vsel %vm454, 1.0, 0.0
        %v555 = vsel %vm455, 1.0, 0.0
        %v556 = vsel %vm456, 1.0, 0.0
        %v557 = vsel %vm457, 1.0, 0.0
        %v558 = vsel %vm458, 1.0, 0.0
        %v559 = vsel %vm459, 1.0, 0.0
        %v560 = vsel %vm460, 1.0, 0.0
        %v561 = vsel %vm461, 1.0, 0.0
        %v562 = vsel %vm462, 1.0, 0.0
        %v563 = vsel %vm463, 1.0, 0.0
        %v564 = vsel %vm464, 1.0, 0.0
        %v565 = vsel %vm465, 1.0, 0.0
        %v566 = vsel %vm466, 1.0, 0.0
        %v567 = vsel %vm467, 1.0, 0.0
        %v568 = vsel %vm468, 1.0, 0.0
        %v569 = vsel %vm469, 1.0, 0.0
        %v570 = vsel %vm470, 1.0, 0.0
        %v571 = vsel %vm471, 1.0, 0.0
        %v572 = vsel %vm472, 1.0, 0.0
        %v573 = vsel %vm473, 1.0, 0.0
        %v574 = vsel %vm474, 1.0, 0.0
        %v575 = vsel %vm475, 1.0, 0.0
        %v576 = vsel %vm476, 1.0, 0.0
        %v577 = vsel %vm477, 1.0, 0.0
        %v578 = vsel %vm478, 1.0, 0.0
        %v579 = vsel %vm479, 1.0, 0.0
        %v580 = vsel %vm480, 1.0, 0.0
        %v581 = vsel %vm481, 1.0, 0.0
        %v582 = vsel %vm482, 1.0, 0.0
        %v583 = vsel %vm483, 1.0, 0.0
        %v584 = vsel %vm484, 1.0, 0.0
        %v585 = vsel %vm485, 1.0, 0.0
        %v586 = vsel %vm486, 1.0, 0.0
        %v587 = vsel %vm487, 1.0, 0.0
        %v588 = vsel %vm488, 1.0, 0.0
        %v589 = vsel %vm489, 1.0, 0.0
        %v590 = vsel %vm490, 1.0, 0.0
        %v591 = vsel %vm491, 1.0, 0.0
        %v592 = vsel %vm492, 1.0, 0.0
        %v593 = vsel %vm493, 1.0, 0.0
        %v594 = vsel %vm494, 1.0, 0.0
        %v595 = vsel %vm495, 1.0, 0.0
        %v596 = vld [vmem:[%s349] sm:$0xf]
        %v597 = vlaneseq
        %v598 = vshrl.u32 %v597, 7
        %v599 = vsub.s32 0, %v598
        %v600 = vrot.slane %v596, %v599
        %v601 = vlaneseq
        %v602 = vshrl.u32 %v601, 7
        %v603 = vsub.s32 1, %v602
        %v604 = vrot.slane %v596, %v603
        %v605 = vlaneseq
        %v606 = vshrl.u32 %v605, 7
        %v607 = vsub.s32 2, %v606
        %v608 = vrot.slane %v596, %v607
        %v609 = vlaneseq
        %v610 = vshrl.u32 %v609, 7
        %v611 = vsub.s32 3, %v610
        %v612 = vrot.slane %v596, %v611
        %vm613 = vcmp.eq.s32.totalorder %v354, %v600
        %vm614 = vcmp.eq.s32.totalorder %v354, %v604
        %vm615 = vcmp.eq.s32.totalorder %v354, %v608
        %vm616 = vcmp.eq.s32.totalorder %v354, %v612
        %vm617 = vcmp.eq.s32.totalorder %v355, %v600
        %vm618 = vcmp.eq.s32.totalorder %v355, %v604
        %vm619 = vcmp.eq.s32.totalorder %v355, %v608
        %vm620 = vcmp.eq.s32.totalorder %v355, %v612
        %vm621 = vcmp.eq.s32.totalorder %v356, %v600
        %vm622 = vcmp.eq.s32.totalorder %v356, %v604
        %vm623 = vcmp.eq.s32.totalorder %v356, %v608
        %vm624 = vcmp.eq.s32.totalorder %v356, %v612
        %vm625 = vcmp.eq.s32.totalorder %v357, %v600
        %vm626 = vcmp.eq.s32.totalorder %v357, %v604
        %vm627 = vcmp.eq.s32.totalorder %v357, %v608
        %vm628 = vcmp.eq.s32.totalorder %v357, %v612
        %vm629 = vcmp.eq.s32.totalorder %v358, %v600
        %vm630 = vcmp.eq.s32.totalorder %v358, %v604
        %vm631 = vcmp.eq.s32.totalorder %v358, %v608
        %vm632 = vcmp.eq.s32.totalorder %v358, %v612
        %vm633 = vcmp.eq.s32.totalorder %v359, %v600
        %vm634 = vcmp.eq.s32.totalorder %v359, %v604
        %vm635 = vcmp.eq.s32.totalorder %v359, %v608
        %vm636 = vcmp.eq.s32.totalorder %v359, %v612
        %vm637 = vcmp.eq.s32.totalorder %v360, %v600
        %vm638 = vcmp.eq.s32.totalorder %v360, %v604
        %vm639 = vcmp.eq.s32.totalorder %v360, %v608
        %vm640 = vcmp.eq.s32.totalorder %v360, %v612
        %vm641 = vcmp.eq.s32.totalorder %v361, %v600
        %vm642 = vcmp.eq.s32.totalorder %v361, %v604
        %vm643 = vcmp.eq.s32.totalorder %v361, %v608
        %vm644 = vcmp.eq.s32.totalorder %v361, %v612
        %vm645 = vcmp.eq.s32.totalorder %v362, %v600
        %vm646 = vcmp.eq.s32.totalorder %v362, %v604
        %vm647 = vcmp.eq.s32.totalorder %v362, %v608
        %vm648 = vcmp.eq.s32.totalorder %v362, %v612
        %vm649 = vcmp.eq.s32.totalorder %v363, %v600
        %vm650 = vcmp.eq.s32.totalorder %v363, %v604
        %vm651 = vcmp.eq.s32.totalorder %v363, %v608
        %vm652 = vcmp.eq.s32.totalorder %v363, %v612
        %vm653 = vcmp.eq.s32.totalorder %v364, %v600
        %vm654 = vcmp.eq.s32.totalorder %v364, %v604
        %vm655 = vcmp.eq.s32.totalorder %v364, %v608
        %vm656 = vcmp.eq.s32.totalorder %v364, %v612
        %vm657 = vcmp.eq.s32.totalorder %v365, %v600
        %vm658 = vcmp.eq.s32.totalorder %v365, %v604
        %vm659 = vcmp.eq.s32.totalorder %v365, %v608
        %vm660 = vcmp.eq.s32.totalorder %v365, %v612
        %vm661 = vcmp.eq.s32.totalorder %v366, %v600
        %vm662 = vcmp.eq.s32.totalorder %v366, %v604
        %vm663 = vcmp.eq.s32.totalorder %v366, %v608
        %vm664 = vcmp.eq.s32.totalorder %v366, %v612
        %vm665 = vcmp.eq.s32.totalorder %v367, %v600
        %vm666 = vcmp.eq.s32.totalorder %v367, %v604
        %vm667 = vcmp.eq.s32.totalorder %v367, %v608
        %vm668 = vcmp.eq.s32.totalorder %v367, %v612
        %vm669 = vcmp.eq.s32.totalorder %v368, %v600
        %vm670 = vcmp.eq.s32.totalorder %v368, %v604
        %vm671 = vcmp.eq.s32.totalorder %v368, %v608
        %vm672 = vcmp.eq.s32.totalorder %v368, %v612
        %vm673 = vcmp.eq.s32.totalorder %v369, %v600
        %vm674 = vcmp.eq.s32.totalorder %v369, %v604
        %vm675 = vcmp.eq.s32.totalorder %v369, %v608
        %vm676 = vcmp.eq.s32.totalorder %v369, %v612
        %vm677 = vcmp.eq.s32.totalorder %v370, %v600
        %vm678 = vcmp.eq.s32.totalorder %v370, %v604
        %vm679 = vcmp.eq.s32.totalorder %v370, %v608
        %vm680 = vcmp.eq.s32.totalorder %v370, %v612
        %vm681 = vcmp.eq.s32.totalorder %v371, %v600
        %vm682 = vcmp.eq.s32.totalorder %v371, %v604
        %vm683 = vcmp.eq.s32.totalorder %v371, %v608
        %vm684 = vcmp.eq.s32.totalorder %v371, %v612
        %vm685 = vcmp.eq.s32.totalorder %v372, %v600
        %vm686 = vcmp.eq.s32.totalorder %v372, %v604
        %vm687 = vcmp.eq.s32.totalorder %v372, %v608
        %vm688 = vcmp.eq.s32.totalorder %v372, %v612
        %vm689 = vcmp.eq.s32.totalorder %v373, %v600
        %vm690 = vcmp.eq.s32.totalorder %v373, %v604
        %vm691 = vcmp.eq.s32.totalorder %v373, %v608
        %vm692 = vcmp.eq.s32.totalorder %v373, %v612
        %vm693 = vcmp.eq.s32.totalorder %v374, %v600
        %vm694 = vcmp.eq.s32.totalorder %v374, %v604
        %vm695 = vcmp.eq.s32.totalorder %v374, %v608
        %vm696 = vcmp.eq.s32.totalorder %v374, %v612
        %vm697 = vcmp.eq.s32.totalorder %v375, %v600
        %vm698 = vcmp.eq.s32.totalorder %v375, %v604
        %vm699 = vcmp.eq.s32.totalorder %v375, %v608
        %vm700 = vcmp.eq.s32.totalorder %v375, %v612
        %vm701 = vcmp.eq.s32.totalorder %v376, %v600
        %vm702 = vcmp.eq.s32.totalorder %v376, %v604
        %vm703 = vcmp.eq.s32.totalorder %v376, %v608
        %vm704 = vcmp.eq.s32.totalorder %v376, %v612
        %vm705 = vcmp.eq.s32.totalorder %v377, %v600
        %vm706 = vcmp.eq.s32.totalorder %v377, %v604
        %vm707 = vcmp.eq.s32.totalorder %v377, %v608
        %vm708 = vcmp.eq.s32.totalorder %v377, %v612
        %vm709 = vcmp.eq.s32.totalorder %v378, %v600
        %vm710 = vcmp.eq.s32.totalorder %v378, %v604
        %vm711 = vcmp.eq.s32.totalorder %v378, %v608
        %vm712 = vcmp.eq.s32.totalorder %v378, %v612
        %v713 = vsel %vm613, 1.0, 0.0
        %v714 = vsel %vm614, 1.0, 0.0
        %v715 = vsel %vm615, 1.0, 0.0
        %v716 = vsel %vm616, 1.0, 0.0
        %v717 = vsel %vm617, 1.0, 0.0
        %v718 = vsel %vm618, 1.0, 0.0
        %v719 = vsel %vm619, 1.0, 0.0
        %v720 = vsel %vm620, 1.0, 0.0
        %v721 = vsel %vm621, 1.0, 0.0
        %v722 = vsel %vm622, 1.0, 0.0
        %v723 = vsel %vm623, 1.0, 0.0
        %v724 = vsel %vm624, 1.0, 0.0
        %v725 = vsel %vm625, 1.0, 0.0
        %v726 = vsel %vm626, 1.0, 0.0
        %v727 = vsel %vm627, 1.0, 0.0
        %v728 = vsel %vm628, 1.0, 0.0
        %v729 = vsel %vm629, 1.0, 0.0
        %v730 = vsel %vm630, 1.0, 0.0
        %v731 = vsel %vm631, 1.0, 0.0
        %v732 = vsel %vm632, 1.0, 0.0
        %v733 = vsel %vm633, 1.0, 0.0
        %v734 = vsel %vm634, 1.0, 0.0
        %v735 = vsel %vm635, 1.0, 0.0
        %v736 = vsel %vm636, 1.0, 0.0
        %v737 = vsel %vm637, 1.0, 0.0
        %v738 = vsel %vm638, 1.0, 0.0
        %v739 = vsel %vm639, 1.0, 0.0
        %v740 = vsel %vm640, 1.0, 0.0
        %v741 = vsel %vm641, 1.0, 0.0
        %v742 = vsel %vm642, 1.0, 0.0
        %v743 = vsel %vm643, 1.0, 0.0
        %v744 = vsel %vm644, 1.0, 0.0
        %v745 = vsel %vm645, 1.0, 0.0
        %v746 = vsel %vm646, 1.0, 0.0
        %v747 = vsel %vm647, 1.0, 0.0
        %v748 = vsel %vm648, 1.0, 0.0
        %v749 = vsel %vm649, 1.0, 0.0
        %v750 = vsel %vm650, 1.0, 0.0
        %v751 = vsel %vm651, 1.0, 0.0
        %v752 = vsel %vm652, 1.0, 0.0
        %v753 = vsel %vm653, 1.0, 0.0
        %v754 = vsel %vm654, 1.0, 0.0
        %v755 = vsel %vm655, 1.0, 0.0
        %v756 = vsel %vm656, 1.0, 0.0
        %v757 = vsel %vm657, 1.0, 0.0
        %v758 = vsel %vm658, 1.0, 0.0
        %v759 = vsel %vm659, 1.0, 0.0
        %v760 = vsel %vm660, 1.0, 0.0
        %v761 = vsel %vm661, 1.0, 0.0
        %v762 = vsel %vm662, 1.0, 0.0
        %v763 = vsel %vm663, 1.0, 0.0
        %v764 = vsel %vm664, 1.0, 0.0
        %v765 = vsel %vm665, 1.0, 0.0
        %v766 = vsel %vm666, 1.0, 0.0
        %v767 = vsel %vm667, 1.0, 0.0
        %v768 = vsel %vm668, 1.0, 0.0
        %v769 = vsel %vm669, 1.0, 0.0
        %v770 = vsel %vm670, 1.0, 0.0
        %v771 = vsel %vm671, 1.0, 0.0
        %v772 = vsel %vm672, 1.0, 0.0
        %v773 = vsel %vm673, 1.0, 0.0
        %v774 = vsel %vm674, 1.0, 0.0
        %v775 = vsel %vm675, 1.0, 0.0
        %v776 = vsel %vm676, 1.0, 0.0
        %v777 = vsel %vm677, 1.0, 0.0
        %v778 = vsel %vm678, 1.0, 0.0
        %v779 = vsel %vm679, 1.0, 0.0
        %v780 = vsel %vm680, 1.0, 0.0
        %v781 = vsel %vm681, 1.0, 0.0
        %v782 = vsel %vm682, 1.0, 0.0
        %v783 = vsel %vm683, 1.0, 0.0
        %v784 = vsel %vm684, 1.0, 0.0
        %v785 = vsel %vm685, 1.0, 0.0
        %v786 = vsel %vm686, 1.0, 0.0
        %v787 = vsel %vm687, 1.0, 0.0
        %v788 = vsel %vm688, 1.0, 0.0
        %v789 = vsel %vm689, 1.0, 0.0
        %v790 = vsel %vm690, 1.0, 0.0
        %v791 = vsel %vm691, 1.0, 0.0
        %v792 = vsel %vm692, 1.0, 0.0
        %v793 = vsel %vm693, 1.0, 0.0
        %v794 = vsel %vm694, 1.0, 0.0
        %v795 = vsel %vm695, 1.0, 0.0
        %v796 = vsel %vm696, 1.0, 0.0
        %v797 = vsel %vm697, 1.0, 0.0
        %v798 = vsel %vm698, 1.0, 0.0
        %v799 = vsel %vm699, 1.0, 0.0
        %v800 = vsel %vm700, 1.0, 0.0
        %v801 = vsel %vm701, 1.0, 0.0
        %v802 = vsel %vm702, 1.0, 0.0
        %v803 = vsel %vm703, 1.0, 0.0
        %v804 = vsel %vm704, 1.0, 0.0
        %v805 = vsel %vm705, 1.0, 0.0
        %v806 = vsel %vm706, 1.0, 0.0
        %v807 = vsel %vm707, 1.0, 0.0
        %v808 = vsel %vm708, 1.0, 0.0
        %v809 = vsel %vm709, 1.0, 0.0
        %v810 = vsel %vm710, 1.0, 0.0
        %v811 = vsel %vm711, 1.0, 0.0
        %v812 = vsel %vm712, 1.0, 0.0
        %v813 = vsub.f32 %v496, %v713
        %v814 = vsub.f32 %v497, %v714
        %v815 = vsub.f32 %v498, %v715
        %v816 = vsub.f32 %v499, %v716
        %v817 = vsub.f32 %v500, %v717
        %v818 = vsub.f32 %v501, %v718
        %v819 = vsub.f32 %v502, %v719
        %v820 = vsub.f32 %v503, %v720
        %v821 = vsub.f32 %v504, %v721
        %v822 = vsub.f32 %v505, %v722
        %v823 = vsub.f32 %v506, %v723
        %v824 = vsub.f32 %v507, %v724
        %v825 = vsub.f32 %v508, %v725
        %v826 = vsub.f32 %v509, %v726
        %v827 = vsub.f32 %v510, %v727
        %v828 = vsub.f32 %v511, %v728
        %v829 = vsub.f32 %v512, %v729
        %v830 = vsub.f32 %v513, %v730
        %v831 = vsub.f32 %v514, %v731
        %v832 = vsub.f32 %v515, %v732
        %v833 = vsub.f32 %v516, %v733
        %v834 = vsub.f32 %v517, %v734
        %v835 = vsub.f32 %v518, %v735
        %v836 = vsub.f32 %v519, %v736
        %v837 = vsub.f32 %v520, %v737
        %v838 = vsub.f32 %v521, %v738
        %v839 = vsub.f32 %v522, %v739
        %v840 = vsub.f32 %v523, %v740
        %v841 = vsub.f32 %v524, %v741
        %v842 = vsub.f32 %v525, %v742
        %v843 = vsub.f32 %v526, %v743
        %v844 = vsub.f32 %v527, %v744
        %v845 = vsub.f32 %v528, %v745
        %v846 = vsub.f32 %v529, %v746
        %v847 = vsub.f32 %v530, %v747
        %v848 = vsub.f32 %v531, %v748
        %v849 = vsub.f32 %v532, %v749
        %v850 = vsub.f32 %v533, %v750
        %v851 = vsub.f32 %v534, %v751
        %v852 = vsub.f32 %v535, %v752
        %v853 = vsub.f32 %v536, %v753
        %v854 = vsub.f32 %v537, %v754
        %v855 = vsub.f32 %v538, %v755
        %v856 = vsub.f32 %v539, %v756
        %v857 = vsub.f32 %v540, %v757
        %v858 = vsub.f32 %v541, %v758
        %v859 = vsub.f32 %v542, %v759
        %v860 = vsub.f32 %v543, %v760
        %v861 = vsub.f32 %v544, %v761
        %v862 = vsub.f32 %v545, %v762
        %v863 = vsub.f32 %v546, %v763
        %v864 = vsub.f32 %v547, %v764
        %v865 = vsub.f32 %v548, %v765
        %v866 = vsub.f32 %v549, %v766
        %v867 = vsub.f32 %v550, %v767
        %v868 = vsub.f32 %v551, %v768
        %v869 = vsub.f32 %v552, %v769
        %v870 = vsub.f32 %v553, %v770
        %v871 = vsub.f32 %v554, %v771
        %v872 = vsub.f32 %v555, %v772
        %v873 = vsub.f32 %v556, %v773
        %v874 = vsub.f32 %v557, %v774
        %v875 = vsub.f32 %v558, %v775
        %v876 = vsub.f32 %v559, %v776
        %v877 = vsub.f32 %v560, %v777
        %v878 = vsub.f32 %v561, %v778
        %v879 = vsub.f32 %v562, %v779
        %v880 = vsub.f32 %v563, %v780
        %v881 = vsub.f32 %v564, %v781
        %v882 = vsub.f32 %v565, %v782
        %v883 = vsub.f32 %v566, %v783
        %v884 = vsub.f32 %v567, %v784
        %v885 = vsub.f32 %v568, %v785
        %v886 = vsub.f32 %v569, %v786
        %v887 = vsub.f32 %v570, %v787
        %v888 = vsub.f32 %v571, %v788
        %v889 = vsub.f32 %v572, %v789
        %v890 = vsub.f32 %v573, %v790
        %v891 = vsub.f32 %v574, %v791
        %v892 = vsub.f32 %v575, %v792
        %v893 = vsub.f32 %v576, %v793
        %v894 = vsub.f32 %v577, %v794
        %v895 = vsub.f32 %v578, %v795
        %v896 = vsub.f32 %v579, %v796
        %v897 = vsub.f32 %v580, %v797
        %v898 = vsub.f32 %v581, %v798
        %v899 = vsub.f32 %v582, %v799
        %v900 = vsub.f32 %v583, %v800
        %v901 = vsub.f32 %v584, %v801
        %v902 = vsub.f32 %v585, %v802
        %v903 = vsub.f32 %v586, %v803
        %v904 = vsub.f32 %v587, %v804
        %v905 = vsub.f32 %v588, %v805
        %v906 = vsub.f32 %v589, %v806
        %v907 = vsub.f32 %v590, %v807
        %v908 = vsub.f32 %v591, %v808
        %v909 = vsub.f32 %v592, %v809
        %v910 = vsub.f32 %v593, %v810
        %v911 = vsub.f32 %v594, %v811
        %v912 = vsub.f32 %v595, %v812
        %v913 = vpack.c.bf16 %v817, %v813
        %v914 = vpack.c.bf16 %v818, %v814
        %v915 = vpack.c.bf16 %v819, %v815
        %v916 = vpack.c.bf16 %v820, %v816
        %v917 = vpack.c.bf16 %v825, %v821
        %v918 = vpack.c.bf16 %v826, %v822
        %v919 = vpack.c.bf16 %v827, %v823
        %v920 = vpack.c.bf16 %v828, %v824
        %v921 = vpack.c.bf16 %v833, %v829
        %v922 = vpack.c.bf16 %v834, %v830
        %v923 = vpack.c.bf16 %v835, %v831
        %v924 = vpack.c.bf16 %v836, %v832
        %v925 = vpack.c.bf16 %v841, %v837
        %v926 = vpack.c.bf16 %v842, %v838
        %v927 = vpack.c.bf16 %v843, %v839
        %v928 = vpack.c.bf16 %v844, %v840
        %v929 = vpack.c.bf16 %v849, %v845
        %v930 = vpack.c.bf16 %v850, %v846
        %v931 = vpack.c.bf16 %v851, %v847
        %v932 = vpack.c.bf16 %v852, %v848
        %v933 = vpack.c.bf16 %v857, %v853
        %v934 = vpack.c.bf16 %v858, %v854
        %v935 = vpack.c.bf16 %v859, %v855
        %v936 = vpack.c.bf16 %v860, %v856
        %v937 = vpack.c.bf16 %v865, %v861
        %v938 = vpack.c.bf16 %v866, %v862
        %v939 = vpack.c.bf16 %v867, %v863
        %v940 = vpack.c.bf16 %v868, %v864
        %v941 = vpack.c.bf16 %v873, %v869
        %v942 = vpack.c.bf16 %v874, %v870
        %v943 = vpack.c.bf16 %v875, %v871
        %v944 = vpack.c.bf16 %v876, %v872
        %v945 = vpack.c.bf16 %v881, %v877
        %v946 = vpack.c.bf16 %v882, %v878
        %v947 = vpack.c.bf16 %v883, %v879
        %v948 = vpack.c.bf16 %v884, %v880
        %v949 = vpack.c.bf16 %v889, %v885
        %v950 = vpack.c.bf16 %v890, %v886
        %v951 = vpack.c.bf16 %v891, %v887
        %v952 = vpack.c.bf16 %v892, %v888
        %v953 = vpack.c.bf16 %v897, %v893
        %v954 = vpack.c.bf16 %v898, %v894
        %v955 = vpack.c.bf16 %v899, %v895
        %v956 = vpack.c.bf16 %v900, %v896
        %v957 = vpack.c.bf16 %v905, %v901
        %v958 = vpack.c.bf16 %v906, %v902
        %v959 = vpack.c.bf16 %v907, %v903
        %v960 = vpack.c.bf16 %v908, %v904
        %v961 = vpack.c.bf16 %v909, %v909
        %v962 = vpack.c.bf16 %v910, %v910
        %v963 = vpack.c.bf16 %v911, %v911
        %v964 = vpack.c.bf16 %v912, %v912
        %v965 = vld [vmem:[%s2] sm:$0xff]
        %v966 = vld [vmem:[%s2 + $0x8] sm:$0xff]
        %v967 = vld [vmem:[%s2 + $0x10] sm:$0xff]
        %v968 = vld [vmem:[%s2 + $0x18] sm:$0xff]
        %v969 = vld [vmem:[%s2 + $0x20] sm:$0xff]
        %v970 = vld [vmem:[%s2 + $0x28] sm:$0xff]
        %v971 = vld [vmem:[%s2 + $0x30] sm:$0xff]
        %v972 = vld [vmem:[%s2 + $0x38] sm:$0xff]
        %v973 = vld [vmem:[%s2 + $0x40] sm:$0xff]
        %v974 = vld [vmem:[%s2 + $0x48] sm:$0xff]
        %v975 = vld [vmem:[%s2 + $0x50] sm:$0xff]
        %v976 = vld [vmem:[%s2 + $0x58] sm:$0xff]
        %v977 = vld [vmem:[%s2 + $0x60] sm:$0xff]
        %v978 = vld [vmem:[%s2 + $0x68] sm:$0xff]
        %v979 = vld [vmem:[%s2 + $0x70] sm:$0xff]
        %v980 = vld [vmem:[%s2 + $0x78] sm:$0xff]
        %v981 = vld [vmem:[%s2 + $0x80] sm:$0xff]
        %v982 = vld [vmem:[%s2 + $0x88] sm:$0xff]
        %v983 = vld [vmem:[%s2 + $0x90] sm:$0xff]
        %v984 = vld [vmem:[%s2 + $0x98] sm:$0xff]
        %v985 = vld [vmem:[%s2 + $0xa0] sm:$0xff]
        %v986 = vld [vmem:[%s2 + $0xa8] sm:$0xff]
        %v987 = vld [vmem:[%s2 + $0xb0] sm:$0xff]
        %v988 = vld [vmem:[%s2 + $0xb8] sm:$0xff]
        %v989 = vld [vmem:[%s2 + $0xc0] sm:$0xff]
        %v990 = vld [vmem:[%s2 + $0xc8] sm:$0xff]
        %v991 = vld [vmem:[%s2 + $0xd0] sm:$0xff]
        %v992 = vld [vmem:[%s2 + $0xd8] sm:$0xff]
        %v993 = vld [vmem:[%s2 + $0xe0] sm:$0xff]
        %v994 = vld [vmem:[%s2 + $0xe8] sm:$0xff]
        %v995 = vld [vmem:[%s2 + $0xf0] sm:$0xff]
        %v996 = vld [vmem:[%s2 + $0xf8] sm:$0xff]
        %v1029 = vunpack.c.l.b16 %v965
        %v1030 = vunpack.c.h.b16 %v965
        %v1031 = vunpack.c.l.b16 %v966
        %v1032 = vunpack.c.h.b16 %v966
        %v1033 = vunpack.c.l.b16 %v967
        %v1034 = vunpack.c.h.b16 %v967
        %v1035 = vunpack.c.l.b16 %v968
        %v1036 = vunpack.c.h.b16 %v968
        %v1037 = vunpack.c.l.b16 %v969
        %v1038 = vunpack.c.h.b16 %v969
        %v1039 = vunpack.c.l.b16 %v970
        %v1040 = vunpack.c.h.b16 %v970
        %v1041 = vunpack.c.l.b16 %v971
        %v1042 = vunpack.c.h.b16 %v971
        %v1043 = vunpack.c.l.b16 %v972
        %v1044 = vunpack.c.h.b16 %v972
        %v1045 = vunpack.c.l.b16 %v973
        %v1046 = vunpack.c.h.b16 %v973
        %v1047 = vunpack.c.l.b16 %v974
        %v1048 = vunpack.c.h.b16 %v974
        %v1049 = vunpack.c.l.b16 %v975
        %v1050 = vunpack.c.h.b16 %v975
        %v1051 = vunpack.c.l.b16 %v976
        %v1052 = vunpack.c.h.b16 %v976
        %v1053 = vunpack.c.l.b16 %v977
        %v1054 = vunpack.c.h.b16 %v977
        %v1055 = vunpack.c.l.b16 %v978
        %v1056 = vunpack.c.h.b16 %v978
        %v1057 = vunpack.c.l.b16 %v979
        %v1058 = vunpack.c.h.b16 %v979
        %v1059 = vunpack.c.l.b16 %v980
        %v1060 = vunpack.c.h.b16 %v980
        %v1061 = vunpack.c.l.b16 %v981
        %v1062 = vunpack.c.h.b16 %v981
        %v1063 = vunpack.c.l.b16 %v982
        %v1064 = vunpack.c.h.b16 %v982
        %v1065 = vunpack.c.l.b16 %v983
        %v1066 = vunpack.c.h.b16 %v983
        %v1067 = vunpack.c.l.b16 %v984
        %v1068 = vunpack.c.h.b16 %v984
        %v1069 = vunpack.c.l.b16 %v985
        %v1070 = vunpack.c.h.b16 %v985
        %v1071 = vunpack.c.l.b16 %v986
        %v1072 = vunpack.c.h.b16 %v986
        %v1073 = vunpack.c.l.b16 %v987
        %v1074 = vunpack.c.h.b16 %v987
        %v1075 = vunpack.c.l.b16 %v988
        %v1076 = vunpack.c.h.b16 %v988
        %v1077 = vunpack.c.l.b16 %v989
        %v1078 = vunpack.c.h.b16 %v989
        %v1079 = vunpack.c.l.b16 %v990
        %v1080 = vunpack.c.h.b16 %v990
        %v1081 = vunpack.c.l.b16 %v991
        %v1082 = vunpack.c.h.b16 %v991
        %v1083 = vunpack.c.l.b16 %v992
        %v1084 = vunpack.c.h.b16 %v992
        %v1085 = vunpack.c.l.b16 %v993
        %v1086 = vunpack.c.h.b16 %v993
        %v1087 = vunpack.c.l.b16 %v994
        %v1088 = vunpack.c.h.b16 %v994
        %v1089 = vunpack.c.l.b16 %v995
        %v1090 = vunpack.c.h.b16 %v995
        %v1091 = vunpack.c.l.b16 %v996
        %v1092 = vunpack.c.h.b16 %v996
        %v1093 = vpack.c.b16 %v1031, %v1029
        %v1094 = vpack.c.b16 %v1032, %v1030
        %v1095 = vpack.c.b16 %v1035, %v1033
        %v1096 = vpack.c.b16 %v1036, %v1034
        %v1097 = vpack.c.b16 %v1039, %v1037
        %v1098 = vpack.c.b16 %v1040, %v1038
        %v1099 = vpack.c.b16 %v1043, %v1041
        %v1100 = vpack.c.b16 %v1044, %v1042
        %v1101 = vpack.c.b16 %v1047, %v1045
        %v1102 = vpack.c.b16 %v1048, %v1046
        %v1103 = vpack.c.b16 %v1051, %v1049
        %v1104 = vpack.c.b16 %v1052, %v1050
        %v1105 = vpack.c.b16 %v1055, %v1053
        %v1106 = vpack.c.b16 %v1056, %v1054
        %v1107 = vpack.c.b16 %v1059, %v1057
        %v1108 = vpack.c.b16 %v1060, %v1058
        %v1109 = vpack.c.b16 %v1063, %v1061
        %v1110 = vpack.c.b16 %v1064, %v1062
        %v1111 = vpack.c.b16 %v1067, %v1065
        %v1112 = vpack.c.b16 %v1068, %v1066
        %v1113 = vpack.c.b16 %v1071, %v1069
        %v1114 = vpack.c.b16 %v1072, %v1070
        %v1115 = vpack.c.b16 %v1075, %v1073
        %v1116 = vpack.c.b16 %v1076, %v1074
        %v1117 = vpack.c.b16 %v1079, %v1077
        %v1118 = vpack.c.b16 %v1080, %v1078
        %v1119 = vpack.c.b16 %v1083, %v1081
        %v1120 = vpack.c.b16 %v1084, %v1082
        %v1121 = vpack.c.b16 %v1087, %v1085
        %v1122 = vpack.c.b16 %v1088, %v1086
        %v1123 = vpack.c.b16 %v1091, %v1089
        %v1124 = vpack.c.b16 %v1092, %v1090
        %vm1141 = vcmask 588800
        %v1143 = vsel %vm1141, %v1094, 0
        %v1146 = vsel %vm1141, %v1096, 0
        %v1149 = vsel %vm1141, %v1098, 0
        %v1152 = vsel %vm1141, %v1100, 0
        %v1155 = vsel %vm1141, %v1102, 0
        %v1158 = vsel %vm1141, %v1104, 0
        %v1161 = vsel %vm1141, %v1106, 0
        %v1164 = vsel %vm1141, %v1108, 0
        %v1167 = vsel %vm1141, %v1110, 0
        %v1170 = vsel %vm1141, %v1112, 0
        %v1173 = vsel %vm1141, %v1114, 0
        %v1176 = vsel %vm1141, %v1116, 0
        %v1179 = vsel %vm1141, %v1118, 0
        %v1182 = vsel %vm1141, %v1120, 0
        %v1185 = vsel %vm1141, %v1122, 0
        %v1188 = vsel %vm1141, %v1124, 0
        %vm1190 = vcmask 1043456
        %v1192 = vsel %vm1190, %v961, 0
        %v1195 = vsel %vm1190, %v962, 0
        %v1198 = vsel %vm1190, %v963, 0
        %v1201 = vsel %vm1190, %v964, 0
        %1203 = vmatprep.subr.bf16.mxu0 %v914
        %1204 = vmatpush1.bf16.msra.mxu0 %v913
        %1205 = vmatprep.subr.bf16.mxu0 %v918
        %1206 = vmatpush1.bf16.msra.mxu0 %v917
        %1207 = vmatprep.subr.bf16.mxu0 %v922
        %1208 = vmatpush1.bf16.msra.mxu0 %v921
        %1209 = vmatprep.subr.bf16.mxu0 %v926
        %1210 = vmatpush1.bf16.msra.mxu0 %v925
        %1211 = vmatprep.subr.bf16.mxu0 %v930
        %1212 = vmatpush1.bf16.msra.mxu0 %v929
        %1213 = vmatprep.subr.bf16.mxu0 %v934
        %1214 = vmatpush1.bf16.msra.mxu0 %v933
        %1215 = vmatprep.subr.bf16.mxu0 %v938
        %1216 = vmatpush1.bf16.msra.mxu0 %v937
        %1217 = vmatprep.subr.bf16.mxu0 %v942
        %1218 = vmatpush1.bf16.msra.mxu0 %v941
        %1219 = vmatprep.subr.bf16.mxu0 %v946
        %1220 = vmatpush1.bf16.msra.mxu0 %v945
        %1221 = vmatprep.subr.bf16.mxu0 %v950
        %1222 = vmatpush1.bf16.msra.mxu0 %v949
        %1223 = vmatprep.subr.bf16.mxu0 %v954
        %1224 = vmatpush1.bf16.msra.mxu0 %v953
        %1225 = vmatprep.subr.bf16.mxu0 %v958
        %1226 = vmatpush1.bf16.msra.mxu0 %v957
        %1227 = vmatprep.subr.bf16.mxu0 %v1195
        %1228 = vmatpush1.bf16.msra.mxu0 %v1192
        %1229 = vmatprep.subr.bf16.mxu0 0
        %1230 = vmatpush1.bf16.msra.mxu0 0
        %1231 = vmatprep.subr.bf16.mxu0 0
        %1232 = vmatpush1.bf16.msra.mxu0 0
        %1233 = vmatprep.subr.bf16.mxu0 0
        %1234 = vmatpush1.bf16.msra.mxu0 0
        %1235 = vmatprep.mubr.bf16.mxu0 %v1143
        %1236 = vmatmul.mubr.bf16.gmra.mrb[0].mxu0 %v1093
        %v1237 = vpop.f32.mrb[0].mxu0
        %v1238 = vadd.f32 0.0, %v1237
        %v1239 = vpop.f32.mrb[0].mxu0
        %v1240 = vadd.f32 0.0, %v1239
        %v1241 = vpop.f32.mrb[0].mxu0
        %v1242 = vadd.f32 0.0, %v1241
        %v1243 = vpop.f32.mrb[0].mxu0
        %v1244 = vadd.f32 0.0, %v1243
        %1245 = vmatprep.mubr.bf16.mxu0 %v1146
        %1246 = vmatmul.mubr.bf16.gmra.mrb[0].mxu0 %v1095
        %v1247 = vpop.f32.mrb[0].mxu0
        %v1248 = vadd.f32 0.0, %v1247
        %v1249 = vpop.f32.mrb[0].mxu0
        %v1250 = vadd.f32 0.0, %v1249
        %v1251 = vpop.f32.mrb[0].mxu0
        %v1252 = vadd.f32 0.0, %v1251
        %v1253 = vpop.f32.mrb[0].mxu0
        %v1254 = vadd.f32 0.0, %v1253
        %1255 = vmatprep.mubr.bf16.mxu0 %v1149
        %1256 = vmatmul.mubr.bf16.gmra.mrb[0].mxu0 %v1097
        %v1257 = vpop.f32.mrb[0].mxu0
        %v1258 = vadd.f32 0.0, %v1257
        %v1259 = vpop.f32.mrb[0].mxu0
        %v1260 = vadd.f32 0.0, %v1259
        %v1261 = vpop.f32.mrb[0].mxu0
        %v1262 = vadd.f32 0.0, %v1261
        %v1263 = vpop.f32.mrb[0].mxu0
        %v1264 = vadd.f32 0.0, %v1263
        %1265 = vmatprep.mubr.bf16.mxu0 %v1152
        %1266 = vmatmul.mubr.bf16.gmra.mrb[0].mxu0 %v1099
        %v1267 = vpop.f32.mrb[0].mxu0
        %v1268 = vadd.f32 0.0, %v1267
        %v1269 = vpop.f32.mrb[0].mxu0
        %v1270 = vadd.f32 0.0, %v1269
        %v1271 = vpop.f32.mrb[0].mxu0
        %v1272 = vadd.f32 0.0, %v1271
        %v1273 = vpop.f32.mrb[0].mxu0
        %v1274 = vadd.f32 0.0, %v1273
        %1275 = vmatprep.mubr.bf16.mxu0 %v1155
        %1276 = vmatmul.mubr.bf16.gmra.mrb[0].mxu0 %v1101
        %v1277 = vpop.f32.mrb[0].mxu0
        %v1278 = vadd.f32 0.0, %v1277
        %v1279 = vpop.f32.mrb[0].mxu0
        %v1280 = vadd.f32 0.0, %v1279
        %v1281 = vpop.f32.mrb[0].mxu0
        %v1282 = vadd.f32 0.0, %v1281
        %v1283 = vpop.f32.mrb[0].mxu0
        %v1284 = vadd.f32 0.0, %v1283
        %1285 = vmatprep.mubr.bf16.mxu0 %v1158
        %1286 = vmatmul.mubr.bf16.gmra.mrb[0].mxu0 %v1103
        %v1287 = vpop.f32.mrb[0].mxu0
        %v1288 = vadd.f32 0.0, %v1287
        %v1289 = vpop.f32.mrb[0].mxu0
        %v1290 = vadd.f32 0.0, %v1289
        %v1291 = vpop.f32.mrb[0].mxu0
        %v1292 = vadd.f32 0.0, %v1291
        %v1293 = vpop.f32.mrb[0].mxu0
        %v1294 = vadd.f32 0.0, %v1293
        %1295 = vmatprep.mubr.bf16.mxu0 %v1161
        %1296 = vmatmul.mubr.bf16.gmra.mrb[0].mxu0 %v1105
        %v1297 = vpop.f32.mrb[0].mxu0
        %v1298 = vadd.f32 0.0, %v1297
        %v1299 = vpop.f32.mrb[0].mxu0
        %v1300 = vadd.f32 0.0, %v1299
        %v1301 = vpop.f32.mrb[0].mxu0
        %v1302 = vadd.f32 0.0, %v1301
        %v1303 = vpop.f32.mrb[0].mxu0
        %v1304 = vadd.f32 0.0, %v1303
        %1305 = vmatprep.mubr.bf16.mxu0 %v1164
        %1306 = vmatmul.mubr.bf16.gmra.mrb[0].mxu0 %v1107
        %v1307 = vpop.f32.mrb[0].mxu0
        %v1308 = vadd.f32 0.0, %v1307
        %v1309 = vpop.f32.mrb[0].mxu0
        %v1310 = vadd.f32 0.0, %v1309
        %v1311 = vpop.f32.mrb[0].mxu0
        %v1312 = vadd.f32 0.0, %v1311
        %v1313 = vpop.f32.mrb[0].mxu0
        %v1314 = vadd.f32 0.0, %v1313
        %1315 = vmatprep.mubr.bf16.mxu0 %v1167
        %1316 = vmatmul.mubr.bf16.gmra.mrb[0].mxu0 %v1109
        %v1317 = vpop.f32.mrb[0].mxu0
        %v1318 = vadd.f32 0.0, %v1317
        %v1319 = vpop.f32.mrb[0].mxu0
        %v1320 = vadd.f32 0.0, %v1319
        %v1321 = vpop.f32.mrb[0].mxu0
        %v1322 = vadd.f32 0.0, %v1321
        %v1323 = vpop.f32.mrb[0].mxu0
        %v1324 = vadd.f32 0.0, %v1323
        %1325 = vmatprep.mubr.bf16.mxu0 %v1170
        %1326 = vmatmul.mubr.bf16.gmra.mrb[0].mxu0 %v1111
        %v1327 = vpop.f32.mrb[0].mxu0
        %v1328 = vadd.f32 0.0, %v1327
        %v1329 = vpop.f32.mrb[0].mxu0
        %v1330 = vadd.f32 0.0, %v1329
        %v1331 = vpop.f32.mrb[0].mxu0
        %v1332 = vadd.f32 0.0, %v1331
        %v1333 = vpop.f32.mrb[0].mxu0
        %v1334 = vadd.f32 0.0, %v1333
        %1335 = vmatprep.mubr.bf16.mxu0 %v1173
        %1336 = vmatmul.mubr.bf16.gmra.mrb[0].mxu0 %v1113
        %v1337 = vpop.f32.mrb[0].mxu0
        %v1338 = vadd.f32 0.0, %v1337
        %v1339 = vpop.f32.mrb[0].mxu0
        %v1340 = vadd.f32 0.0, %v1339
        %v1341 = vpop.f32.mrb[0].mxu0
        %v1342 = vadd.f32 0.0, %v1341
        %v1343 = vpop.f32.mrb[0].mxu0
        %v1344 = vadd.f32 0.0, %v1343
        %1345 = vmatprep.mubr.bf16.mxu0 %v1176
        %1346 = vmatmul.mubr.bf16.gmra.mrb[0].mxu0 %v1115
        %v1347 = vpop.f32.mrb[0].mxu0
        %v1348 = vadd.f32 0.0, %v1347
        %v1349 = vpop.f32.mrb[0].mxu0
        %v1350 = vadd.f32 0.0, %v1349
        %v1351 = vpop.f32.mrb[0].mxu0
        %v1352 = vadd.f32 0.0, %v1351
        %v1353 = vpop.f32.mrb[0].mxu0
        %v1354 = vadd.f32 0.0, %v1353
        %1355 = vmatprep.mubr.bf16.mxu0 %v1179
        %1356 = vmatmul.mubr.bf16.gmra.mrb[0].mxu0 %v1117
        %v1357 = vpop.f32.mrb[0].mxu0
        %v1358 = vadd.f32 0.0, %v1357
        %v1359 = vpop.f32.mrb[0].mxu0
        %v1360 = vadd.f32 0.0, %v1359
        %v1361 = vpop.f32.mrb[0].mxu0
        %v1362 = vadd.f32 0.0, %v1361
        %v1363 = vpop.f32.mrb[0].mxu0
        %v1364 = vadd.f32 0.0, %v1363
        %1365 = vmatprep.mubr.bf16.mxu0 %v1182
        %1366 = vmatmul.mubr.bf16.gmra.mrb[0].mxu0 %v1119
        %v1367 = vpop.f32.mrb[0].mxu0
        %v1368 = vadd.f32 0.0, %v1367
        %v1369 = vpop.f32.mrb[0].mxu0
        %v1370 = vadd.f32 0.0, %v1369
        %v1371 = vpop.f32.mrb[0].mxu0
        %v1372 = vadd.f32 0.0, %v1371
        %v1373 = vpop.f32.mrb[0].mxu0
        %v1374 = vadd.f32 0.0, %v1373
        %1375 = vmatprep.mubr.bf16.mxu0 %v1185
        %1376 = vmatmul.mubr.bf16.gmra.mrb[0].mxu0 %v1121
        %v1377 = vpop.f32.mrb[0].mxu0
        %v1378 = vadd.f32 0.0, %v1377
        %v1379 = vpop.f32.mrb[0].mxu0
        %v1380 = vadd.f32 0.0, %v1379
        %v1381 = vpop.f32.mrb[0].mxu0
        %v1382 = vadd.f32 0.0, %v1381
        %v1383 = vpop.f32.mrb[0].mxu0
        %v1384 = vadd.f32 0.0, %v1383
        %1385 = vmatprep.mubr.bf16.mxu0 %v1188
        %1386 = vmatmul.mubr.bf16.gmra.mrb[0].mxu0 %v1123
        %v1387 = vpop.f32.mrb[0].mxu0
        %v1388 = vadd.f32 0.0, %v1387
        %v1389 = vpop.f32.mrb[0].mxu0
        %v1390 = vadd.f32 0.0, %v1389
        %v1391 = vpop.f32.mrb[0].mxu0
        %v1392 = vadd.f32 0.0, %v1391
        %v1393 = vpop.f32.mrb[0].mxu0
        %v1394 = vadd.f32 0.0, %v1393
        %1395 = vdwg.mxu0
        %1396 = vmatprep.subr.bf16.mxu0 %v916
        %1397 = vmatpush1.bf16.msra.mxu0 %v915
        %1398 = vmatprep.subr.bf16.mxu0 %v920
        %1399 = vmatpush1.bf16.msra.mxu0 %v919
        %1400 = vmatprep.subr.bf16.mxu0 %v924
        %1401 = vmatpush1.bf16.msra.mxu0 %v923
        %1402 = vmatprep.subr.bf16.mxu0 %v928
        %1403 = vmatpush1.bf16.msra.mxu0 %v927
        %1404 = vmatprep.subr.bf16.mxu0 %v932
        %1405 = vmatpush1.bf16.msra.mxu0 %v931
        %1406 = vmatprep.subr.bf16.mxu0 %v936
        %1407 = vmatpush1.bf16.msra.mxu0 %v935
        %1408 = vmatprep.subr.bf16.mxu0 %v940
        %1409 = vmatpush1.bf16.msra.mxu0 %v939
        %1410 = vmatprep.subr.bf16.mxu0 %v944
        %1411 = vmatpush1.bf16.msra.mxu0 %v943
        %1412 = vmatprep.subr.bf16.mxu0 %v948
        %1413 = vmatpush1.bf16.msra.mxu0 %v947
        %1414 = vmatprep.subr.bf16.mxu0 %v952
        %1415 = vmatpush1.bf16.msra.mxu0 %v951
        %1416 = vmatprep.subr.bf16.mxu0 %v956
        %1417 = vmatpush1.bf16.msra.mxu0 %v955
        %1418 = vmatprep.subr.bf16.mxu0 %v960
        %1419 = vmatpush1.bf16.msra.mxu0 %v959
        %1420 = vmatprep.subr.bf16.mxu0 %v1201
        %1421 = vmatpush1.bf16.msra.mxu0 %v1198
        %1422 = vmatprep.subr.bf16.mxu0 0
        %1423 = vmatpush1.bf16.msra.mxu0 0
        %1424 = vmatprep.subr.bf16.mxu0 0
        %1425 = vmatpush1.bf16.msra.mxu0 0
        %1426 = vmatprep.subr.bf16.mxu0 0
        %1427 = vmatpush1.bf16.msra.mxu0 0
        %1428 = vmatprep.mubr.bf16.mxu0 %v1143
        %1429 = vmatmul.mubr.bf16.gmra.mrb[0].mxu0 %v1093
        %v1430 = vpop.f32.mrb[0].mxu0
        %v1431 = vadd.f32 0.0, %v1430
        %v1432 = vpop.f32.mrb[0].mxu0
        %v1433 = vadd.f32 0.0, %v1432
        %v1434 = vpop.f32.mrb[0].mxu0
        %v1435 = vadd.f32 0.0, %v1434
        %v1436 = vpop.f32.mrb[0].mxu0
        %v1437 = vadd.f32 0.0, %v1436
        %1438 = vmatprep.mubr.bf16.mxu0 %v1146
        %1439 = vmatmul.mubr.bf16.gmra.mrb[0].mxu0 %v1095
        %v1440 = vpop.f32.mrb[0].mxu0
        %v1441 = vadd.f32 0.0, %v1440
        %v1442 = vpop.f32.mrb[0].mxu0
        %v1443 = vadd.f32 0.0, %v1442
        %v1444 = vpop.f32.mrb[0].mxu0
        %v1445 = vadd.f32 0.0, %v1444
        %v1446 = vpop.f32.mrb[0].mxu0
        %v1447 = vadd.f32 0.0, %v1446
        %1448 = vmatprep.mubr.bf16.mxu0 %v1149
        %1449 = vmatmul.mubr.bf16.gmra.mrb[0].mxu0 %v1097
        %v1450 = vpop.f32.mrb[0].mxu0
        %v1451 = vadd.f32 0.0, %v1450
        %v1452 = vpop.f32.mrb[0].mxu0
        %v1453 = vadd.f32 0.0, %v1452
        %v1454 = vpop.f32.mrb[0].mxu0
        %v1455 = vadd.f32 0.0, %v1454
        %v1456 = vpop.f32.mrb[0].mxu0
        %v1457 = vadd.f32 0.0, %v1456
        %1458 = vmatprep.mubr.bf16.mxu0 %v1152
        %1459 = vmatmul.mubr.bf16.gmra.mrb[0].mxu0 %v1099
        %v1460 = vpop.f32.mrb[0].mxu0
        %v1461 = vadd.f32 0.0, %v1460
        %v1462 = vpop.f32.mrb[0].mxu0
        %v1463 = vadd.f32 0.0, %v1462
        %v1464 = vpop.f32.mrb[0].mxu0
        %v1465 = vadd.f32 0.0, %v1464
        %v1466 = vpop.f32.mrb[0].mxu0
        %v1467 = vadd.f32 0.0, %v1466
        %1468 = vmatprep.mubr.bf16.mxu0 %v1155
        %1469 = vmatmul.mubr.bf16.gmra.mrb[0].mxu0 %v1101
        %v1470 = vpop.f32.mrb[0].mxu0
        %v1471 = vadd.f32 0.0, %v1470
        %v1472 = vpop.f32.mrb[0].mxu0
        %v1473 = vadd.f32 0.0, %v1472
        %v1474 = vpop.f32.mrb[0].mxu0
        %v1475 = vadd.f32 0.0, %v1474
        %v1476 = vpop.f32.mrb[0].mxu0
        %v1477 = vadd.f32 0.0, %v1476
        %1478 = vmatprep.mubr.bf16.mxu0 %v1158
        %1479 = vmatmul.mubr.bf16.gmra.mrb[0].mxu0 %v1103
        %v1480 = vpop.f32.mrb[0].mxu0
        %v1481 = vadd.f32 0.0, %v1480
        %v1482 = vpop.f32.mrb[0].mxu0
        %v1483 = vadd.f32 0.0, %v1482
        %v1484 = vpop.f32.mrb[0].mxu0
        %v1485 = vadd.f32 0.0, %v1484
        %v1486 = vpop.f32.mrb[0].mxu0
        %v1487 = vadd.f32 0.0, %v1486
        %1488 = vmatprep.mubr.bf16.mxu0 %v1161
        %1489 = vmatmul.mubr.bf16.gmra.mrb[0].mxu0 %v1105
        %v1490 = vpop.f32.mrb[0].mxu0
        %v1491 = vadd.f32 0.0, %v1490
        %v1492 = vpop.f32.mrb[0].mxu0
        %v1493 = vadd.f32 0.0, %v1492
        %v1494 = vpop.f32.mrb[0].mxu0
        %v1495 = vadd.f32 0.0, %v1494
        %v1496 = vpop.f32.mrb[0].mxu0
        %v1497 = vadd.f32 0.0, %v1496
        %1498 = vmatprep.mubr.bf16.mxu0 %v1164
        %1499 = vmatmul.mubr.bf16.gmra.mrb[0].mxu0 %v1107
        %v1500 = vpop.f32.mrb[0].mxu0
        %v1501 = vadd.f32 0.0, %v1500
        %v1502 = vpop.f32.mrb[0].mxu0
        %v1503 = vadd.f32 0.0, %v1502
        %v1504 = vpop.f32.mrb[0].mxu0
        %v1505 = vadd.f32 0.0, %v1504
        %v1506 = vpop.f32.mrb[0].mxu0
        %v1507 = vadd.f32 0.0, %v1506
        %1508 = vmatprep.mubr.bf16.mxu0 %v1167
        %1509 = vmatmul.mubr.bf16.gmra.mrb[0].mxu0 %v1109
        %v1510 = vpop.f32.mrb[0].mxu0
        %v1511 = vadd.f32 0.0, %v1510
        %v1512 = vpop.f32.mrb[0].mxu0
        %v1513 = vadd.f32 0.0, %v1512
        %v1514 = vpop.f32.mrb[0].mxu0
        %v1515 = vadd.f32 0.0, %v1514
        %v1516 = vpop.f32.mrb[0].mxu0
        %v1517 = vadd.f32 0.0, %v1516
        %1518 = vmatprep.mubr.bf16.mxu0 %v1170
        %1519 = vmatmul.mubr.bf16.gmra.mrb[0].mxu0 %v1111
        %v1520 = vpop.f32.mrb[0].mxu0
        %v1521 = vadd.f32 0.0, %v1520
        %v1522 = vpop.f32.mrb[0].mxu0
        %v1523 = vadd.f32 0.0, %v1522
        %v1524 = vpop.f32.mrb[0].mxu0
        %v1525 = vadd.f32 0.0, %v1524
        %v1526 = vpop.f32.mrb[0].mxu0
        %v1527 = vadd.f32 0.0, %v1526
        %1528 = vmatprep.mubr.bf16.mxu0 %v1173
        %1529 = vmatmul.mubr.bf16.gmra.mrb[0].mxu0 %v1113
        %v1530 = vpop.f32.mrb[0].mxu0
        %v1531 = vadd.f32 0.0, %v1530
        %v1532 = vpop.f32.mrb[0].mxu0
        %v1533 = vadd.f32 0.0, %v1532
        %v1534 = vpop.f32.mrb[0].mxu0
        %v1535 = vadd.f32 0.0, %v1534
        %v1536 = vpop.f32.mrb[0].mxu0
        %v1537 = vadd.f32 0.0, %v1536
        %1538 = vmatprep.mubr.bf16.mxu0 %v1176
        %1539 = vmatmul.mubr.bf16.gmra.mrb[0].mxu0 %v1115
        %v1540 = vpop.f32.mrb[0].mxu0
        %v1541 = vadd.f32 0.0, %v1540
        %v1542 = vpop.f32.mrb[0].mxu0
        %v1543 = vadd.f32 0.0, %v1542
        %v1544 = vpop.f32.mrb[0].mxu0
        %v1545 = vadd.f32 0.0, %v1544
        %v1546 = vpop.f32.mrb[0].mxu0
        %v1547 = vadd.f32 0.0, %v1546
        %1548 = vmatprep.mubr.bf16.mxu0 %v1179
        %1549 = vmatmul.mubr.bf16.gmra.mrb[0].mxu0 %v1117
        %v1550 = vpop.f32.mrb[0].mxu0
        %v1551 = vadd.f32 0.0, %v1550
        %v1552 = vpop.f32.mrb[0].mxu0
        %v1553 = vadd.f32 0.0, %v1552
        %v1554 = vpop.f32.mrb[0].mxu0
        %v1555 = vadd.f32 0.0, %v1554
        %v1556 = vpop.f32.mrb[0].mxu0
        %v1557 = vadd.f32 0.0, %v1556
        %1558 = vmatprep.mubr.bf16.mxu0 %v1182
        %1559 = vmatmul.mubr.bf16.gmra.mrb[0].mxu0 %v1119
        %v1560 = vpop.f32.mrb[0].mxu0
        %v1561 = vadd.f32 0.0, %v1560
        %v1562 = vpop.f32.mrb[0].mxu0
        %v1563 = vadd.f32 0.0, %v1562
        %v1564 = vpop.f32.mrb[0].mxu0
        %v1565 = vadd.f32 0.0, %v1564
        %v1566 = vpop.f32.mrb[0].mxu0
        %v1567 = vadd.f32 0.0, %v1566
        %1568 = vmatprep.mubr.bf16.mxu0 %v1185
        %1569 = vmatmul.mubr.bf16.gmra.mrb[0].mxu0 %v1121
        %v1570 = vpop.f32.mrb[0].mxu0
        %v1571 = vadd.f32 0.0, %v1570
        %v1572 = vpop.f32.mrb[0].mxu0
        %v1573 = vadd.f32 0.0, %v1572
        %v1574 = vpop.f32.mrb[0].mxu0
        %v1575 = vadd.f32 0.0, %v1574
        %v1576 = vpop.f32.mrb[0].mxu0
        %v1577 = vadd.f32 0.0, %v1576
        %1578 = vmatprep.mubr.bf16.mxu0 %v1188
        %1579 = vmatmul.mubr.bf16.gmra.mrb[0].mxu0 %v1123
        %v1580 = vpop.f32.mrb[0].mxu0
        %v1581 = vadd.f32 0.0, %v1580
        %v1582 = vpop.f32.mrb[0].mxu0
        %v1583 = vadd.f32 0.0, %v1582
        %v1584 = vpop.f32.mrb[0].mxu0
        %v1585 = vadd.f32 0.0, %v1584
        %v1586 = vpop.f32.mrb[0].mxu0
        %v1587 = vadd.f32 0.0, %v1586
        %1588 = vdwg.mxu0
        %v1589 = vmul.f32 %v1238, %v1238
        %v1590 = vmul.f32 %v1240, %v1240
        %v1591 = vmul.f32 %v1431, %v1431
        %v1592 = vmul.f32 %v1433, %v1433
        %v1593 = vmul.f32 %v1242, %v1242
        %v1594 = vmul.f32 %v1244, %v1244
        %v1595 = vmul.f32 %v1435, %v1435
        %v1596 = vmul.f32 %v1437, %v1437
        %v1597 = vmul.f32 %v1248, %v1248
        %v1598 = vmul.f32 %v1250, %v1250
        %v1599 = vmul.f32 %v1441, %v1441
        %v1600 = vmul.f32 %v1443, %v1443
        %v1601 = vmul.f32 %v1252, %v1252
        %v1602 = vmul.f32 %v1254, %v1254
        %v1603 = vmul.f32 %v1445, %v1445
        %v1604 = vmul.f32 %v1447, %v1447
        %v1605 = vmul.f32 %v1258, %v1258
        %v1606 = vmul.f32 %v1260, %v1260
        %v1607 = vmul.f32 %v1451, %v1451
        %v1608 = vmul.f32 %v1453, %v1453
        %v1609 = vmul.f32 %v1262, %v1262
        %v1610 = vmul.f32 %v1264, %v1264
        %v1611 = vmul.f32 %v1455, %v1455
        %v1612 = vmul.f32 %v1457, %v1457
        %v1613 = vmul.f32 %v1268, %v1268
        %v1614 = vmul.f32 %v1270, %v1270
        %v1615 = vmul.f32 %v1461, %v1461
        %v1616 = vmul.f32 %v1463, %v1463
        %v1617 = vmul.f32 %v1272, %v1272
        %v1618 = vmul.f32 %v1274, %v1274
        %v1619 = vmul.f32 %v1465, %v1465
        %v1620 = vmul.f32 %v1467, %v1467
        %v1621 = vmul.f32 %v1278, %v1278
        %v1622 = vmul.f32 %v1280, %v1280
        %v1623 = vmul.f32 %v1471, %v1471
        %v1624 = vmul.f32 %v1473, %v1473
        %v1625 = vmul.f32 %v1282, %v1282
        %v1626 = vmul.f32 %v1284, %v1284
        %v1627 = vmul.f32 %v1475, %v1475
        %v1628 = vmul.f32 %v1477, %v1477
        %v1629 = vmul.f32 %v1288, %v1288
        %v1630 = vmul.f32 %v1290, %v1290
        %v1631 = vmul.f32 %v1481, %v1481
        %v1632 = vmul.f32 %v1483, %v1483
        %v1633 = vmul.f32 %v1292, %v1292
        %v1634 = vmul.f32 %v1294, %v1294
        %v1635 = vmul.f32 %v1485, %v1485
        %v1636 = vmul.f32 %v1487, %v1487
        %v1637 = vmul.f32 %v1298, %v1298
        %v1638 = vmul.f32 %v1300, %v1300
        %v1639 = vmul.f32 %v1491, %v1491
        %v1640 = vmul.f32 %v1493, %v1493
        %v1641 = vmul.f32 %v1302, %v1302
        %v1642 = vmul.f32 %v1304, %v1304
        %v1643 = vmul.f32 %v1495, %v1495
        %v1644 = vmul.f32 %v1497, %v1497
        %v1645 = vmul.f32 %v1308, %v1308
        %v1646 = vmul.f32 %v1310, %v1310
        %v1647 = vmul.f32 %v1501, %v1501
        %v1648 = vmul.f32 %v1503, %v1503
        %v1649 = vmul.f32 %v1312, %v1312
        %v1650 = vmul.f32 %v1314, %v1314
        %v1651 = vmul.f32 %v1505, %v1505
        %v1652 = vmul.f32 %v1507, %v1507
        %v1653 = vmul.f32 %v1318, %v1318
        %v1654 = vmul.f32 %v1320, %v1320
        %v1655 = vmul.f32 %v1511, %v1511
        %v1656 = vmul.f32 %v1513, %v1513
        %v1657 = vmul.f32 %v1322, %v1322
        %v1658 = vmul.f32 %v1324, %v1324
        %v1659 = vmul.f32 %v1515, %v1515
        %v1660 = vmul.f32 %v1517, %v1517
        %v1661 = vmul.f32 %v1328, %v1328
        %v1662 = vmul.f32 %v1330, %v1330
        %v1663 = vmul.f32 %v1521, %v1521
        %v1664 = vmul.f32 %v1523, %v1523
        %v1665 = vmul.f32 %v1332, %v1332
        %v1666 = vmul.f32 %v1334, %v1334
        %v1667 = vmul.f32 %v1525, %v1525
        %v1668 = vmul.f32 %v1527, %v1527
        %v1669 = vmul.f32 %v1338, %v1338
        %v1670 = vmul.f32 %v1340, %v1340
        %v1671 = vmul.f32 %v1531, %v1531
        %v1672 = vmul.f32 %v1533, %v1533
        %v1673 = vmul.f32 %v1342, %v1342
        %v1674 = vmul.f32 %v1344, %v1344
        %v1675 = vmul.f32 %v1535, %v1535
        %v1676 = vmul.f32 %v1537, %v1537
        %v1677 = vmul.f32 %v1348, %v1348
        %v1678 = vmul.f32 %v1350, %v1350
        %v1679 = vmul.f32 %v1541, %v1541
        %v1680 = vmul.f32 %v1543, %v1543
        %v1681 = vmul.f32 %v1352, %v1352
        %v1682 = vmul.f32 %v1354, %v1354
        %v1683 = vmul.f32 %v1545, %v1545
        %v1684 = vmul.f32 %v1547, %v1547
        %v1685 = vmul.f32 %v1358, %v1358
        %v1686 = vmul.f32 %v1360, %v1360
        %v1687 = vmul.f32 %v1551, %v1551
        %v1688 = vmul.f32 %v1553, %v1553
        %v1689 = vmul.f32 %v1362, %v1362
        %v1690 = vmul.f32 %v1364, %v1364
        %v1691 = vmul.f32 %v1555, %v1555
        %v1692 = vmul.f32 %v1557, %v1557
        %v1693 = vmul.f32 %v1368, %v1368
        %v1694 = vmul.f32 %v1370, %v1370
        %v1695 = vmul.f32 %v1561, %v1561
        %v1696 = vmul.f32 %v1563, %v1563
        %v1697 = vmul.f32 %v1372, %v1372
        %v1698 = vmul.f32 %v1374, %v1374
        %v1699 = vmul.f32 %v1565, %v1565
        %v1700 = vmul.f32 %v1567, %v1567
        %v1701 = vmul.f32 %v1378, %v1378
        %v1702 = vmul.f32 %v1380, %v1380
        %v1703 = vmul.f32 %v1571, %v1571
        %v1704 = vmul.f32 %v1573, %v1573
        %v1705 = vmul.f32 %v1382, %v1382
        %v1706 = vmul.f32 %v1384, %v1384
        %v1707 = vmul.f32 %v1575, %v1575
        %v1708 = vmul.f32 %v1577, %v1577
        %v1709 = vmul.f32 %v1388, %v1388
        %v1710 = vmul.f32 %v1390, %v1390
        %v1711 = vmul.f32 %v1581, %v1581
        %v1712 = vmul.f32 %v1583, %v1583
        %v1713 = vmul.f32 %v1392, %v1392
        %v1714 = vmul.f32 %v1394, %v1394
        %v1715 = vmul.f32 %v1585, %v1585
        %v1716 = vmul.f32 %v1587, %v1587
        %v1717 = vpack.c.bf16 %v1593, %v1589
        %v1718 = vpack.c.bf16 %v1594, %v1590
        %v1719 = vpack.c.bf16 %v1595, %v1591
        %v1720 = vpack.c.bf16 %v1596, %v1592
        %v1721 = vpack.c.bf16 %v1601, %v1597
        %v1722 = vpack.c.bf16 %v1602, %v1598
        %v1723 = vpack.c.bf16 %v1603, %v1599
        %v1724 = vpack.c.bf16 %v1604, %v1600
        %v1725 = vpack.c.bf16 %v1609, %v1605
        %v1726 = vpack.c.bf16 %v1610, %v1606
        %v1727 = vpack.c.bf16 %v1611, %v1607
        %v1728 = vpack.c.bf16 %v1612, %v1608
        %v1729 = vpack.c.bf16 %v1617, %v1613
        %v1730 = vpack.c.bf16 %v1618, %v1614
        %v1731 = vpack.c.bf16 %v1619, %v1615
        %v1732 = vpack.c.bf16 %v1620, %v1616
        %v1733 = vpack.c.bf16 %v1625, %v1621
        %v1734 = vpack.c.bf16 %v1626, %v1622
        %v1735 = vpack.c.bf16 %v1627, %v1623
        %v1736 = vpack.c.bf16 %v1628, %v1624
        %v1737 = vpack.c.bf16 %v1633, %v1629
        %v1738 = vpack.c.bf16 %v1634, %v1630
        %v1739 = vpack.c.bf16 %v1635, %v1631
        %v1740 = vpack.c.bf16 %v1636, %v1632
        %v1741 = vpack.c.bf16 %v1641, %v1637
        %v1742 = vpack.c.bf16 %v1642, %v1638
        %v1743 = vpack.c.bf16 %v1643, %v1639
        %v1744 = vpack.c.bf16 %v1644, %v1640
        %v1745 = vpack.c.bf16 %v1649, %v1645
        %v1746 = vpack.c.bf16 %v1650, %v1646
        %v1747 = vpack.c.bf16 %v1651, %v1647
        %v1748 = vpack.c.bf16 %v1652, %v1648
        %v1749 = vpack.c.bf16 %v1657, %v1653
        %v1750 = vpack.c.bf16 %v1658, %v1654
        %v1751 = vpack.c.bf16 %v1659, %v1655
        %v1752 = vpack.c.bf16 %v1660, %v1656
        %v1753 = vpack.c.bf16 %v1665, %v1661
        %v1754 = vpack.c.bf16 %v1666, %v1662
        %v1755 = vpack.c.bf16 %v1667, %v1663
        %v1756 = vpack.c.bf16 %v1668, %v1664
        %v1757 = vpack.c.bf16 %v1673, %v1669
        %v1758 = vpack.c.bf16 %v1674, %v1670
        %v1759 = vpack.c.bf16 %v1675, %v1671
        %v1760 = vpack.c.bf16 %v1676, %v1672
        %v1761 = vpack.c.bf16 %v1681, %v1677
        %v1762 = vpack.c.bf16 %v1682, %v1678
        %v1763 = vpack.c.bf16 %v1683, %v1679
        %v1764 = vpack.c.bf16 %v1684, %v1680
        %v1765 = vpack.c.bf16 %v1689, %v1685
        %v1766 = vpack.c.bf16 %v1690, %v1686
        %v1767 = vpack.c.bf16 %v1691, %v1687
        %v1768 = vpack.c.bf16 %v1692, %v1688
        %v1769 = vpack.c.bf16 %v1697, %v1693
        %v1770 = vpack.c.bf16 %v1698, %v1694
        %v1771 = vpack.c.bf16 %v1699, %v1695
        %v1772 = vpack.c.bf16 %v1700, %v1696
        %v1773 = vpack.c.bf16 %v1705, %v1701
        %v1774 = vpack.c.bf16 %v1706, %v1702
        %v1775 = vpack.c.bf16 %v1707, %v1703
        %v1776 = vpack.c.bf16 %v1708, %v1704
        %v1777 = vpack.c.bf16 %v1713, %v1709
        %v1778 = vpack.c.bf16 %v1714, %v1710
        %v1779 = vpack.c.bf16 %v1715, %v1711
        %v1780 = vpack.c.bf16 %v1716, %v1712
        %v1781 = vld [vmem:[%s3] sm:$0xff]
        %v1782 = vld [vmem:[%s3 + $0x8] sm:$0xff]
        %v1783 = vld [vmem:[%s3 + $0x10] sm:$0xff]
        %v1784 = vld [vmem:[%s3 + $0x18] sm:$0xff]
        %v1785 = vld [vmem:[%s3 + $0x20] sm:$0xff]
        %v1786 = vld [vmem:[%s3 + $0x28] sm:$0xff]
        %v1787 = vld [vmem:[%s3 + $0x30] sm:$0xff]
        %v1788 = vld [vmem:[%s3 + $0x38] sm:$0xff]
        %v1789 = vld [vmem:[%s3 + $0x40] sm:$0xff]
        %v1790 = vld [vmem:[%s3 + $0x48] sm:$0xff]
        %v1791 = vld [vmem:[%s3 + $0x50] sm:$0xff]
        %v1792 = vld [vmem:[%s3 + $0x58] sm:$0xff]
        %v1793 = vld [vmem:[%s3 + $0x60] sm:$0xff]
        %v1794 = vld [vmem:[%s3 + $0x68] sm:$0xff]
        %v1795 = vld [vmem:[%s3 + $0x70] sm:$0xff]
        %v1796 = vld [vmem:[%s3 + $0x78] sm:$0xff]
        %v1797 = vld [vmem:[%s3 + $0x80] sm:$0xff]
        %v1798 = vld [vmem:[%s3 + $0x88] sm:$0xff]
        %v1799 = vld [vmem:[%s3 + $0x90] sm:$0xff]
        %v1800 = vld [vmem:[%s3 + $0x98] sm:$0xff]
        %v1801 = vld [vmem:[%s3 + $0xa0] sm:$0xff]
        %v1802 = vld [vmem:[%s3 + $0xa8] sm:$0xff]
        %v1803 = vld [vmem:[%s3 + $0xb0] sm:$0xff]
        %v1804 = vld [vmem:[%s3 + $0xb8] sm:$0xff]
        %v1805 = vld [vmem:[%s3 + $0xc0] sm:$0xff]
        %v1806 = vld [vmem:[%s3 + $0xc8] sm:$0xff]
        %v1807 = vld [vmem:[%s3 + $0xd0] sm:$0xff]
        %v1808 = vld [vmem:[%s3 + $0xd8] sm:$0xff]
        %v1809 = vld [vmem:[%s3 + $0xe0] sm:$0xff]
        %v1810 = vld [vmem:[%s3 + $0xe8] sm:$0xff]
        %v1811 = vld [vmem:[%s3 + $0xf0] sm:$0xff]
        %v1812 = vld [vmem:[%s3 + $0xf8] sm:$0xff]
        %v1813 = vld [vmem:[%s4] sm:$0xff]
        %v1814 = vld [vmem:[%s4 + $0x8] sm:$0xff]
        %v1815 = vld [vmem:[%s4 + $0x10] sm:$0xff]
        %v1816 = vld [vmem:[%s4 + $0x18] sm:$0xff]
        %v1817 = vld [vmem:[%s4 + $0x20] sm:$0xff]
        %v1818 = vld [vmem:[%s4 + $0x28] sm:$0xff]
        %v1819 = vld [vmem:[%s4 + $0x30] sm:$0xff]
        %v1820 = vld [vmem:[%s4 + $0x38] sm:$0xff]
        %v1821 = vld [vmem:[%s4 + $0x40] sm:$0xff]
        %v1822 = vld [vmem:[%s4 + $0x48] sm:$0xff]
        %v1823 = vld [vmem:[%s4 + $0x50] sm:$0xff]
        %v1824 = vld [vmem:[%s4 + $0x58] sm:$0xff]
        %v1825 = vld [vmem:[%s4 + $0x60] sm:$0xff]
        %v1826 = vld [vmem:[%s4 + $0x68] sm:$0xff]
        %v1827 = vld [vmem:[%s4 + $0x70] sm:$0xff]
        %v1828 = vld [vmem:[%s4 + $0x78] sm:$0xff]
        %v1829 = vld [vmem:[%s4 + $0x80] sm:$0xff]
        %v1830 = vld [vmem:[%s4 + $0x88] sm:$0xff]
        %v1831 = vld [vmem:[%s4 + $0x90] sm:$0xff]
        %v1832 = vld [vmem:[%s4 + $0x98] sm:$0xff]
        %v1833 = vld [vmem:[%s4 + $0xa0] sm:$0xff]
        %v1834 = vld [vmem:[%s4 + $0xa8] sm:$0xff]
        %v1835 = vld [vmem:[%s4 + $0xb0] sm:$0xff]
        %v1836 = vld [vmem:[%s4 + $0xb8] sm:$0xff]
        %v1837 = vld [vmem:[%s4 + $0xc0] sm:$0xff]
        %v1838 = vld [vmem:[%s4 + $0xc8] sm:$0xff]
        %v1839 = vld [vmem:[%s4 + $0xd0] sm:$0xff]
        %v1840 = vld [vmem:[%s4 + $0xd8] sm:$0xff]
        %v1841 = vld [vmem:[%s4 + $0xe0] sm:$0xff]
        %v1842 = vld [vmem:[%s4 + $0xe8] sm:$0xff]
        %v1843 = vld [vmem:[%s4 + $0xf0] sm:$0xff]
        %v1844 = vld [vmem:[%s4 + $0xf8] sm:$0xff]
        %1846 = vset.pattern.permute.xlu0 0
        %1847 = vperm.xlu0 %1846, %v1813
        %v1848 = vpop.permute.xlu0 %1847
        %1851 = vset.pattern.permute.xlu0 0
        %1852 = vperm.xlu0 %1851, %v1814
        %v1853 = vpop.permute.xlu0 %1852
        %1856 = vset.pattern.permute.xlu0 0
        %1857 = vperm.xlu0 %1856, %v1815
        %v1858 = vpop.permute.xlu0 %1857
        %1861 = vset.pattern.permute.xlu0 0
        %1862 = vperm.xlu0 %1861, %v1816
        %v1863 = vpop.permute.xlu0 %1862
        %1866 = vset.pattern.permute.xlu0 0
        %1867 = vperm.xlu0 %1866, %v1817
        %v1868 = vpop.permute.xlu0 %1867
        %1871 = vset.pattern.permute.xlu0 0
        %1872 = vperm.xlu0 %1871, %v1818
        %v1873 = vpop.permute.xlu0 %1872
        %1876 = vset.pattern.permute.xlu0 0
        %1877 = vperm.xlu0 %1876, %v1819
        %v1878 = vpop.permute.xlu0 %1877
        %1881 = vset.pattern.permute.xlu0 0
        %1882 = vperm.xlu0 %1881, %v1820
        %v1883 = vpop.permute.xlu0 %1882
        %1886 = vset.pattern.permute.xlu0 0
        %1887 = vperm.xlu0 %1886, %v1821
        %v1888 = vpop.permute.xlu0 %1887
        %1891 = vset.pattern.permute.xlu0 0
        %1892 = vperm.xlu0 %1891, %v1822
        %v1893 = vpop.permute.xlu0 %1892
        %1896 = vset.pattern.permute.xlu0 0
        %1897 = vperm.xlu0 %1896, %v1823
        %v1898 = vpop.permute.xlu0 %1897
        %1901 = vset.pattern.permute.xlu0 0
        %1902 = vperm.xlu0 %1901, %v1824
        %v1903 = vpop.permute.xlu0 %1902
        %1906 = vset.pattern.permute.xlu0 0
        %1907 = vperm.xlu0 %1906, %v1825
        %v1908 = vpop.permute.xlu0 %1907
        %1911 = vset.pattern.permute.xlu0 0
        %1912 = vperm.xlu0 %1911, %v1826
        %v1913 = vpop.permute.xlu0 %1912
        %1916 = vset.pattern.permute.xlu0 0
        %1917 = vperm.xlu0 %1916, %v1827
        %v1918 = vpop.permute.xlu0 %1917
        %1921 = vset.pattern.permute.xlu0 0
        %1922 = vperm.xlu0 %1921, %v1828
        %v1923 = vpop.permute.xlu0 %1922
        %1926 = vset.pattern.permute.xlu0 0
        %1927 = vperm.xlu0 %1926, %v1829
        %v1928 = vpop.permute.xlu0 %1927
        %1931 = vset.pattern.permute.xlu0 0
        %1932 = vperm.xlu0 %1931, %v1830
        %v1933 = vpop.permute.xlu0 %1932
        %1936 = vset.pattern.permute.xlu0 0
        %1937 = vperm.xlu0 %1936, %v1831
        %v1938 = vpop.permute.xlu0 %1937
        %1941 = vset.pattern.permute.xlu0 0
        %1942 = vperm.xlu0 %1941, %v1832
        %v1943 = vpop.permute.xlu0 %1942
        %1946 = vset.pattern.permute.xlu0 0
        %1947 = vperm.xlu0 %1946, %v1833
        %v1948 = vpop.permute.xlu0 %1947
        %1951 = vset.pattern.permute.xlu0 0
        %1952 = vperm.xlu0 %1951, %v1834
        %v1953 = vpop.permute.xlu0 %1952
        %1956 = vset.pattern.permute.xlu0 0
        %1957 = vperm.xlu0 %1956, %v1835
        %v1958 = vpop.permute.xlu0 %1957
        %1961 = vset.pattern.permute.xlu0 0
        %1962 = vperm.xlu0 %1961, %v1836
        %v1963 = vpop.permute.xlu0 %1962
        %1966 = vset.pattern.permute.xlu0 0
        %1967 = vperm.xlu0 %1966, %v1837
        %v1968 = vpop.permute.xlu0 %1967
        %1971 = vset.pattern.permute.xlu0 0
        %1972 = vperm.xlu0 %1971, %v1838
        %v1973 = vpop.permute.xlu0 %1972
        %1976 = vset.pattern.permute.xlu0 0
        %1977 = vperm.xlu0 %1976, %v1839
        %v1978 = vpop.permute.xlu0 %1977
        %1981 = vset.pattern.permute.xlu0 0
        %1982 = vperm.xlu0 %1981, %v1840
        %v1983 = vpop.permute.xlu0 %1982
        %1986 = vset.pattern.permute.xlu0 0
        %1987 = vperm.xlu0 %1986, %v1841
        %v1988 = vpop.permute.xlu0 %1987
        %1991 = vset.pattern.permute.xlu0 0
        %1992 = vperm.xlu0 %1991, %v1842
        %v1993 = vpop.permute.xlu0 %1992
        %1996 = vset.pattern.permute.xlu0 0
        %1997 = vperm.xlu0 %1996, %v1843
        %v1998 = vpop.permute.xlu0 %1997
        %2001 = vset.pattern.permute.xlu0 0
        %2002 = vperm.xlu0 %2001, %v1844
        %v2003 = vpop.permute.xlu0 %2002
        %v2037 = vunpack.c.l.b16 %v1781
        %v2038 = vunpack.c.h.b16 %v1781
        %v2039 = vunpack.c.l.b16 %v1782
        %v2040 = vunpack.c.h.b16 %v1782
        %v2041 = vunpack.c.l.b16 %v1783
        %v2042 = vunpack.c.h.b16 %v1783
        %v2043 = vunpack.c.l.b16 %v1784
        %v2044 = vunpack.c.h.b16 %v1784
        %v2045 = vunpack.c.l.b16 %v1785
        %v2046 = vunpack.c.h.b16 %v1785
        %v2047 = vunpack.c.l.b16 %v1786
        %v2048 = vunpack.c.h.b16 %v1786
        %v2049 = vunpack.c.l.b16 %v1787
        %v2050 = vunpack.c.h.b16 %v1787
        %v2051 = vunpack.c.l.b16 %v1788
        %v2052 = vunpack.c.h.b16 %v1788
        %v2053 = vunpack.c.l.b16 %v1789
        %v2054 = vunpack.c.h.b16 %v1789
        %v2055 = vunpack.c.l.b16 %v1790
        %v2056 = vunpack.c.h.b16 %v1790
        %v2057 = vunpack.c.l.b16 %v1791
        %v2058 = vunpack.c.h.b16 %v1791
        %v2059 = vunpack.c.l.b16 %v1792
        %v2060 = vunpack.c.h.b16 %v1792
        %v2061 = vunpack.c.l.b16 %v1793
        %v2062 = vunpack.c.h.b16 %v1793
        %v2063 = vunpack.c.l.b16 %v1794
        %v2064 = vunpack.c.h.b16 %v1794
        %v2065 = vunpack.c.l.b16 %v1795
        %v2066 = vunpack.c.h.b16 %v1795
        %v2067 = vunpack.c.l.b16 %v1796
        %v2068 = vunpack.c.h.b16 %v1796
        %v2069 = vunpack.c.l.b16 %v1797
        %v2070 = vunpack.c.h.b16 %v1797
        %v2071 = vunpack.c.l.b16 %v1798
        %v2072 = vunpack.c.h.b16 %v1798
        %v2073 = vunpack.c.l.b16 %v1799
        %v2074 = vunpack.c.h.b16 %v1799
        %v2075 = vunpack.c.l.b16 %v1800
        %v2076 = vunpack.c.h.b16 %v1800
        %v2077 = vunpack.c.l.b16 %v1801
        %v2078 = vunpack.c.h.b16 %v1801
        %v2079 = vunpack.c.l.b16 %v1802
        %v2080 = vunpack.c.h.b16 %v1802
        %v2081 = vunpack.c.l.b16 %v1803
        %v2082 = vunpack.c.h.b16 %v1803
        %v2083 = vunpack.c.l.b16 %v1804
        %v2084 = vunpack.c.h.b16 %v1804
        %v2085 = vunpack.c.l.b16 %v1805
        %v2086 = vunpack.c.h.b16 %v1805
        %v2087 = vunpack.c.l.b16 %v1806
        %v2088 = vunpack.c.h.b16 %v1806
        %v2089 = vunpack.c.l.b16 %v1807
        %v2090 = vunpack.c.h.b16 %v1807
        %v2091 = vunpack.c.l.b16 %v1808
        %v2092 = vunpack.c.h.b16 %v1808
        %v2093 = vunpack.c.l.b16 %v1809
        %v2094 = vunpack.c.h.b16 %v1809
        %v2095 = vunpack.c.l.b16 %v1810
        %v2096 = vunpack.c.h.b16 %v1810
        %v2097 = vunpack.c.l.b16 %v1811
        %v2098 = vunpack.c.h.b16 %v1811
        %v2099 = vunpack.c.l.b16 %v1812
        %v2100 = vunpack.c.h.b16 %v1812
        %v2101 = vpack.c.b16 %v2039, %v2037
        %v2102 = vpack.c.b16 %v2040, %v2038
        %v2103 = vpack.c.b16 %v2043, %v2041
        %v2104 = vpack.c.b16 %v2044, %v2042
        %v2105 = vpack.c.b16 %v2047, %v2045
        %v2106 = vpack.c.b16 %v2048, %v2046
        %v2107 = vpack.c.b16 %v2051, %v2049
        %v2108 = vpack.c.b16 %v2052, %v2050
        %v2109 = vpack.c.b16 %v2055, %v2053
        %v2110 = vpack.c.b16 %v2056, %v2054
        %v2111 = vpack.c.b16 %v2059, %v2057
        %v2112 = vpack.c.b16 %v2060, %v2058
        %v2113 = vpack.c.b16 %v2063, %v2061
        %v2114 = vpack.c.b16 %v2064, %v2062
        %v2115 = vpack.c.b16 %v2067, %v2065
        %v2116 = vpack.c.b16 %v2068, %v2066
        %v2117 = vpack.c.b16 %v2071, %v2069
        %v2118 = vpack.c.b16 %v2072, %v2070
        %v2119 = vpack.c.b16 %v2075, %v2073
        %v2120 = vpack.c.b16 %v2076, %v2074
        %v2121 = vpack.c.b16 %v2079, %v2077
        %v2122 = vpack.c.b16 %v2080, %v2078
        %v2123 = vpack.c.b16 %v2083, %v2081
        %v2124 = vpack.c.b16 %v2084, %v2082
        %v2125 = vpack.c.b16 %v2087, %v2085
        %v2126 = vpack.c.b16 %v2088, %v2086
        %v2127 = vpack.c.b16 %v2091, %v2089
        %v2128 = vpack.c.b16 %v2092, %v2090
        %v2129 = vpack.c.b16 %v2095, %v2093
        %v2130 = vpack.c.b16 %v2096, %v2094
        %v2131 = vpack.c.b16 %v2099, %v2097
        %v2132 = vpack.c.b16 %v2100, %v2098
        %2165 = vmatprep.subr.bf16.mxu0 %v1718
        %2166 = vmatpush1.bf16.msra.mxu0 %v1717
        %2167 = vmatprep.subr.bf16.mxu0 %v1722
        %2168 = vmatpush1.bf16.msra.mxu0 %v1721
        %2169 = vmatprep.subr.bf16.mxu0 %v1726
        %2170 = vmatpush1.bf16.msra.mxu0 %v1725
        %2171 = vmatprep.subr.bf16.mxu0 %v1730
        %2172 = vmatpush1.bf16.msra.mxu0 %v1729
        %2173 = vmatprep.subr.bf16.mxu0 %v1734
        %2174 = vmatpush1.bf16.msra.mxu0 %v1733
        %2175 = vmatprep.subr.bf16.mxu0 %v1738
        %2176 = vmatpush1.bf16.msra.mxu0 %v1737
        %2177 = vmatprep.subr.bf16.mxu0 %v1742
        %2178 = vmatpush1.bf16.msra.mxu0 %v1741
        %2179 = vmatprep.subr.bf16.mxu0 %v1746
        %2180 = vmatpush1.bf16.msra.mxu0 %v1745
        %2181 = vmatprep.subr.bf16.mxu0 %v1750
        %2182 = vmatpush1.bf16.msra.mxu0 %v1749
        %2183 = vmatprep.subr.bf16.mxu0 %v1754
        %2184 = vmatpush1.bf16.msra.mxu0 %v1753
        %2185 = vmatprep.subr.bf16.mxu0 %v1758
        %2186 = vmatpush1.bf16.msra.mxu0 %v1757
        %2187 = vmatprep.subr.bf16.mxu0 %v1762
        %2188 = vmatpush1.bf16.msra.mxu0 %v1761
        %2189 = vmatprep.subr.bf16.mxu0 %v1766
        %2190 = vmatpush1.bf16.msra.mxu0 %v1765
        %2191 = vmatprep.subr.bf16.mxu0 %v1770
        %2192 = vmatpush1.bf16.msra.mxu0 %v1769
        %2193 = vmatprep.subr.bf16.mxu0 %v1774
        %2194 = vmatpush1.bf16.msra.mxu0 %v1773
        %2195 = vmatprep.subr.bf16.mxu0 %v1778
        %2196 = vmatpush1.bf16.msra.mxu0 %v1777
        %2197 = vmatprep.mubr.bf16.mxu0 %v2102
        %2198 = vmatmul.mubr.bf16.gmra.mrb[0].mxu0 %v2101
        %v2199 = vpop.f32.mrb[0].mxu0
        %v2200 = vadd.f32 %v1848, %v2199
        %v2201 = vpop.f32.mrb[0].mxu0
        %v2202 = vadd.f32 %v1848, %v2201
        %v2203 = vpop.f32.mrb[0].mxu0
        %v2204 = vadd.f32 %v1853, %v2203
        %v2205 = vpop.f32.mrb[0].mxu0
        %v2206 = vadd.f32 %v1853, %v2205
        %2207 = vmatprep.mubr.bf16.mxu0 %v2104
        %2208 = vmatmul.mubr.bf16.gmra.mrb[0].mxu0 %v2103
        %v2209 = vpop.f32.mrb[0].mxu0
        %v2210 = vadd.f32 %v1858, %v2209
        %v2211 = vpop.f32.mrb[0].mxu0
        %v2212 = vadd.f32 %v1858, %v2211
        %v2213 = vpop.f32.mrb[0].mxu0
        %v2214 = vadd.f32 %v1863, %v2213
        %v2215 = vpop.f32.mrb[0].mxu0
        %v2216 = vadd.f32 %v1863, %v2215
        %2217 = vmatprep.mubr.bf16.mxu0 %v2106
        %2218 = vmatmul.mubr.bf16.gmra.mrb[0].mxu0 %v2105
        %v2219 = vpop.f32.mrb[0].mxu0
        %v2220 = vadd.f32 %v1868, %v2219
        %v2221 = vpop.f32.mrb[0].mxu0
        %v2222 = vadd.f32 %v1868, %v2221
        %v2223 = vpop.f32.mrb[0].mxu0
        %v2224 = vadd.f32 %v1873, %v2223
        %v2225 = vpop.f32.mrb[0].mxu0
        %v2226 = vadd.f32 %v1873, %v2225
        %2227 = vmatprep.mubr.bf16.mxu0 %v2108
        %2228 = vmatmul.mubr.bf16.gmra.mrb[0].mxu0 %v2107
        %v2229 = vpop.f32.mrb[0].mxu0
        %v2230 = vadd.f32 %v1878, %v2229
        %v2231 = vpop.f32.mrb[0].mxu0
        %v2232 = vadd.f32 %v1878, %v2231
        %v2233 = vpop.f32.mrb[0].mxu0
        %v2234 = vadd.f32 %v1883, %v2233
        %v2235 = vpop.f32.mrb[0].mxu0
        %v2236 = vadd.f32 %v1883, %v2235
        %2237 = vmatprep.mubr.bf16.mxu0 %v2110
        %2238 = vmatmul.mubr.bf16.gmra.mrb[0].mxu0 %v2109
        %v2239 = vpop.f32.mrb[0].mxu0
        %v2240 = vadd.f32 %v1888, %v2239
        %v2241 = vpop.f32.mrb[0].mxu0
        %v2242 = vadd.f32 %v1888, %v2241
        %v2243 = vpop.f32.mrb[0].mxu0
        %v2244 = vadd.f32 %v1893, %v2243
        %v2245 = vpop.f32.mrb[0].mxu0
        %v2246 = vadd.f32 %v1893, %v2245
        %2247 = vmatprep.mubr.bf16.mxu0 %v2112
        %2248 = vmatmul.mubr.bf16.gmra.mrb[0].mxu0 %v2111
        %v2249 = vpop.f32.mrb[0].mxu0
        %v2250 = vadd.f32 %v1898, %v2249
        %v2251 = vpop.f32.mrb[0].mxu0
        %v2252 = vadd.f32 %v1898, %v2251
        %v2253 = vpop.f32.mrb[0].mxu0
        %v2254 = vadd.f32 %v1903, %v2253
        %v2255 = vpop.f32.mrb[0].mxu0
        %v2256 = vadd.f32 %v1903, %v2255
        %2257 = vmatprep.mubr.bf16.mxu0 %v2114
        %2258 = vmatmul.mubr.bf16.gmra.mrb[0].mxu0 %v2113
        %v2259 = vpop.f32.mrb[0].mxu0
        %v2260 = vadd.f32 %v1908, %v2259
        %v2261 = vpop.f32.mrb[0].mxu0
        %v2262 = vadd.f32 %v1908, %v2261
        %v2263 = vpop.f32.mrb[0].mxu0
        %v2264 = vadd.f32 %v1913, %v2263
        %v2265 = vpop.f32.mrb[0].mxu0
        %v2266 = vadd.f32 %v1913, %v2265
        %2267 = vmatprep.mubr.bf16.mxu0 %v2116
        %2268 = vmatmul.mubr.bf16.gmra.mrb[0].mxu0 %v2115
        %v2269 = vpop.f32.mrb[0].mxu0
        %v2270 = vadd.f32 %v1918, %v2269
        %v2271 = vpop.f32.mrb[0].mxu0
        %v2272 = vadd.f32 %v1918, %v2271
        %v2273 = vpop.f32.mrb[0].mxu0
        %v2274 = vadd.f32 %v1923, %v2273
        %v2275 = vpop.f32.mrb[0].mxu0
        %v2276 = vadd.f32 %v1923, %v2275
        %2277 = vmatprep.mubr.bf16.mxu0 %v2118
        %2278 = vmatmul.mubr.bf16.gmra.mrb[0].mxu0 %v2117
        %v2279 = vpop.f32.mrb[0].mxu0
        %v2280 = vadd.f32 %v1928, %v2279
        %v2281 = vpop.f32.mrb[0].mxu0
        %v2282 = vadd.f32 %v1928, %v2281
        %v2283 = vpop.f32.mrb[0].mxu0
        %v2284 = vadd.f32 %v1933, %v2283
        %v2285 = vpop.f32.mrb[0].mxu0
        %v2286 = vadd.f32 %v1933, %v2285
        %2287 = vmatprep.mubr.bf16.mxu0 %v2120
        %2288 = vmatmul.mubr.bf16.gmra.mrb[0].mxu0 %v2119
        %v2289 = vpop.f32.mrb[0].mxu0
        %v2290 = vadd.f32 %v1938, %v2289
        %v2291 = vpop.f32.mrb[0].mxu0
        %v2292 = vadd.f32 %v1938, %v2291
        %v2293 = vpop.f32.mrb[0].mxu0
        %v2294 = vadd.f32 %v1943, %v2293
        %v2295 = vpop.f32.mrb[0].mxu0
        %v2296 = vadd.f32 %v1943, %v2295
        %2297 = vmatprep.mubr.bf16.mxu0 %v2122
        %2298 = vmatmul.mubr.bf16.gmra.mrb[0].mxu0 %v2121
        %v2299 = vpop.f32.mrb[0].mxu0
        %v2300 = vadd.f32 %v1948, %v2299
        %v2301 = vpop.f32.mrb[0].mxu0
        %v2302 = vadd.f32 %v1948, %v2301
        %v2303 = vpop.f32.mrb[0].mxu0
        %v2304 = vadd.f32 %v1953, %v2303
        %v2305 = vpop.f32.mrb[0].mxu0
        %v2306 = vadd.f32 %v1953, %v2305
        %2307 = vmatprep.mubr.bf16.mxu0 %v2124
        %2308 = vmatmul.mubr.bf16.gmra.mrb[0].mxu0 %v2123
        %v2309 = vpop.f32.mrb[0].mxu0
        %v2310 = vadd.f32 %v1958, %v2309
        %v2311 = vpop.f32.mrb[0].mxu0
        %v2312 = vadd.f32 %v1958, %v2311
        %v2313 = vpop.f32.mrb[0].mxu0
        %v2314 = vadd.f32 %v1963, %v2313
        %v2315 = vpop.f32.mrb[0].mxu0
        %v2316 = vadd.f32 %v1963, %v2315
        %2317 = vmatprep.mubr.bf16.mxu0 %v2126
        %2318 = vmatmul.mubr.bf16.gmra.mrb[0].mxu0 %v2125
        %v2319 = vpop.f32.mrb[0].mxu0
        %v2320 = vadd.f32 %v1968, %v2319
        %v2321 = vpop.f32.mrb[0].mxu0
        %v2322 = vadd.f32 %v1968, %v2321
        %v2323 = vpop.f32.mrb[0].mxu0
        %v2324 = vadd.f32 %v1973, %v2323
        %v2325 = vpop.f32.mrb[0].mxu0
        %v2326 = vadd.f32 %v1973, %v2325
        %2327 = vmatprep.mubr.bf16.mxu0 %v2128
        %2328 = vmatmul.mubr.bf16.gmra.mrb[0].mxu0 %v2127
        %v2329 = vpop.f32.mrb[0].mxu0
        %v2330 = vadd.f32 %v1978, %v2329
        %v2331 = vpop.f32.mrb[0].mxu0
        %v2332 = vadd.f32 %v1978, %v2331
        %v2333 = vpop.f32.mrb[0].mxu0
        %v2334 = vadd.f32 %v1983, %v2333
        %v2335 = vpop.f32.mrb[0].mxu0
        %v2336 = vadd.f32 %v1983, %v2335
        %2337 = vmatprep.mubr.bf16.mxu0 %v2130
        %2338 = vmatmul.mubr.bf16.gmra.mrb[0].mxu0 %v2129
        %v2339 = vpop.f32.mrb[0].mxu0
        %v2340 = vadd.f32 %v1988, %v2339
        %v2341 = vpop.f32.mrb[0].mxu0
        %v2342 = vadd.f32 %v1988, %v2341
        %v2343 = vpop.f32.mrb[0].mxu0
        %v2344 = vadd.f32 %v1993, %v2343
        %v2345 = vpop.f32.mrb[0].mxu0
        %v2346 = vadd.f32 %v1993, %v2345
        %2347 = vmatprep.mubr.bf16.mxu0 %v2132
        %2348 = vmatmul.mubr.bf16.gmra.mrb[0].mxu0 %v2131
        %v2349 = vpop.f32.mrb[0].mxu0
        %v2350 = vadd.f32 %v1998, %v2349
        %v2351 = vpop.f32.mrb[0].mxu0
        %v2352 = vadd.f32 %v1998, %v2351
        %v2353 = vpop.f32.mrb[0].mxu0
        %v2354 = vadd.f32 %v2003, %v2353
        %v2355 = vpop.f32.mrb[0].mxu0
        %v2356 = vadd.f32 %v2003, %v2355
        %2357 = vdwg.mxu0
        %2358 = vmatprep.subr.bf16.mxu0 %v1720
        %2359 = vmatpush1.bf16.msra.mxu0 %v1719
        %2360 = vmatprep.subr.bf16.mxu0 %v1724
        %2361 = vmatpush1.bf16.msra.mxu0 %v1723
        %2362 = vmatprep.subr.bf16.mxu0 %v1728
        %2363 = vmatpush1.bf16.msra.mxu0 %v1727
        %2364 = vmatprep.subr.bf16.mxu0 %v1732
        %2365 = vmatpush1.bf16.msra.mxu0 %v1731
        %2366 = vmatprep.subr.bf16.mxu0 %v1736
        %2367 = vmatpush1.bf16.msra.mxu0 %v1735
        %2368 = vmatprep.subr.bf16.mxu0 %v1740
        %2369 = vmatpush1.bf16.msra.mxu0 %v1739
        %2370 = vmatprep.subr.bf16.mxu0 %v1744
        %2371 = vmatpush1.bf16.msra.mxu0 %v1743
        %2372 = vmatprep.subr.bf16.mxu0 %v1748
        %2373 = vmatpush1.bf16.msra.mxu0 %v1747
        %2374 = vmatprep.subr.bf16.mxu0 %v1752
        %2375 = vmatpush1.bf16.msra.mxu0 %v1751
        %2376 = vmatprep.subr.bf16.mxu0 %v1756
        %2377 = vmatpush1.bf16.msra.mxu0 %v1755
        %2378 = vmatprep.subr.bf16.mxu0 %v1760
        %2379 = vmatpush1.bf16.msra.mxu0 %v1759
        %2380 = vmatprep.subr.bf16.mxu0 %v1764
        %2381 = vmatpush1.bf16.msra.mxu0 %v1763
        %2382 = vmatprep.subr.bf16.mxu0 %v1768
        %2383 = vmatpush1.bf16.msra.mxu0 %v1767
        %2384 = vmatprep.subr.bf16.mxu0 %v1772
        %2385 = vmatpush1.bf16.msra.mxu0 %v1771
        %2386 = vmatprep.subr.bf16.mxu0 %v1776
        %2387 = vmatpush1.bf16.msra.mxu0 %v1775
        %2388 = vmatprep.subr.bf16.mxu0 %v1780
        %2389 = vmatpush1.bf16.msra.mxu0 %v1779
        %2390 = vmatprep.mubr.bf16.mxu0 %v2102
        %2391 = vmatmul.mubr.bf16.gmra.mrb[0].mxu0 %v2101
        %v2392 = vpop.f32.mrb[0].mxu0
        %v2393 = vadd.f32 %v1848, %v2392
        %v2394 = vpop.f32.mrb[0].mxu0
        %v2395 = vadd.f32 %v1848, %v2394
        %v2396 = vpop.f32.mrb[0].mxu0
        %v2397 = vadd.f32 %v1853, %v2396
        %v2398 = vpop.f32.mrb[0].mxu0
        %v2399 = vadd.f32 %v1853, %v2398
        %2400 = vmatprep.mubr.bf16.mxu0 %v2104
        %2401 = vmatmul.mubr.bf16.gmra.mrb[0].mxu0 %v2103
        %v2402 = vpop.f32.mrb[0].mxu0
        %v2403 = vadd.f32 %v1858, %v2402
        %v2404 = vpop.f32.mrb[0].mxu0
        %v2405 = vadd.f32 %v1858, %v2404
        %v2406 = vpop.f32.mrb[0].mxu0
        %v2407 = vadd.f32 %v1863, %v2406
        %v2408 = vpop.f32.mrb[0].mxu0
        %v2409 = vadd.f32 %v1863, %v2408
        %2410 = vmatprep.mubr.bf16.mxu0 %v2106
        %2411 = vmatmul.mubr.bf16.gmra.mrb[0].mxu0 %v2105
        %v2412 = vpop.f32.mrb[0].mxu0
        %v2413 = vadd.f32 %v1868, %v2412
        %v2414 = vpop.f32.mrb[0].mxu0
        %v2415 = vadd.f32 %v1868, %v2414
        %v2416 = vpop.f32.mrb[0].mxu0
        %v2417 = vadd.f32 %v1873, %v2416
        %v2418 = vpop.f32.mrb[0].mxu0
        %v2419 = vadd.f32 %v1873, %v2418
        %2420 = vmatprep.mubr.bf16.mxu0 %v2108
        %2421 = vmatmul.mubr.bf16.gmra.mrb[0].mxu0 %v2107
        %v2422 = vpop.f32.mrb[0].mxu0
        %v2423 = vadd.f32 %v1878, %v2422
        %v2424 = vpop.f32.mrb[0].mxu0
        %v2425 = vadd.f32 %v1878, %v2424
        %v2426 = vpop.f32.mrb[0].mxu0
        %v2427 = vadd.f32 %v1883, %v2426
        %v2428 = vpop.f32.mrb[0].mxu0
        %v2429 = vadd.f32 %v1883, %v2428
        %2430 = vmatprep.mubr.bf16.mxu0 %v2110
        %2431 = vmatmul.mubr.bf16.gmra.mrb[0].mxu0 %v2109
        %v2432 = vpop.f32.mrb[0].mxu0
        %v2433 = vadd.f32 %v1888, %v2432
        %v2434 = vpop.f32.mrb[0].mxu0
        %v2435 = vadd.f32 %v1888, %v2434
        %v2436 = vpop.f32.mrb[0].mxu0
        %v2437 = vadd.f32 %v1893, %v2436
        %v2438 = vpop.f32.mrb[0].mxu0
        %v2439 = vadd.f32 %v1893, %v2438
        %2440 = vmatprep.mubr.bf16.mxu0 %v2112
        %2441 = vmatmul.mubr.bf16.gmra.mrb[0].mxu0 %v2111
        %v2442 = vpop.f32.mrb[0].mxu0
        %v2443 = vadd.f32 %v1898, %v2442
        %v2444 = vpop.f32.mrb[0].mxu0
        %v2445 = vadd.f32 %v1898, %v2444
        %v2446 = vpop.f32.mrb[0].mxu0
        %v2447 = vadd.f32 %v1903, %v2446
        %v2448 = vpop.f32.mrb[0].mxu0
        %v2449 = vadd.f32 %v1903, %v2448
        %2450 = vmatprep.mubr.bf16.mxu0 %v2114
        %2451 = vmatmul.mubr.bf16.gmra.mrb[0].mxu0 %v2113
        %v2452 = vpop.f32.mrb[0].mxu0
        %v2453 = vadd.f32 %v1908, %v2452
        %v2454 = vpop.f32.mrb[0].mxu0
        %v2455 = vadd.f32 %v1908, %v2454
        %v2456 = vpop.f32.mrb[0].mxu0
        %v2457 = vadd.f32 %v1913, %v2456
        %v2458 = vpop.f32.mrb[0].mxu0
        %v2459 = vadd.f32 %v1913, %v2458
        %2460 = vmatprep.mubr.bf16.mxu0 %v2116
        %2461 = vmatmul.mubr.bf16.gmra.mrb[0].mxu0 %v2115
        %v2462 = vpop.f32.mrb[0].mxu0
        %v2463 = vadd.f32 %v1918, %v2462
        %v2464 = vpop.f32.mrb[0].mxu0
        %v2465 = vadd.f32 %v1918, %v2464
        %v2466 = vpop.f32.mrb[0].mxu0
        %v2467 = vadd.f32 %v1923, %v2466
        %v2468 = vpop.f32.mrb[0].mxu0
        %v2469 = vadd.f32 %v1923, %v2468
        %2470 = vmatprep.mubr.bf16.mxu0 %v2118
        %2471 = vmatmul.mubr.bf16.gmra.mrb[0].mxu0 %v2117
        %v2472 = vpop.f32.mrb[0].mxu0
        %v2473 = vadd.f32 %v1928, %v2472
        %v2474 = vpop.f32.mrb[0].mxu0
        %v2475 = vadd.f32 %v1928, %v2474
        %v2476 = vpop.f32.mrb[0].mxu0
        %v2477 = vadd.f32 %v1933, %v2476
        %v2478 = vpop.f32.mrb[0].mxu0
        %v2479 = vadd.f32 %v1933, %v2478
        %2480 = vmatprep.mubr.bf16.mxu0 %v2120
        %2481 = vmatmul.mubr.bf16.gmra.mrb[0].mxu0 %v2119
        %v2482 = vpop.f32.mrb[0].mxu0
        %v2483 = vadd.f32 %v1938, %v2482
        %v2484 = vpop.f32.mrb[0].mxu0
        %v2485 = vadd.f32 %v1938, %v2484
        %v2486 = vpop.f32.mrb[0].mxu0
        %v2487 = vadd.f32 %v1943, %v2486
        %v2488 = vpop.f32.mrb[0].mxu0
        %v2489 = vadd.f32 %v1943, %v2488
        %2490 = vmatprep.mubr.bf16.mxu0 %v2122
        %2491 = vmatmul.mubr.bf16.gmra.mrb[0].mxu0 %v2121
        %v2492 = vpop.f32.mrb[0].mxu0
        %v2493 = vadd.f32 %v1948, %v2492
        %v2494 = vpop.f32.mrb[0].mxu0
        %v2495 = vadd.f32 %v1948, %v2494
        %v2496 = vpop.f32.mrb[0].mxu0
        %v2497 = vadd.f32 %v1953, %v2496
        %v2498 = vpop.f32.mrb[0].mxu0
        %v2499 = vadd.f32 %v1953, %v2498
        %2500 = vmatprep.mubr.bf16.mxu0 %v2124
        %2501 = vmatmul.mubr.bf16.gmra.mrb[0].mxu0 %v2123
        %v2502 = vpop.f32.mrb[0].mxu0
        %v2503 = vadd.f32 %v1958, %v2502
        %v2504 = vpop.f32.mrb[0].mxu0
        %v2505 = vadd.f32 %v1958, %v2504
        %v2506 = vpop.f32.mrb[0].mxu0
        %v2507 = vadd.f32 %v1963, %v2506
        %v2508 = vpop.f32.mrb[0].mxu0
        %v2509 = vadd.f32 %v1963, %v2508
        %2510 = vmatprep.mubr.bf16.mxu0 %v2126
        %2511 = vmatmul.mubr.bf16.gmra.mrb[0].mxu0 %v2125
        %v2512 = vpop.f32.mrb[0].mxu0
        %v2513 = vadd.f32 %v1968, %v2512
        %v2514 = vpop.f32.mrb[0].mxu0
        %v2515 = vadd.f32 %v1968, %v2514
        %v2516 = vpop.f32.mrb[0].mxu0
        %v2517 = vadd.f32 %v1973, %v2516
        %v2518 = vpop.f32.mrb[0].mxu0
        %v2519 = vadd.f32 %v1973, %v2518
        %2520 = vmatprep.mubr.bf16.mxu0 %v2128
        %2521 = vmatmul.mubr.bf16.gmra.mrb[0].mxu0 %v2127
        %v2522 = vpop.f32.mrb[0].mxu0
        %v2523 = vadd.f32 %v1978, %v2522
        %v2524 = vpop.f32.mrb[0].mxu0
        %v2525 = vadd.f32 %v1978, %v2524
        %v2526 = vpop.f32.mrb[0].mxu0
        %v2527 = vadd.f32 %v1983, %v2526
        %v2528 = vpop.f32.mrb[0].mxu0
        %v2529 = vadd.f32 %v1983, %v2528
        %2530 = vmatprep.mubr.bf16.mxu0 %v2130
        %2531 = vmatmul.mubr.bf16.gmra.mrb[0].mxu0 %v2129
        %v2532 = vpop.f32.mrb[0].mxu0
        %v2533 = vadd.f32 %v1988, %v2532
        %v2534 = vpop.f32.mrb[0].mxu0
        %v2535 = vadd.f32 %v1988, %v2534
        %v2536 = vpop.f32.mrb[0].mxu0
        %v2537 = vadd.f32 %v1993, %v2536
        %v2538 = vpop.f32.mrb[0].mxu0
        %v2539 = vadd.f32 %v1993, %v2538
        %2540 = vmatprep.mubr.bf16.mxu0 %v2132
        %2541 = vmatmul.mubr.bf16.gmra.mrb[0].mxu0 %v2131
        %v2542 = vpop.f32.mrb[0].mxu0
        %v2543 = vadd.f32 %v1998, %v2542
        %v2544 = vpop.f32.mrb[0].mxu0
        %v2545 = vadd.f32 %v1998, %v2544
        %v2546 = vpop.f32.mrb[0].mxu0
        %v2547 = vadd.f32 %v2003, %v2546
        %v2548 = vpop.f32.mrb[0].mxu0
        %v2549 = vadd.f32 %v2003, %v2548
        %2550 = vdwg.mxu0
        %v2551 = vmax.f32 %v2200, 0.0
        %v2552 = vmax.f32 %v2202, 0.0
        %v2553 = vmax.f32 %v2393, 0.0
        %v2554 = vmax.f32 %v2395, 0.0
        %v2555 = vmax.f32 %v2204, 0.0
        %v2556 = vmax.f32 %v2206, 0.0
        %v2557 = vmax.f32 %v2397, 0.0
        %v2558 = vmax.f32 %v2399, 0.0
        %v2559 = vmax.f32 %v2210, 0.0
        %v2560 = vmax.f32 %v2212, 0.0
        %v2561 = vmax.f32 %v2403, 0.0
        %v2562 = vmax.f32 %v2405, 0.0
        %v2563 = vmax.f32 %v2214, 0.0
        %v2564 = vmax.f32 %v2216, 0.0
        %v2565 = vmax.f32 %v2407, 0.0
        %v2566 = vmax.f32 %v2409, 0.0
        %v2567 = vmax.f32 %v2220, 0.0
        %v2568 = vmax.f32 %v2222, 0.0
        %v2569 = vmax.f32 %v2413, 0.0
        %v2570 = vmax.f32 %v2415, 0.0
        %v2571 = vmax.f32 %v2224, 0.0
        %v2572 = vmax.f32 %v2226, 0.0
        %v2573 = vmax.f32 %v2417, 0.0
        %v2574 = vmax.f32 %v2419, 0.0
        %v2575 = vmax.f32 %v2230, 0.0
        %v2576 = vmax.f32 %v2232, 0.0
        %v2577 = vmax.f32 %v2423, 0.0
        %v2578 = vmax.f32 %v2425, 0.0
        %v2579 = vmax.f32 %v2234, 0.0
        %v2580 = vmax.f32 %v2236, 0.0
        %v2581 = vmax.f32 %v2427, 0.0
        %v2582 = vmax.f32 %v2429, 0.0
        %v2583 = vmax.f32 %v2240, 0.0
        %v2584 = vmax.f32 %v2242, 0.0
        %v2585 = vmax.f32 %v2433, 0.0
        %v2586 = vmax.f32 %v2435, 0.0
        %v2587 = vmax.f32 %v2244, 0.0
        %v2588 = vmax.f32 %v2246, 0.0
        %v2589 = vmax.f32 %v2437, 0.0
        %v2590 = vmax.f32 %v2439, 0.0
        %v2591 = vmax.f32 %v2250, 0.0
        %v2592 = vmax.f32 %v2252, 0.0
        %v2593 = vmax.f32 %v2443, 0.0
        %v2594 = vmax.f32 %v2445, 0.0
        %v2595 = vmax.f32 %v2254, 0.0
        %v2596 = vmax.f32 %v2256, 0.0
        %v2597 = vmax.f32 %v2447, 0.0
        %v2598 = vmax.f32 %v2449, 0.0
        %v2599 = vmax.f32 %v2260, 0.0
        %v2600 = vmax.f32 %v2262, 0.0
        %v2601 = vmax.f32 %v2453, 0.0
        %v2602 = vmax.f32 %v2455, 0.0
        %v2603 = vmax.f32 %v2264, 0.0
        %v2604 = vmax.f32 %v2266, 0.0
        %v2605 = vmax.f32 %v2457, 0.0
        %v2606 = vmax.f32 %v2459, 0.0
        %v2607 = vmax.f32 %v2270, 0.0
        %v2608 = vmax.f32 %v2272, 0.0
        %v2609 = vmax.f32 %v2463, 0.0
        %v2610 = vmax.f32 %v2465, 0.0
        %v2611 = vmax.f32 %v2274, 0.0
        %v2612 = vmax.f32 %v2276, 0.0
        %v2613 = vmax.f32 %v2467, 0.0
        %v2614 = vmax.f32 %v2469, 0.0
        %v2615 = vmax.f32 %v2280, 0.0
        %v2616 = vmax.f32 %v2282, 0.0
        %v2617 = vmax.f32 %v2473, 0.0
        %v2618 = vmax.f32 %v2475, 0.0
        %v2619 = vmax.f32 %v2284, 0.0
        %v2620 = vmax.f32 %v2286, 0.0
        %v2621 = vmax.f32 %v2477, 0.0
        %v2622 = vmax.f32 %v2479, 0.0
        %v2623 = vmax.f32 %v2290, 0.0
        %v2624 = vmax.f32 %v2292, 0.0
        %v2625 = vmax.f32 %v2483, 0.0
        %v2626 = vmax.f32 %v2485, 0.0
        %v2627 = vmax.f32 %v2294, 0.0
        %v2628 = vmax.f32 %v2296, 0.0
        %v2629 = vmax.f32 %v2487, 0.0
        %v2630 = vmax.f32 %v2489, 0.0
        %v2631 = vmax.f32 %v2300, 0.0
        %v2632 = vmax.f32 %v2302, 0.0
        %v2633 = vmax.f32 %v2493, 0.0
        %v2634 = vmax.f32 %v2495, 0.0
        %v2635 = vmax.f32 %v2304, 0.0
        %v2636 = vmax.f32 %v2306, 0.0
        %v2637 = vmax.f32 %v2497, 0.0
        %v2638 = vmax.f32 %v2499, 0.0
        %v2639 = vmax.f32 %v2310, 0.0
        %v2640 = vmax.f32 %v2312, 0.0
        %v2641 = vmax.f32 %v2503, 0.0
        %v2642 = vmax.f32 %v2505, 0.0
        %v2643 = vmax.f32 %v2314, 0.0
        %v2644 = vmax.f32 %v2316, 0.0
        %v2645 = vmax.f32 %v2507, 0.0
        %v2646 = vmax.f32 %v2509, 0.0
        %v2647 = vmax.f32 %v2320, 0.0
        %v2648 = vmax.f32 %v2322, 0.0
        %v2649 = vmax.f32 %v2513, 0.0
        %v2650 = vmax.f32 %v2515, 0.0
        %v2651 = vmax.f32 %v2324, 0.0
        %v2652 = vmax.f32 %v2326, 0.0
        %v2653 = vmax.f32 %v2517, 0.0
        %v2654 = vmax.f32 %v2519, 0.0
        %v2655 = vmax.f32 %v2330, 0.0
        %v2656 = vmax.f32 %v2332, 0.0
        %v2657 = vmax.f32 %v2523, 0.0
        %v2658 = vmax.f32 %v2525, 0.0
        %v2659 = vmax.f32 %v2334, 0.0
        %v2660 = vmax.f32 %v2336, 0.0
        %v2661 = vmax.f32 %v2527, 0.0
        %v2662 = vmax.f32 %v2529, 0.0
        %v2663 = vmax.f32 %v2340, 0.0
        %v2664 = vmax.f32 %v2342, 0.0
        %v2665 = vmax.f32 %v2533, 0.0
        %v2666 = vmax.f32 %v2535, 0.0
        %v2667 = vmax.f32 %v2344, 0.0
        %v2668 = vmax.f32 %v2346, 0.0
        %v2669 = vmax.f32 %v2537, 0.0
        %v2670 = vmax.f32 %v2539, 0.0
        %v2671 = vmax.f32 %v2350, 0.0
        %v2672 = vmax.f32 %v2352, 0.0
        %v2673 = vmax.f32 %v2543, 0.0
        %v2674 = vmax.f32 %v2545, 0.0
        %v2675 = vmax.f32 %v2354, 0.0
        %v2676 = vmax.f32 %v2356, 0.0
        %v2677 = vmax.f32 %v2547, 0.0
        %v2678 = vmax.f32 %v2549, 0.0
        %v2679 = vpack.c.bf16 %v2555, %v2551
        %v2680 = vpack.c.bf16 %v2556, %v2552
        %v2681 = vpack.c.bf16 %v2557, %v2553
        %v2682 = vpack.c.bf16 %v2558, %v2554
        %v2683 = vpack.c.bf16 %v2563, %v2559
        %v2684 = vpack.c.bf16 %v2564, %v2560
        %v2685 = vpack.c.bf16 %v2565, %v2561
        %v2686 = vpack.c.bf16 %v2566, %v2562
        %v2687 = vpack.c.bf16 %v2571, %v2567
        %v2688 = vpack.c.bf16 %v2572, %v2568
        %v2689 = vpack.c.bf16 %v2573, %v2569
        %v2690 = vpack.c.bf16 %v2574, %v2570
        %v2691 = vpack.c.bf16 %v2579, %v2575
        %v2692 = vpack.c.bf16 %v2580, %v2576
        %v2693 = vpack.c.bf16 %v2581, %v2577
        %v2694 = vpack.c.bf16 %v2582, %v2578
        %v2695 = vpack.c.bf16 %v2587, %v2583
        %v2696 = vpack.c.bf16 %v2588, %v2584
        %v2697 = vpack.c.bf16 %v2589, %v2585
        %v2698 = vpack.c.bf16 %v2590, %v2586
        %v2699 = vpack.c.bf16 %v2595, %v2591
        %v2700 = vpack.c.bf16 %v2596, %v2592
        %v2701 = vpack.c.bf16 %v2597, %v2593
        %v2702 = vpack.c.bf16 %v2598, %v2594
        %v2703 = vpack.c.bf16 %v2603, %v2599
        %v2704 = vpack.c.bf16 %v2604, %v2600
        %v2705 = vpack.c.bf16 %v2605, %v2601
        %v2706 = vpack.c.bf16 %v2606, %v2602
        %v2707 = vpack.c.bf16 %v2611, %v2607
        %v2708 = vpack.c.bf16 %v2612, %v2608
        %v2709 = vpack.c.bf16 %v2613, %v2609
        %v2710 = vpack.c.bf16 %v2614, %v2610
        %v2711 = vpack.c.bf16 %v2619, %v2615
        %v2712 = vpack.c.bf16 %v2620, %v2616
        %v2713 = vpack.c.bf16 %v2621, %v2617
        %v2714 = vpack.c.bf16 %v2622, %v2618
        %v2715 = vpack.c.bf16 %v2627, %v2623
        %v2716 = vpack.c.bf16 %v2628, %v2624
        %v2717 = vpack.c.bf16 %v2629, %v2625
        %v2718 = vpack.c.bf16 %v2630, %v2626
        %v2719 = vpack.c.bf16 %v2635, %v2631
        %v2720 = vpack.c.bf16 %v2636, %v2632
        %v2721 = vpack.c.bf16 %v2637, %v2633
        %v2722 = vpack.c.bf16 %v2638, %v2634
        %v2723 = vpack.c.bf16 %v2643, %v2639
        %v2724 = vpack.c.bf16 %v2644, %v2640
        %v2725 = vpack.c.bf16 %v2645, %v2641
        %v2726 = vpack.c.bf16 %v2646, %v2642
        %v2727 = vpack.c.bf16 %v2651, %v2647
        %v2728 = vpack.c.bf16 %v2652, %v2648
        %v2729 = vpack.c.bf16 %v2653, %v2649
        %v2730 = vpack.c.bf16 %v2654, %v2650
        %v2731 = vpack.c.bf16 %v2659, %v2655
        %v2732 = vpack.c.bf16 %v2660, %v2656
        %v2733 = vpack.c.bf16 %v2661, %v2657
        %v2734 = vpack.c.bf16 %v2662, %v2658
        %v2735 = vpack.c.bf16 %v2667, %v2663
        %v2736 = vpack.c.bf16 %v2668, %v2664
        %v2737 = vpack.c.bf16 %v2669, %v2665
        %v2738 = vpack.c.bf16 %v2670, %v2666
        %v2739 = vpack.c.bf16 %v2675, %v2671
        %v2740 = vpack.c.bf16 %v2676, %v2672
        %v2741 = vpack.c.bf16 %v2677, %v2673
        %v2742 = vpack.c.bf16 %v2678, %v2674
        %v2743 = vld [vmem:[%s5] sm:$0xff]
        %v2744 = vld [vmem:[%s5 + $0x8] sm:$0xff]
        %v2745 = vld [vmem:[%s5 + $0x10] sm:$0xff]
        %v2746 = vld [vmem:[%s5 + $0x18] sm:$0xff]
        %v2747 = vld [vmem:[%s5 + $0x20] sm:$0xff]
        %v2748 = vld [vmem:[%s5 + $0x28] sm:$0xff]
        %v2749 = vld [vmem:[%s5 + $0x30] sm:$0xff]
        %v2750 = vld [vmem:[%s5 + $0x38] sm:$0xff]
        %v2751 = vld [vmem:[%s5 + $0x40] sm:$0xff]
        %v2752 = vld [vmem:[%s5 + $0x48] sm:$0xff]
        %v2753 = vld [vmem:[%s5 + $0x50] sm:$0xff]
        %v2754 = vld [vmem:[%s5 + $0x58] sm:$0xff]
        %v2755 = vld [vmem:[%s5 + $0x60] sm:$0xff]
        %v2756 = vld [vmem:[%s5 + $0x68] sm:$0xff]
        %v2757 = vld [vmem:[%s5 + $0x70] sm:$0xff]
        %v2758 = vld [vmem:[%s5 + $0x78] sm:$0xff]
        %v2759 = vld [vmem:[%s5 + $0x80] sm:$0xff]
        %v2760 = vld [vmem:[%s5 + $0x88] sm:$0xff]
        %v2761 = vld [vmem:[%s5 + $0x90] sm:$0xff]
        %v2762 = vld [vmem:[%s5 + $0x98] sm:$0xff]
        %v2763 = vld [vmem:[%s5 + $0xa0] sm:$0xff]
        %v2764 = vld [vmem:[%s5 + $0xa8] sm:$0xff]
        %v2765 = vld [vmem:[%s5 + $0xb0] sm:$0xff]
        %v2766 = vld [vmem:[%s5 + $0xb8] sm:$0xff]
        %v2767 = vld [vmem:[%s5 + $0xc0] sm:$0xff]
        %v2768 = vld [vmem:[%s5 + $0xc8] sm:$0xff]
        %v2769 = vld [vmem:[%s5 + $0xd0] sm:$0xff]
        %v2770 = vld [vmem:[%s5 + $0xd8] sm:$0xff]
        %v2771 = vld [vmem:[%s5 + $0xe0] sm:$0xff]
        %v2772 = vld [vmem:[%s5 + $0xe8] sm:$0xff]
        %v2773 = vld [vmem:[%s5 + $0xf0] sm:$0xff]
        %v2774 = vld [vmem:[%s5 + $0xf8] sm:$0xff]
        %v2775 = vld [vmem:[%s6] sm:$0xff]
        %v2776 = vld [vmem:[%s6 + $0x8] sm:$0xff]
        %v2777 = vld [vmem:[%s6 + $0x10] sm:$0xff]
        %v2778 = vld [vmem:[%s6 + $0x18] sm:$0xff]
        %v2779 = vld [vmem:[%s6 + $0x20] sm:$0xff]
        %v2780 = vld [vmem:[%s6 + $0x28] sm:$0xff]
        %v2781 = vld [vmem:[%s6 + $0x30] sm:$0xff]
        %v2782 = vld [vmem:[%s6 + $0x38] sm:$0xff]
        %v2783 = vld [vmem:[%s6 + $0x40] sm:$0xff]
        %v2784 = vld [vmem:[%s6 + $0x48] sm:$0xff]
        %v2785 = vld [vmem:[%s6 + $0x50] sm:$0xff]
        %v2786 = vld [vmem:[%s6 + $0x58] sm:$0xff]
        %v2787 = vld [vmem:[%s6 + $0x60] sm:$0xff]
        %v2788 = vld [vmem:[%s6 + $0x68] sm:$0xff]
        %v2789 = vld [vmem:[%s6 + $0x70] sm:$0xff]
        %v2790 = vld [vmem:[%s6 + $0x78] sm:$0xff]
        %v2791 = vld [vmem:[%s6 + $0x80] sm:$0xff]
        %v2792 = vld [vmem:[%s6 + $0x88] sm:$0xff]
        %v2793 = vld [vmem:[%s6 + $0x90] sm:$0xff]
        %v2794 = vld [vmem:[%s6 + $0x98] sm:$0xff]
        %v2795 = vld [vmem:[%s6 + $0xa0] sm:$0xff]
        %v2796 = vld [vmem:[%s6 + $0xa8] sm:$0xff]
        %v2797 = vld [vmem:[%s6 + $0xb0] sm:$0xff]
        %v2798 = vld [vmem:[%s6 + $0xb8] sm:$0xff]
        %v2799 = vld [vmem:[%s6 + $0xc0] sm:$0xff]
        %v2800 = vld [vmem:[%s6 + $0xc8] sm:$0xff]
        %v2801 = vld [vmem:[%s6 + $0xd0] sm:$0xff]
        %v2802 = vld [vmem:[%s6 + $0xd8] sm:$0xff]
        %v2803 = vld [vmem:[%s6 + $0xe0] sm:$0xff]
        %v2804 = vld [vmem:[%s6 + $0xe8] sm:$0xff]
        %v2805 = vld [vmem:[%s6 + $0xf0] sm:$0xff]
        %v2806 = vld [vmem:[%s6 + $0xf8] sm:$0xff]
        %2808 = vset.pattern.permute.xlu0 0
        %2809 = vperm.xlu0 %2808, %v2775
        %v2810 = vpop.permute.xlu0 %2809
        %2813 = vset.pattern.permute.xlu0 0
        %2814 = vperm.xlu0 %2813, %v2776
        %v2815 = vpop.permute.xlu0 %2814
        %2818 = vset.pattern.permute.xlu0 0
        %2819 = vperm.xlu0 %2818, %v2777
        %v2820 = vpop.permute.xlu0 %2819
        %2823 = vset.pattern.permute.xlu0 0
        %2824 = vperm.xlu0 %2823, %v2778
        %v2825 = vpop.permute.xlu0 %2824
        %2828 = vset.pattern.permute.xlu0 0
        %2829 = vperm.xlu0 %2828, %v2779
        %v2830 = vpop.permute.xlu0 %2829
        %2833 = vset.pattern.permute.xlu0 0
        %2834 = vperm.xlu0 %2833, %v2780
        %v2835 = vpop.permute.xlu0 %2834
        %2838 = vset.pattern.permute.xlu0 0
        %2839 = vperm.xlu0 %2838, %v2781
        %v2840 = vpop.permute.xlu0 %2839
        %2843 = vset.pattern.permute.xlu0 0
        %2844 = vperm.xlu0 %2843, %v2782
        %v2845 = vpop.permute.xlu0 %2844
        %2848 = vset.pattern.permute.xlu0 0
        %2849 = vperm.xlu0 %2848, %v2783
        %v2850 = vpop.permute.xlu0 %2849
        %2853 = vset.pattern.permute.xlu0 0
        %2854 = vperm.xlu0 %2853, %v2784
        %v2855 = vpop.permute.xlu0 %2854
        %2858 = vset.pattern.permute.xlu0 0
        %2859 = vperm.xlu0 %2858, %v2785
        %v2860 = vpop.permute.xlu0 %2859
        %2863 = vset.pattern.permute.xlu0 0
        %2864 = vperm.xlu0 %2863, %v2786
        %v2865 = vpop.permute.xlu0 %2864
        %2868 = vset.pattern.permute.xlu0 0
        %2869 = vperm.xlu0 %2868, %v2787
        %v2870 = vpop.permute.xlu0 %2869
        %2873 = vset.pattern.permute.xlu0 0
        %2874 = vperm.xlu0 %2873, %v2788
        %v2875 = vpop.permute.xlu0 %2874
        %2878 = vset.pattern.permute.xlu0 0
        %2879 = vperm.xlu0 %2878, %v2789
        %v2880 = vpop.permute.xlu0 %2879
        %2883 = vset.pattern.permute.xlu0 0
        %2884 = vperm.xlu0 %2883, %v2790
        %v2885 = vpop.permute.xlu0 %2884
        %2888 = vset.pattern.permute.xlu0 0
        %2889 = vperm.xlu0 %2888, %v2791
        %v2890 = vpop.permute.xlu0 %2889
        %2893 = vset.pattern.permute.xlu0 0
        %2894 = vperm.xlu0 %2893, %v2792
        %v2895 = vpop.permute.xlu0 %2894
        %2898 = vset.pattern.permute.xlu0 0
        %2899 = vperm.xlu0 %2898, %v2793
        %v2900 = vpop.permute.xlu0 %2899
        %2903 = vset.pattern.permute.xlu0 0
        %2904 = vperm.xlu0 %2903, %v2794
        %v2905 = vpop.permute.xlu0 %2904
        %2908 = vset.pattern.permute.xlu0 0
        %2909 = vperm.xlu0 %2908, %v2795
        %v2910 = vpop.permute.xlu0 %2909
        %2913 = vset.pattern.permute.xlu0 0
        %2914 = vperm.xlu0 %2913, %v2796
        %v2915 = vpop.permute.xlu0 %2914
        %2918 = vset.pattern.permute.xlu0 0
        %2919 = vperm.xlu0 %2918, %v2797
        %v2920 = vpop.permute.xlu0 %2919
        %2923 = vset.pattern.permute.xlu0 0
        %2924 = vperm.xlu0 %2923, %v2798
        %v2925 = vpop.permute.xlu0 %2924
        %2928 = vset.pattern.permute.xlu0 0
        %2929 = vperm.xlu0 %2928, %v2799
        %v2930 = vpop.permute.xlu0 %2929
        %2933 = vset.pattern.permute.xlu0 0
        %2934 = vperm.xlu0 %2933, %v2800
        %v2935 = vpop.permute.xlu0 %2934
        %2938 = vset.pattern.permute.xlu0 0
        %2939 = vperm.xlu0 %2938, %v2801
        %v2940 = vpop.permute.xlu0 %2939
        %2943 = vset.pattern.permute.xlu0 0
        %2944 = vperm.xlu0 %2943, %v2802
        %v2945 = vpop.permute.xlu0 %2944
        %2948 = vset.pattern.permute.xlu0 0
        %2949 = vperm.xlu0 %2948, %v2803
        %v2950 = vpop.permute.xlu0 %2949
        %2953 = vset.pattern.permute.xlu0 0
        %2954 = vperm.xlu0 %2953, %v2804
        %v2955 = vpop.permute.xlu0 %2954
        %2958 = vset.pattern.permute.xlu0 0
        %2959 = vperm.xlu0 %2958, %v2805
        %v2960 = vpop.permute.xlu0 %2959
        %2963 = vset.pattern.permute.xlu0 0
        %2964 = vperm.xlu0 %2963, %v2806
        %v2965 = vpop.permute.xlu0 %2964
        %v2999 = vunpack.c.l.b16 %v2743
        %v3000 = vunpack.c.h.b16 %v2743
        %v3001 = vunpack.c.l.b16 %v2744
        %v3002 = vunpack.c.h.b16 %v2744
        %v3003 = vunpack.c.l.b16 %v2745
        %v3004 = vunpack.c.h.b16 %v2745
        %v3005 = vunpack.c.l.b16 %v2746
        %v3006 = vunpack.c.h.b16 %v2746
        %v3007 = vunpack.c.l.b16 %v2747
        %v3008 = vunpack.c.h.b16 %v2747
        %v3009 = vunpack.c.l.b16 %v2748
        %v3010 = vunpack.c.h.b16 %v2748
        %v3011 = vunpack.c.l.b16 %v2749
        %v3012 = vunpack.c.h.b16 %v2749
        %v3013 = vunpack.c.l.b16 %v2750
        %v3014 = vunpack.c.h.b16 %v2750
        %v3015 = vunpack.c.l.b16 %v2751
        %v3016 = vunpack.c.h.b16 %v2751
        %v3017 = vunpack.c.l.b16 %v2752
        %v3018 = vunpack.c.h.b16 %v2752
        %v3019 = vunpack.c.l.b16 %v2753
        %v3020 = vunpack.c.h.b16 %v2753
        %v3021 = vunpack.c.l.b16 %v2754
        %v3022 = vunpack.c.h.b16 %v2754
        %v3023 = vunpack.c.l.b16 %v2755
        %v3024 = vunpack.c.h.b16 %v2755
        %v3025 = vunpack.c.l.b16 %v2756
        %v3026 = vunpack.c.h.b16 %v2756
        %v3027 = vunpack.c.l.b16 %v2757
        %v3028 = vunpack.c.h.b16 %v2757
        %v3029 = vunpack.c.l.b16 %v2758
        %v3030 = vunpack.c.h.b16 %v2758
        %v3031 = vunpack.c.l.b16 %v2759
        %v3032 = vunpack.c.h.b16 %v2759
        %v3033 = vunpack.c.l.b16 %v2760
        %v3034 = vunpack.c.h.b16 %v2760
        %v3035 = vunpack.c.l.b16 %v2761
        %v3036 = vunpack.c.h.b16 %v2761
        %v3037 = vunpack.c.l.b16 %v2762
        %v3038 = vunpack.c.h.b16 %v2762
        %v3039 = vunpack.c.l.b16 %v2763
        %v3040 = vunpack.c.h.b16 %v2763
        %v3041 = vunpack.c.l.b16 %v2764
        %v3042 = vunpack.c.h.b16 %v2764
        %v3043 = vunpack.c.l.b16 %v2765
        %v3044 = vunpack.c.h.b16 %v2765
        %v3045 = vunpack.c.l.b16 %v2766
        %v3046 = vunpack.c.h.b16 %v2766
        %v3047 = vunpack.c.l.b16 %v2767
        %v3048 = vunpack.c.h.b16 %v2767
        %v3049 = vunpack.c.l.b16 %v2768
        %v3050 = vunpack.c.h.b16 %v2768
        %v3051 = vunpack.c.l.b16 %v2769
        %v3052 = vunpack.c.h.b16 %v2769
        %v3053 = vunpack.c.l.b16 %v2770
        %v3054 = vunpack.c.h.b16 %v2770
        %v3055 = vunpack.c.l.b16 %v2771
        %v3056 = vunpack.c.h.b16 %v2771
        %v3057 = vunpack.c.l.b16 %v2772
        %v3058 = vunpack.c.h.b16 %v2772
        %v3059 = vunpack.c.l.b16 %v2773
        %v3060 = vunpack.c.h.b16 %v2773
        %v3061 = vunpack.c.l.b16 %v2774
        %v3062 = vunpack.c.h.b16 %v2774
        %v3063 = vpack.c.b16 %v3001, %v2999
        %v3064 = vpack.c.b16 %v3002, %v3000
        %v3065 = vpack.c.b16 %v3005, %v3003
        %v3066 = vpack.c.b16 %v3006, %v3004
        %v3067 = vpack.c.b16 %v3009, %v3007
        %v3068 = vpack.c.b16 %v3010, %v3008
        %v3069 = vpack.c.b16 %v3013, %v3011
        %v3070 = vpack.c.b16 %v3014, %v3012
        %v3071 = vpack.c.b16 %v3017, %v3015
        %v3072 = vpack.c.b16 %v3018, %v3016
        %v3073 = vpack.c.b16 %v3021, %v3019
        %v3074 = vpack.c.b16 %v3022, %v3020
        %v3075 = vpack.c.b16 %v3025, %v3023
        %v3076 = vpack.c.b16 %v3026, %v3024
        %v3077 = vpack.c.b16 %v3029, %v3027
        %v3078 = vpack.c.b16 %v3030, %v3028
        %v3079 = vpack.c.b16 %v3033, %v3031
        %v3080 = vpack.c.b16 %v3034, %v3032
        %v3081 = vpack.c.b16 %v3037, %v3035
        %v3082 = vpack.c.b16 %v3038, %v3036
        %v3083 = vpack.c.b16 %v3041, %v3039
        %v3084 = vpack.c.b16 %v3042, %v3040
        %v3085 = vpack.c.b16 %v3045, %v3043
        %v3086 = vpack.c.b16 %v3046, %v3044
        %v3087 = vpack.c.b16 %v3049, %v3047
        %v3088 = vpack.c.b16 %v3050, %v3048
        %v3089 = vpack.c.b16 %v3053, %v3051
        %v3090 = vpack.c.b16 %v3054, %v3052
        %v3091 = vpack.c.b16 %v3057, %v3055
        %v3092 = vpack.c.b16 %v3058, %v3056
        %v3093 = vpack.c.b16 %v3061, %v3059
        %v3094 = vpack.c.b16 %v3062, %v3060
        %3127 = vmatprep.subr.bf16.mxu0 %v2680
        %3128 = vmatpush1.bf16.msra.mxu0 %v2679
        %3129 = vmatprep.subr.bf16.mxu0 %v2684
        %3130 = vmatpush1.bf16.msra.mxu0 %v2683
        %3131 = vmatprep.subr.bf16.mxu0 %v2688
        %3132 = vmatpush1.bf16.msra.mxu0 %v2687
        %3133 = vmatprep.subr.bf16.mxu0 %v2692
        %3134 = vmatpush1.bf16.msra.mxu0 %v2691
        %3135 = vmatprep.subr.bf16.mxu0 %v2696
        %3136 = vmatpush1.bf16.msra.mxu0 %v2695
        %3137 = vmatprep.subr.bf16.mxu0 %v2700
        %3138 = vmatpush1.bf16.msra.mxu0 %v2699
        %3139 = vmatprep.subr.bf16.mxu0 %v2704
        %3140 = vmatpush1.bf16.msra.mxu0 %v2703
        %3141 = vmatprep.subr.bf16.mxu0 %v2708
        %3142 = vmatpush1.bf16.msra.mxu0 %v2707
        %3143 = vmatprep.subr.bf16.mxu0 %v2712
        %3144 = vmatpush1.bf16.msra.mxu0 %v2711
        %3145 = vmatprep.subr.bf16.mxu0 %v2716
        %3146 = vmatpush1.bf16.msra.mxu0 %v2715
        %3147 = vmatprep.subr.bf16.mxu0 %v2720
        %3148 = vmatpush1.bf16.msra.mxu0 %v2719
        %3149 = vmatprep.subr.bf16.mxu0 %v2724
        %3150 = vmatpush1.bf16.msra.mxu0 %v2723
        %3151 = vmatprep.subr.bf16.mxu0 %v2728
        %3152 = vmatpush1.bf16.msra.mxu0 %v2727
        %3153 = vmatprep.subr.bf16.mxu0 %v2732
        %3154 = vmatpush1.bf16.msra.mxu0 %v2731
        %3155 = vmatprep.subr.bf16.mxu0 %v2736
        %3156 = vmatpush1.bf16.msra.mxu0 %v2735
        %3157 = vmatprep.subr.bf16.mxu0 %v2740
        %3158 = vmatpush1.bf16.msra.mxu0 %v2739
        %3159 = vmatprep.mubr.bf16.mxu0 %v3064
        %3160 = vmatmul.mubr.bf16.gmra.mrb[0].mxu0 %v3063
        %v3161 = vpop.f32.mrb[0].mxu0
        %v3162 = vadd.f32 %v2810, %v3161
        %v3163 = vpop.f32.mrb[0].mxu0
        %v3164 = vadd.f32 %v2810, %v3163
        %v3165 = vpop.f32.mrb[0].mxu0
        %v3166 = vadd.f32 %v2815, %v3165
        %v3167 = vpop.f32.mrb[0].mxu0
        %v3168 = vadd.f32 %v2815, %v3167
        %3169 = vmatprep.mubr.bf16.mxu0 %v3066
        %3170 = vmatmul.mubr.bf16.gmra.mrb[0].mxu0 %v3065
        %v3171 = vpop.f32.mrb[0].mxu0
        %v3172 = vadd.f32 %v2820, %v3171
        %v3173 = vpop.f32.mrb[0].mxu0
        %v3174 = vadd.f32 %v2820, %v3173
        %v3175 = vpop.f32.mrb[0].mxu0
        %v3176 = vadd.f32 %v2825, %v3175
        %v3177 = vpop.f32.mrb[0].mxu0
        %v3178 = vadd.f32 %v2825, %v3177
        %3179 = vmatprep.mubr.bf16.mxu0 %v3068
        %3180 = vmatmul.mubr.bf16.gmra.mrb[0].mxu0 %v3067
        %v3181 = vpop.f32.mrb[0].mxu0
        %v3182 = vadd.f32 %v2830, %v3181
        %v3183 = vpop.f32.mrb[0].mxu0
        %v3184 = vadd.f32 %v2830, %v3183
        %v3185 = vpop.f32.mrb[0].mxu0
        %v3186 = vadd.f32 %v2835, %v3185
        %v3187 = vpop.f32.mrb[0].mxu0
        %v3188 = vadd.f32 %v2835, %v3187
        %3189 = vmatprep.mubr.bf16.mxu0 %v3070
        %3190 = vmatmul.mubr.bf16.gmra.mrb[0].mxu0 %v3069
        %v3191 = vpop.f32.mrb[0].mxu0
        %v3192 = vadd.f32 %v2840, %v3191
        %v3193 = vpop.f32.mrb[0].mxu0
        %v3194 = vadd.f32 %v2840, %v3193
        %v3195 = vpop.f32.mrb[0].mxu0
        %v3196 = vadd.f32 %v2845, %v3195
        %v3197 = vpop.f32.mrb[0].mxu0
        %v3198 = vadd.f32 %v2845, %v3197
        %3199 = vmatprep.mubr.bf16.mxu0 %v3072
        %3200 = vmatmul.mubr.bf16.gmra.mrb[0].mxu0 %v3071
        %v3201 = vpop.f32.mrb[0].mxu0
        %v3202 = vadd.f32 %v2850, %v3201
        %v3203 = vpop.f32.mrb[0].mxu0
        %v3204 = vadd.f32 %v2850, %v3203
        %v3205 = vpop.f32.mrb[0].mxu0
        %v3206 = vadd.f32 %v2855, %v3205
        %v3207 = vpop.f32.mrb[0].mxu0
        %v3208 = vadd.f32 %v2855, %v3207
        %3209 = vmatprep.mubr.bf16.mxu0 %v3074
        %3210 = vmatmul.mubr.bf16.gmra.mrb[0].mxu0 %v3073
        %v3211 = vpop.f32.mrb[0].mxu0
        %v3212 = vadd.f32 %v2860, %v3211
        %v3213 = vpop.f32.mrb[0].mxu0
        %v3214 = vadd.f32 %v2860, %v3213
        %v3215 = vpop.f32.mrb[0].mxu0
        %v3216 = vadd.f32 %v2865, %v3215
        %v3217 = vpop.f32.mrb[0].mxu0
        %v3218 = vadd.f32 %v2865, %v3217
        %3219 = vmatprep.mubr.bf16.mxu0 %v3076
        %3220 = vmatmul.mubr.bf16.gmra.mrb[0].mxu0 %v3075
        %v3221 = vpop.f32.mrb[0].mxu0
        %v3222 = vadd.f32 %v2870, %v3221
        %v3223 = vpop.f32.mrb[0].mxu0
        %v3224 = vadd.f32 %v2870, %v3223
        %v3225 = vpop.f32.mrb[0].mxu0
        %v3226 = vadd.f32 %v2875, %v3225
        %v3227 = vpop.f32.mrb[0].mxu0
        %v3228 = vadd.f32 %v2875, %v3227
        %3229 = vmatprep.mubr.bf16.mxu0 %v3078
        %3230 = vmatmul.mubr.bf16.gmra.mrb[0].mxu0 %v3077
        %v3231 = vpop.f32.mrb[0].mxu0
        %v3232 = vadd.f32 %v2880, %v3231
        %v3233 = vpop.f32.mrb[0].mxu0
        %v3234 = vadd.f32 %v2880, %v3233
        %v3235 = vpop.f32.mrb[0].mxu0
        %v3236 = vadd.f32 %v2885, %v3235
        %v3237 = vpop.f32.mrb[0].mxu0
        %v3238 = vadd.f32 %v2885, %v3237
        %3239 = vmatprep.mubr.bf16.mxu0 %v3080
        %3240 = vmatmul.mubr.bf16.gmra.mrb[0].mxu0 %v3079
        %v3241 = vpop.f32.mrb[0].mxu0
        %v3242 = vadd.f32 %v2890, %v3241
        %v3243 = vpop.f32.mrb[0].mxu0
        %v3244 = vadd.f32 %v2890, %v3243
        %v3245 = vpop.f32.mrb[0].mxu0
        %v3246 = vadd.f32 %v2895, %v3245
        %v3247 = vpop.f32.mrb[0].mxu0
        %v3248 = vadd.f32 %v2895, %v3247
        %3249 = vmatprep.mubr.bf16.mxu0 %v3082
        %3250 = vmatmul.mubr.bf16.gmra.mrb[0].mxu0 %v3081
        %v3251 = vpop.f32.mrb[0].mxu0
        %v3252 = vadd.f32 %v2900, %v3251
        %v3253 = vpop.f32.mrb[0].mxu0
        %v3254 = vadd.f32 %v2900, %v3253
        %v3255 = vpop.f32.mrb[0].mxu0
        %v3256 = vadd.f32 %v2905, %v3255
        %v3257 = vpop.f32.mrb[0].mxu0
        %v3258 = vadd.f32 %v2905, %v3257
        %3259 = vmatprep.mubr.bf16.mxu0 %v3084
        %3260 = vmatmul.mubr.bf16.gmra.mrb[0].mxu0 %v3083
        %v3261 = vpop.f32.mrb[0].mxu0
        %v3262 = vadd.f32 %v2910, %v3261
        %v3263 = vpop.f32.mrb[0].mxu0
        %v3264 = vadd.f32 %v2910, %v3263
        %v3265 = vpop.f32.mrb[0].mxu0
        %v3266 = vadd.f32 %v2915, %v3265
        %v3267 = vpop.f32.mrb[0].mxu0
        %v3268 = vadd.f32 %v2915, %v3267
        %3269 = vmatprep.mubr.bf16.mxu0 %v3086
        %3270 = vmatmul.mubr.bf16.gmra.mrb[0].mxu0 %v3085
        %v3271 = vpop.f32.mrb[0].mxu0
        %v3272 = vadd.f32 %v2920, %v3271
        %v3273 = vpop.f32.mrb[0].mxu0
        %v3274 = vadd.f32 %v2920, %v3273
        %v3275 = vpop.f32.mrb[0].mxu0
        %v3276 = vadd.f32 %v2925, %v3275
        %v3277 = vpop.f32.mrb[0].mxu0
        %v3278 = vadd.f32 %v2925, %v3277
        %3279 = vmatprep.mubr.bf16.mxu0 %v3088
        %3280 = vmatmul.mubr.bf16.gmra.mrb[0].mxu0 %v3087
        %v3281 = vpop.f32.mrb[0].mxu0
        %v3282 = vadd.f32 %v2930, %v3281
        %v3283 = vpop.f32.mrb[0].mxu0
        %v3284 = vadd.f32 %v2930, %v3283
        %v3285 = vpop.f32.mrb[0].mxu0
        %v3286 = vadd.f32 %v2935, %v3285
        %v3287 = vpop.f32.mrb[0].mxu0
        %v3288 = vadd.f32 %v2935, %v3287
        %3289 = vmatprep.mubr.bf16.mxu0 %v3090
        %3290 = vmatmul.mubr.bf16.gmra.mrb[0].mxu0 %v3089
        %v3291 = vpop.f32.mrb[0].mxu0
        %v3292 = vadd.f32 %v2940, %v3291
        %v3293 = vpop.f32.mrb[0].mxu0
        %v3294 = vadd.f32 %v2940, %v3293
        %v3295 = vpop.f32.mrb[0].mxu0
        %v3296 = vadd.f32 %v2945, %v3295
        %v3297 = vpop.f32.mrb[0].mxu0
        %v3298 = vadd.f32 %v2945, %v3297
        %3299 = vmatprep.mubr.bf16.mxu0 %v3092
        %3300 = vmatmul.mubr.bf16.gmra.mrb[0].mxu0 %v3091
        %v3301 = vpop.f32.mrb[0].mxu0
        %v3302 = vadd.f32 %v2950, %v3301
        %v3303 = vpop.f32.mrb[0].mxu0
        %v3304 = vadd.f32 %v2950, %v3303
        %v3305 = vpop.f32.mrb[0].mxu0
        %v3306 = vadd.f32 %v2955, %v3305
        %v3307 = vpop.f32.mrb[0].mxu0
        %v3308 = vadd.f32 %v2955, %v3307
        %3309 = vmatprep.mubr.bf16.mxu0 %v3094
        %3310 = vmatmul.mubr.bf16.gmra.mrb[0].mxu0 %v3093
        %v3311 = vpop.f32.mrb[0].mxu0
        %v3312 = vadd.f32 %v2960, %v3311
        %v3313 = vpop.f32.mrb[0].mxu0
        %v3314 = vadd.f32 %v2960, %v3313
        %v3315 = vpop.f32.mrb[0].mxu0
        %v3316 = vadd.f32 %v2965, %v3315
        %v3317 = vpop.f32.mrb[0].mxu0
        %v3318 = vadd.f32 %v2965, %v3317
        %3319 = vdwg.mxu0
        %3320 = vmatprep.subr.bf16.mxu0 %v2682
        %3321 = vmatpush1.bf16.msra.mxu0 %v2681
        %3322 = vmatprep.subr.bf16.mxu0 %v2686
        %3323 = vmatpush1.bf16.msra.mxu0 %v2685
        %3324 = vmatprep.subr.bf16.mxu0 %v2690
        %3325 = vmatpush1.bf16.msra.mxu0 %v2689
        %3326 = vmatprep.subr.bf16.mxu0 %v2694
        %3327 = vmatpush1.bf16.msra.mxu0 %v2693
        %3328 = vmatprep.subr.bf16.mxu0 %v2698
        %3329 = vmatpush1.bf16.msra.mxu0 %v2697
        %3330 = vmatprep.subr.bf16.mxu0 %v2702
        %3331 = vmatpush1.bf16.msra.mxu0 %v2701
        %3332 = vmatprep.subr.bf16.mxu0 %v2706
        %3333 = vmatpush1.bf16.msra.mxu0 %v2705
        %3334 = vmatprep.subr.bf16.mxu0 %v2710
        %3335 = vmatpush1.bf16.msra.mxu0 %v2709
        %3336 = vmatprep.subr.bf16.mxu0 %v2714
        %3337 = vmatpush1.bf16.msra.mxu0 %v2713
        %3338 = vmatprep.subr.bf16.mxu0 %v2718
        %3339 = vmatpush1.bf16.msra.mxu0 %v2717
        %3340 = vmatprep.subr.bf16.mxu0 %v2722
        %3341 = vmatpush1.bf16.msra.mxu0 %v2721
        %3342 = vmatprep.subr.bf16.mxu0 %v2726
        %3343 = vmatpush1.bf16.msra.mxu0 %v2725
        %3344 = vmatprep.subr.bf16.mxu0 %v2730
        %3345 = vmatpush1.bf16.msra.mxu0 %v2729
        %3346 = vmatprep.subr.bf16.mxu0 %v2734
        %3347 = vmatpush1.bf16.msra.mxu0 %v2733
        %3348 = vmatprep.subr.bf16.mxu0 %v2738
        %3349 = vmatpush1.bf16.msra.mxu0 %v2737
        %3350 = vmatprep.subr.bf16.mxu0 %v2742
        %3351 = vmatpush1.bf16.msra.mxu0 %v2741
        %3352 = vmatprep.mubr.bf16.mxu0 %v3064
        %3353 = vmatmul.mubr.bf16.gmra.mrb[0].mxu0 %v3063
        %v3354 = vpop.f32.mrb[0].mxu0
        %v3355 = vadd.f32 %v2810, %v3354
        %v3356 = vpop.f32.mrb[0].mxu0
        %v3357 = vadd.f32 %v2810, %v3356
        %v3358 = vpop.f32.mrb[0].mxu0
        %v3359 = vadd.f32 %v2815, %v3358
        %v3360 = vpop.f32.mrb[0].mxu0
        %v3361 = vadd.f32 %v2815, %v3360
        %3362 = vmatprep.mubr.bf16.mxu0 %v3066
        %3363 = vmatmul.mubr.bf16.gmra.mrb[0].mxu0 %v3065
        %v3364 = vpop.f32.mrb[0].mxu0
        %v3365 = vadd.f32 %v2820, %v3364
        %v3366 = vpop.f32.mrb[0].mxu0
        %v3367 = vadd.f32 %v2820, %v3366
        %v3368 = vpop.f32.mrb[0].mxu0
        %v3369 = vadd.f32 %v2825, %v3368
        %v3370 = vpop.f32.mrb[0].mxu0
        %v3371 = vadd.f32 %v2825, %v3370
        %3372 = vmatprep.mubr.bf16.mxu0 %v3068
        %3373 = vmatmul.mubr.bf16.gmra.mrb[0].mxu0 %v3067
        %v3374 = vpop.f32.mrb[0].mxu0
        %v3375 = vadd.f32 %v2830, %v3374
        %v3376 = vpop.f32.mrb[0].mxu0
        %v3377 = vadd.f32 %v2830, %v3376
        %v3378 = vpop.f32.mrb[0].mxu0
        %v3379 = vadd.f32 %v2835, %v3378
        %v3380 = vpop.f32.mrb[0].mxu0
        %v3381 = vadd.f32 %v2835, %v3380
        %3382 = vmatprep.mubr.bf16.mxu0 %v3070
        %3383 = vmatmul.mubr.bf16.gmra.mrb[0].mxu0 %v3069
        %v3384 = vpop.f32.mrb[0].mxu0
        %v3385 = vadd.f32 %v2840, %v3384
        %v3386 = vpop.f32.mrb[0].mxu0
        %v3387 = vadd.f32 %v2840, %v3386
        %v3388 = vpop.f32.mrb[0].mxu0
        %v3389 = vadd.f32 %v2845, %v3388
        %v3390 = vpop.f32.mrb[0].mxu0
        %v3391 = vadd.f32 %v2845, %v3390
        %3392 = vmatprep.mubr.bf16.mxu0 %v3072
        %3393 = vmatmul.mubr.bf16.gmra.mrb[0].mxu0 %v3071
        %v3394 = vpop.f32.mrb[0].mxu0
        %v3395 = vadd.f32 %v2850, %v3394
        %v3396 = vpop.f32.mrb[0].mxu0
        %v3397 = vadd.f32 %v2850, %v3396
        %v3398 = vpop.f32.mrb[0].mxu0
        %v3399 = vadd.f32 %v2855, %v3398
        %v3400 = vpop.f32.mrb[0].mxu0
        %v3401 = vadd.f32 %v2855, %v3400
        %3402 = vmatprep.mubr.bf16.mxu0 %v3074
        %3403 = vmatmul.mubr.bf16.gmra.mrb[0].mxu0 %v3073
        %v3404 = vpop.f32.mrb[0].mxu0
        %v3405 = vadd.f32 %v2860, %v3404
        %v3406 = vpop.f32.mrb[0].mxu0
        %v3407 = vadd.f32 %v2860, %v3406
        %v3408 = vpop.f32.mrb[0].mxu0
        %v3409 = vadd.f32 %v2865, %v3408
        %v3410 = vpop.f32.mrb[0].mxu0
        %v3411 = vadd.f32 %v2865, %v3410
        %3412 = vmatprep.mubr.bf16.mxu0 %v3076
        %3413 = vmatmul.mubr.bf16.gmra.mrb[0].mxu0 %v3075
        %v3414 = vpop.f32.mrb[0].mxu0
        %v3415 = vadd.f32 %v2870, %v3414
        %v3416 = vpop.f32.mrb[0].mxu0
        %v3417 = vadd.f32 %v2870, %v3416
        %v3418 = vpop.f32.mrb[0].mxu0
        %v3419 = vadd.f32 %v2875, %v3418
        %v3420 = vpop.f32.mrb[0].mxu0
        %v3421 = vadd.f32 %v2875, %v3420
        %3422 = vmatprep.mubr.bf16.mxu0 %v3078
        %3423 = vmatmul.mubr.bf16.gmra.mrb[0].mxu0 %v3077
        %v3424 = vpop.f32.mrb[0].mxu0
        %v3425 = vadd.f32 %v2880, %v3424
        %v3426 = vpop.f32.mrb[0].mxu0
        %v3427 = vadd.f32 %v2880, %v3426
        %v3428 = vpop.f32.mrb[0].mxu0
        %v3429 = vadd.f32 %v2885, %v3428
        %v3430 = vpop.f32.mrb[0].mxu0
        %v3431 = vadd.f32 %v2885, %v3430
        %3432 = vmatprep.mubr.bf16.mxu0 %v3080
        %3433 = vmatmul.mubr.bf16.gmra.mrb[0].mxu0 %v3079
        %v3434 = vpop.f32.mrb[0].mxu0
        %v3435 = vadd.f32 %v2890, %v3434
        %v3436 = vpop.f32.mrb[0].mxu0
        %v3437 = vadd.f32 %v2890, %v3436
        %v3438 = vpop.f32.mrb[0].mxu0
        %v3439 = vadd.f32 %v2895, %v3438
        %v3440 = vpop.f32.mrb[0].mxu0
        %v3441 = vadd.f32 %v2895, %v3440
        %3442 = vmatprep.mubr.bf16.mxu0 %v3082
        %3443 = vmatmul.mubr.bf16.gmra.mrb[0].mxu0 %v3081
        %v3444 = vpop.f32.mrb[0].mxu0
        %v3445 = vadd.f32 %v2900, %v3444
        %v3446 = vpop.f32.mrb[0].mxu0
        %v3447 = vadd.f32 %v2900, %v3446
        %v3448 = vpop.f32.mrb[0].mxu0
        %v3449 = vadd.f32 %v2905, %v3448
        %v3450 = vpop.f32.mrb[0].mxu0
        %v3451 = vadd.f32 %v2905, %v3450
        %3452 = vmatprep.mubr.bf16.mxu0 %v3084
        %3453 = vmatmul.mubr.bf16.gmra.mrb[0].mxu0 %v3083
        %v3454 = vpop.f32.mrb[0].mxu0
        %v3455 = vadd.f32 %v2910, %v3454
        %v3456 = vpop.f32.mrb[0].mxu0
        %v3457 = vadd.f32 %v2910, %v3456
        %v3458 = vpop.f32.mrb[0].mxu0
        %v3459 = vadd.f32 %v2915, %v3458
        %v3460 = vpop.f32.mrb[0].mxu0
        %v3461 = vadd.f32 %v2915, %v3460
        %3462 = vmatprep.mubr.bf16.mxu0 %v3086
        %3463 = vmatmul.mubr.bf16.gmra.mrb[0].mxu0 %v3085
        %v3464 = vpop.f32.mrb[0].mxu0
        %v3465 = vadd.f32 %v2920, %v3464
        %v3466 = vpop.f32.mrb[0].mxu0
        %v3467 = vadd.f32 %v2920, %v3466
        %v3468 = vpop.f32.mrb[0].mxu0
        %v3469 = vadd.f32 %v2925, %v3468
        %v3470 = vpop.f32.mrb[0].mxu0
        %v3471 = vadd.f32 %v2925, %v3470
        %3472 = vmatprep.mubr.bf16.mxu0 %v3088
        %3473 = vmatmul.mubr.bf16.gmra.mrb[0].mxu0 %v3087
        %v3474 = vpop.f32.mrb[0].mxu0
        %v3475 = vadd.f32 %v2930, %v3474
        %v3476 = vpop.f32.mrb[0].mxu0
        %v3477 = vadd.f32 %v2930, %v3476
        %v3478 = vpop.f32.mrb[0].mxu0
        %v3479 = vadd.f32 %v2935, %v3478
        %v3480 = vpop.f32.mrb[0].mxu0
        %v3481 = vadd.f32 %v2935, %v3480
        %3482 = vmatprep.mubr.bf16.mxu0 %v3090
        %3483 = vmatmul.mubr.bf16.gmra.mrb[0].mxu0 %v3089
        %v3484 = vpop.f32.mrb[0].mxu0
        %v3485 = vadd.f32 %v2940, %v3484
        %v3486 = vpop.f32.mrb[0].mxu0
        %v3487 = vadd.f32 %v2940, %v3486
        %v3488 = vpop.f32.mrb[0].mxu0
        %v3489 = vadd.f32 %v2945, %v3488
        %v3490 = vpop.f32.mrb[0].mxu0
        %v3491 = vadd.f32 %v2945, %v3490
        %3492 = vmatprep.mubr.bf16.mxu0 %v3092
        %3493 = vmatmul.mubr.bf16.gmra.mrb[0].mxu0 %v3091
        %v3494 = vpop.f32.mrb[0].mxu0
        %v3495 = vadd.f32 %v2950, %v3494
        %v3496 = vpop.f32.mrb[0].mxu0
        %v3497 = vadd.f32 %v2950, %v3496
        %v3498 = vpop.f32.mrb[0].mxu0
        %v3499 = vadd.f32 %v2955, %v3498
        %v3500 = vpop.f32.mrb[0].mxu0
        %v3501 = vadd.f32 %v2955, %v3500
        %3502 = vmatprep.mubr.bf16.mxu0 %v3094
        %3503 = vmatmul.mubr.bf16.gmra.mrb[0].mxu0 %v3093
        %v3504 = vpop.f32.mrb[0].mxu0
        %v3505 = vadd.f32 %v2960, %v3504
        %v3506 = vpop.f32.mrb[0].mxu0
        %v3507 = vadd.f32 %v2960, %v3506
        %v3508 = vpop.f32.mrb[0].mxu0
        %v3509 = vadd.f32 %v2965, %v3508
        %v3510 = vpop.f32.mrb[0].mxu0
        %v3511 = vadd.f32 %v2965, %v3510
        %3512 = vdwg.mxu0
        %v3513 = vmax.f32 %v3162, 0.0
        %v3514 = vmax.f32 %v3164, 0.0
        %v3515 = vmax.f32 %v3355, 0.0
        %v3516 = vmax.f32 %v3357, 0.0
        %v3517 = vmax.f32 %v3166, 0.0
        %v3518 = vmax.f32 %v3168, 0.0
        %v3519 = vmax.f32 %v3359, 0.0
        %v3520 = vmax.f32 %v3361, 0.0
        %v3521 = vmax.f32 %v3172, 0.0
        %v3522 = vmax.f32 %v3174, 0.0
        %v3523 = vmax.f32 %v3365, 0.0
        %v3524 = vmax.f32 %v3367, 0.0
        %v3525 = vmax.f32 %v3176, 0.0
        %v3526 = vmax.f32 %v3178, 0.0
        %v3527 = vmax.f32 %v3369, 0.0
        %v3528 = vmax.f32 %v3371, 0.0
        %v3529 = vmax.f32 %v3182, 0.0
        %v3530 = vmax.f32 %v3184, 0.0
        %v3531 = vmax.f32 %v3375, 0.0
        %v3532 = vmax.f32 %v3377, 0.0
        %v3533 = vmax.f32 %v3186, 0.0
        %v3534 = vmax.f32 %v3188, 0.0
        %v3535 = vmax.f32 %v3379, 0.0
        %v3536 = vmax.f32 %v3381, 0.0
        %v3537 = vmax.f32 %v3192, 0.0
        %v3538 = vmax.f32 %v3194, 0.0
        %v3539 = vmax.f32 %v3385, 0.0
        %v3540 = vmax.f32 %v3387, 0.0
        %v3541 = vmax.f32 %v3196, 0.0
        %v3542 = vmax.f32 %v3198, 0.0
        %v3543 = vmax.f32 %v3389, 0.0
        %v3544 = vmax.f32 %v3391, 0.0
        %v3545 = vmax.f32 %v3202, 0.0
        %v3546 = vmax.f32 %v3204, 0.0
        %v3547 = vmax.f32 %v3395, 0.0
        %v3548 = vmax.f32 %v3397, 0.0
        %v3549 = vmax.f32 %v3206, 0.0
        %v3550 = vmax.f32 %v3208, 0.0
        %v3551 = vmax.f32 %v3399, 0.0
        %v3552 = vmax.f32 %v3401, 0.0
        %v3553 = vmax.f32 %v3212, 0.0
        %v3554 = vmax.f32 %v3214, 0.0
        %v3555 = vmax.f32 %v3405, 0.0
        %v3556 = vmax.f32 %v3407, 0.0
        %v3557 = vmax.f32 %v3216, 0.0
        %v3558 = vmax.f32 %v3218, 0.0
        %v3559 = vmax.f32 %v3409, 0.0
        %v3560 = vmax.f32 %v3411, 0.0
        %v3561 = vmax.f32 %v3222, 0.0
        %v3562 = vmax.f32 %v3224, 0.0
        %v3563 = vmax.f32 %v3415, 0.0
        %v3564 = vmax.f32 %v3417, 0.0
        %v3565 = vmax.f32 %v3226, 0.0
        %v3566 = vmax.f32 %v3228, 0.0
        %v3567 = vmax.f32 %v3419, 0.0
        %v3568 = vmax.f32 %v3421, 0.0
        %v3569 = vmax.f32 %v3232, 0.0
        %v3570 = vmax.f32 %v3234, 0.0
        %v3571 = vmax.f32 %v3425, 0.0
        %v3572 = vmax.f32 %v3427, 0.0
        %v3573 = vmax.f32 %v3236, 0.0
        %v3574 = vmax.f32 %v3238, 0.0
        %v3575 = vmax.f32 %v3429, 0.0
        %v3576 = vmax.f32 %v3431, 0.0
        %v3577 = vmax.f32 %v3242, 0.0
        %v3578 = vmax.f32 %v3244, 0.0
        %v3579 = vmax.f32 %v3435, 0.0
        %v3580 = vmax.f32 %v3437, 0.0
        %v3581 = vmax.f32 %v3246, 0.0
        %v3582 = vmax.f32 %v3248, 0.0
        %v3583 = vmax.f32 %v3439, 0.0
        %v3584 = vmax.f32 %v3441, 0.0
        %v3585 = vmax.f32 %v3252, 0.0
        %v3586 = vmax.f32 %v3254, 0.0
        %v3587 = vmax.f32 %v3445, 0.0
        %v3588 = vmax.f32 %v3447, 0.0
        %v3589 = vmax.f32 %v3256, 0.0
        %v3590 = vmax.f32 %v3258, 0.0
        %v3591 = vmax.f32 %v3449, 0.0
        %v3592 = vmax.f32 %v3451, 0.0
        %v3593 = vmax.f32 %v3262, 0.0
        %v3594 = vmax.f32 %v3264, 0.0
        %v3595 = vmax.f32 %v3455, 0.0
        %v3596 = vmax.f32 %v3457, 0.0
        %v3597 = vmax.f32 %v3266, 0.0
        %v3598 = vmax.f32 %v3268, 0.0
        %v3599 = vmax.f32 %v3459, 0.0
        %v3600 = vmax.f32 %v3461, 0.0
        %v3601 = vmax.f32 %v3272, 0.0
        %v3602 = vmax.f32 %v3274, 0.0
        %v3603 = vmax.f32 %v3465, 0.0
        %v3604 = vmax.f32 %v3467, 0.0
        %v3605 = vmax.f32 %v3276, 0.0
        %v3606 = vmax.f32 %v3278, 0.0
        %v3607 = vmax.f32 %v3469, 0.0
        %v3608 = vmax.f32 %v3471, 0.0
        %v3609 = vmax.f32 %v3282, 0.0
        %v3610 = vmax.f32 %v3284, 0.0
        %v3611 = vmax.f32 %v3475, 0.0
        %v3612 = vmax.f32 %v3477, 0.0
        %v3613 = vmax.f32 %v3286, 0.0
        %v3614 = vmax.f32 %v3288, 0.0
        %v3615 = vmax.f32 %v3479, 0.0
        %v3616 = vmax.f32 %v3481, 0.0
        %v3617 = vmax.f32 %v3292, 0.0
        %v3618 = vmax.f32 %v3294, 0.0
        %v3619 = vmax.f32 %v3485, 0.0
        %v3620 = vmax.f32 %v3487, 0.0
        %v3621 = vmax.f32 %v3296, 0.0
        %v3622 = vmax.f32 %v3298, 0.0
        %v3623 = vmax.f32 %v3489, 0.0
        %v3624 = vmax.f32 %v3491, 0.0
        %v3625 = vmax.f32 %v3302, 0.0
        %v3626 = vmax.f32 %v3304, 0.0
        %v3627 = vmax.f32 %v3495, 0.0
        %v3628 = vmax.f32 %v3497, 0.0
        %v3629 = vmax.f32 %v3306, 0.0
        %v3630 = vmax.f32 %v3308, 0.0
        %v3631 = vmax.f32 %v3499, 0.0
        %v3632 = vmax.f32 %v3501, 0.0
        %v3633 = vmax.f32 %v3312, 0.0
        %v3634 = vmax.f32 %v3314, 0.0
        %v3635 = vmax.f32 %v3505, 0.0
        %v3636 = vmax.f32 %v3507, 0.0
        %v3637 = vmax.f32 %v3316, 0.0
        %v3638 = vmax.f32 %v3318, 0.0
        %v3639 = vmax.f32 %v3509, 0.0
        %v3640 = vmax.f32 %v3511, 0.0
        %v3641 = vld [vmem:[%s7] sm:$0xf]
        %v3642 = vld [vmem:[%s7 + $0x4] sm:$0xf]
        %v3643 = vld [vmem:[%s7 + $0x8] sm:$0xf]
        %v3644 = vld [vmem:[%s7 + $0xc] sm:$0xf]
        %v3645 = vld [vmem:[%s7 + $0x10] sm:$0xf]
        %v3646 = vld [vmem:[%s7 + $0x14] sm:$0xf]
        %v3647 = vld [vmem:[%s7 + $0x18] sm:$0xf]
        %v3648 = vld [vmem:[%s7 + $0x1c] sm:$0xf]
        %v3649 = vld [vmem:[%s7 + $0x20] sm:$0xf]
        %v3650 = vld [vmem:[%s7 + $0x24] sm:$0xf]
        %v3651 = vld [vmem:[%s7 + $0x28] sm:$0xf]
        %v3652 = vld [vmem:[%s7 + $0x2c] sm:$0xf]
        %v3653 = vld [vmem:[%s7 + $0x30] sm:$0xf]
        %v3654 = vld [vmem:[%s7 + $0x34] sm:$0xf]
        %v3655 = vld [vmem:[%s7 + $0x38] sm:$0xf]
        %v3656 = vld [vmem:[%s7 + $0x3c] sm:$0xf]
        %v3657 = vld [vmem:[%s7 + $0x40] sm:$0xf]
        %v3658 = vld [vmem:[%s7 + $0x44] sm:$0xf]
        %v3659 = vld [vmem:[%s7 + $0x48] sm:$0xf]
        %v3660 = vld [vmem:[%s7 + $0x4c] sm:$0xf]
        %v3661 = vld [vmem:[%s7 + $0x50] sm:$0xf]
        %v3662 = vld [vmem:[%s7 + $0x54] sm:$0xf]
        %v3663 = vld [vmem:[%s7 + $0x58] sm:$0xf]
        %v3664 = vld [vmem:[%s7 + $0x5c] sm:$0xf]
        %v3665 = vld [vmem:[%s7 + $0x60] sm:$0xf]
        %v3666 = vld [vmem:[%s7 + $0x64] sm:$0xf]
        %v3667 = vld [vmem:[%s7 + $0x68] sm:$0xf]
        %v3668 = vld [vmem:[%s7 + $0x6c] sm:$0xf]
        %v3669 = vld [vmem:[%s7 + $0x70] sm:$0xf]
        %v3670 = vld [vmem:[%s7 + $0x74] sm:$0xf]
        %v3671 = vld [vmem:[%s7 + $0x78] sm:$0xf]
        %v3672 = vld [vmem:[%s7 + $0x7c] sm:$0xf]
        %v3673 = vunpack.c.l.bf16 %v3641
        %v3674 = vunpack.c.l.bf16 %v3642
        %v3675 = vunpack.c.l.bf16 %v3643
        %v3676 = vunpack.c.l.bf16 %v3644
        %v3677 = vunpack.c.l.bf16 %v3645
        %v3678 = vunpack.c.l.bf16 %v3646
        %v3679 = vunpack.c.l.bf16 %v3647
        %v3680 = vunpack.c.l.bf16 %v3648
        %v3681 = vunpack.c.l.bf16 %v3649
        %v3682 = vunpack.c.l.bf16 %v3650
        %v3683 = vunpack.c.l.bf16 %v3651
        %v3684 = vunpack.c.l.bf16 %v3652
        %v3685 = vunpack.c.l.bf16 %v3653
        %v3686 = vunpack.c.l.bf16 %v3654
        %v3687 = vunpack.c.l.bf16 %v3655
        %v3688 = vunpack.c.l.bf16 %v3656
        %v3689 = vunpack.c.l.bf16 %v3657
        %v3690 = vunpack.c.l.bf16 %v3658
        %v3691 = vunpack.c.l.bf16 %v3659
        %v3692 = vunpack.c.l.bf16 %v3660
        %v3693 = vunpack.c.l.bf16 %v3661
        %v3694 = vunpack.c.l.bf16 %v3662
        %v3695 = vunpack.c.l.bf16 %v3663
        %v3696 = vunpack.c.l.bf16 %v3664
        %v3697 = vunpack.c.l.bf16 %v3665
        %v3698 = vunpack.c.l.bf16 %v3666
        %v3699 = vunpack.c.l.bf16 %v3667
        %v3700 = vunpack.c.l.bf16 %v3668
        %v3701 = vunpack.c.l.bf16 %v3669
        %v3702 = vunpack.c.l.bf16 %v3670
        %v3703 = vunpack.c.l.bf16 %v3671
        %v3704 = vunpack.c.l.bf16 %v3672
        %3706 = vset.pattern.permute.xlu0 0
        %3707 = vperm.xlu0 %3706, %v3673
        %v3708 = vpop.permute.xlu0 %3707
        %3711 = vset.pattern.permute.xlu0 0
        %3712 = vperm.xlu0 %3711, %v3674
        %v3713 = vpop.permute.xlu0 %3712
        %3716 = vset.pattern.permute.xlu0 0
        %3717 = vperm.xlu0 %3716, %v3675
        %v3718 = vpop.permute.xlu0 %3717
        %3721 = vset.pattern.permute.xlu0 0
        %3722 = vperm.xlu0 %3721, %v3676
        %v3723 = vpop.permute.xlu0 %3722
        %3726 = vset.pattern.permute.xlu0 0
        %3727 = vperm.xlu0 %3726, %v3677
        %v3728 = vpop.permute.xlu0 %3727
        %3731 = vset.pattern.permute.xlu0 0
        %3732 = vperm.xlu0 %3731, %v3678
        %v3733 = vpop.permute.xlu0 %3732
        %3736 = vset.pattern.permute.xlu0 0
        %3737 = vperm.xlu0 %3736, %v3679
        %v3738 = vpop.permute.xlu0 %3737
        %3741 = vset.pattern.permute.xlu0 0
        %3742 = vperm.xlu0 %3741, %v3680
        %v3743 = vpop.permute.xlu0 %3742
        %3746 = vset.pattern.permute.xlu0 0
        %3747 = vperm.xlu0 %3746, %v3681
        %v3748 = vpop.permute.xlu0 %3747
        %3751 = vset.pattern.permute.xlu0 0
        %3752 = vperm.xlu0 %3751, %v3682
        %v3753 = vpop.permute.xlu0 %3752
        %3756 = vset.pattern.permute.xlu0 0
        %3757 = vperm.xlu0 %3756, %v3683
        %v3758 = vpop.permute.xlu0 %3757
        %3761 = vset.pattern.permute.xlu0 0
        %3762 = vperm.xlu0 %3761, %v3684
        %v3763 = vpop.permute.xlu0 %3762
        %3766 = vset.pattern.permute.xlu0 0
        %3767 = vperm.xlu0 %3766, %v3685
        %v3768 = vpop.permute.xlu0 %3767
        %3771 = vset.pattern.permute.xlu0 0
        %3772 = vperm.xlu0 %3771, %v3686
        %v3773 = vpop.permute.xlu0 %3772
        %3776 = vset.pattern.permute.xlu0 0
        %3777 = vperm.xlu0 %3776, %v3687
        %v3778 = vpop.permute.xlu0 %3777
        %3781 = vset.pattern.permute.xlu0 0
        %3782 = vperm.xlu0 %3781, %v3688
        %v3783 = vpop.permute.xlu0 %3782
        %3786 = vset.pattern.permute.xlu0 0
        %3787 = vperm.xlu0 %3786, %v3689
        %v3788 = vpop.permute.xlu0 %3787
        %3791 = vset.pattern.permute.xlu0 0
        %3792 = vperm.xlu0 %3791, %v3690
        %v3793 = vpop.permute.xlu0 %3792
        %3796 = vset.pattern.permute.xlu0 0
        %3797 = vperm.xlu0 %3796, %v3691
        %v3798 = vpop.permute.xlu0 %3797
        %3801 = vset.pattern.permute.xlu0 0
        %3802 = vperm.xlu0 %3801, %v3692
        %v3803 = vpop.permute.xlu0 %3802
        %3806 = vset.pattern.permute.xlu0 0
        %3807 = vperm.xlu0 %3806, %v3693
        %v3808 = vpop.permute.xlu0 %3807
        %3811 = vset.pattern.permute.xlu0 0
        %3812 = vperm.xlu0 %3811, %v3694
        %v3813 = vpop.permute.xlu0 %3812
        %3816 = vset.pattern.permute.xlu0 0
        %3817 = vperm.xlu0 %3816, %v3695
        %v3818 = vpop.permute.xlu0 %3817
        %3821 = vset.pattern.permute.xlu0 0
        %3822 = vperm.xlu0 %3821, %v3696
        %v3823 = vpop.permute.xlu0 %3822
        %3826 = vset.pattern.permute.xlu0 0
        %3827 = vperm.xlu0 %3826, %v3697
        %v3828 = vpop.permute.xlu0 %3827
        %3831 = vset.pattern.permute.xlu0 0
        %3832 = vperm.xlu0 %3831, %v3698
        %v3833 = vpop.permute.xlu0 %3832
        %3836 = vset.pattern.permute.xlu0 0
        %3837 = vperm.xlu0 %3836, %v3699
        %v3838 = vpop.permute.xlu0 %3837
        %3841 = vset.pattern.permute.xlu0 0
        %3842 = vperm.xlu0 %3841, %v3700
        %v3843 = vpop.permute.xlu0 %3842
        %3846 = vset.pattern.permute.xlu0 0
        %3847 = vperm.xlu0 %3846, %v3701
        %v3848 = vpop.permute.xlu0 %3847
        %3851 = vset.pattern.permute.xlu0 0
        %3852 = vperm.xlu0 %3851, %v3702
        %v3853 = vpop.permute.xlu0 %3852
        %3856 = vset.pattern.permute.xlu0 0
        %3857 = vperm.xlu0 %3856, %v3703
        %v3858 = vpop.permute.xlu0 %3857
        %3861 = vset.pattern.permute.xlu0 0
        %3862 = vperm.xlu0 %3861, %v3704
        %v3863 = vpop.permute.xlu0 %3862
        %v3865 = vmul.f32 %v3513, %v3708
        %v3866 = vmul.f32 %v3514, %v3708
        %v3867 = vmul.f32 %v3515, %v3708
        %v3868 = vmul.f32 %v3516, %v3708
        %v3869 = vmul.f32 %v3517, %v3713
        %v3870 = vmul.f32 %v3518, %v3713
        %v3871 = vmul.f32 %v3519, %v3713
        %v3872 = vmul.f32 %v3520, %v3713
        %v3873 = vmul.f32 %v3521, %v3718
        %v3874 = vmul.f32 %v3522, %v3718
        %v3875 = vmul.f32 %v3523, %v3718
        %v3876 = vmul.f32 %v3524, %v3718
        %v3877 = vmul.f32 %v3525, %v3723
        %v3878 = vmul.f32 %v3526, %v3723
        %v3879 = vmul.f32 %v3527, %v3723
        %v3880 = vmul.f32 %v3528, %v3723
        %v3881 = vmul.f32 %v3529, %v3728
        %v3882 = vmul.f32 %v3530, %v3728
        %v3883 = vmul.f32 %v3531, %v3728
        %v3884 = vmul.f32 %v3532, %v3728
        %v3885 = vmul.f32 %v3533, %v3733
        %v3886 = vmul.f32 %v3534, %v3733
        %v3887 = vmul.f32 %v3535, %v3733
        %v3888 = vmul.f32 %v3536, %v3733
        %v3889 = vmul.f32 %v3537, %v3738
        %v3890 = vmul.f32 %v3538, %v3738
        %v3891 = vmul.f32 %v3539, %v3738
        %v3892 = vmul.f32 %v3540, %v3738
        %v3893 = vmul.f32 %v3541, %v3743
        %v3894 = vmul.f32 %v3542, %v3743
        %v3895 = vmul.f32 %v3543, %v3743
        %v3896 = vmul.f32 %v3544, %v3743
        %v3897 = vmul.f32 %v3545, %v3748
        %v3898 = vmul.f32 %v3546, %v3748
        %v3899 = vmul.f32 %v3547, %v3748
        %v3900 = vmul.f32 %v3548, %v3748
        %v3901 = vmul.f32 %v3549, %v3753
        %v3902 = vmul.f32 %v3550, %v3753
        %v3903 = vmul.f32 %v3551, %v3753
        %v3904 = vmul.f32 %v3552, %v3753
        %v3905 = vmul.f32 %v3553, %v3758
        %v3906 = vmul.f32 %v3554, %v3758
        %v3907 = vmul.f32 %v3555, %v3758
        %v3908 = vmul.f32 %v3556, %v3758
        %v3909 = vmul.f32 %v3557, %v3763
        %v3910 = vmul.f32 %v3558, %v3763
        %v3911 = vmul.f32 %v3559, %v3763
        %v3912 = vmul.f32 %v3560, %v3763
        %v3913 = vmul.f32 %v3561, %v3768
        %v3914 = vmul.f32 %v3562, %v3768
        %v3915 = vmul.f32 %v3563, %v3768
        %v3916 = vmul.f32 %v3564, %v3768
        %v3917 = vmul.f32 %v3565, %v3773
        %v3918 = vmul.f32 %v3566, %v3773
        %v3919 = vmul.f32 %v3567, %v3773
        %v3920 = vmul.f32 %v3568, %v3773
        %v3921 = vmul.f32 %v3569, %v3778
        %v3922 = vmul.f32 %v3570, %v3778
        %v3923 = vmul.f32 %v3571, %v3778
        %v3924 = vmul.f32 %v3572, %v3778
        %v3925 = vmul.f32 %v3573, %v3783
        %v3926 = vmul.f32 %v3574, %v3783
        %v3927 = vmul.f32 %v3575, %v3783
        %v3928 = vmul.f32 %v3576, %v3783
        %v3929 = vmul.f32 %v3577, %v3788
        %v3930 = vmul.f32 %v3578, %v3788
        %v3931 = vmul.f32 %v3579, %v3788
        %v3932 = vmul.f32 %v3580, %v3788
        %v3933 = vmul.f32 %v3581, %v3793
        %v3934 = vmul.f32 %v3582, %v3793
        %v3935 = vmul.f32 %v3583, %v3793
        %v3936 = vmul.f32 %v3584, %v3793
        %v3937 = vmul.f32 %v3585, %v3798
        %v3938 = vmul.f32 %v3586, %v3798
        %v3939 = vmul.f32 %v3587, %v3798
        %v3940 = vmul.f32 %v3588, %v3798
        %v3941 = vmul.f32 %v3589, %v3803
        %v3942 = vmul.f32 %v3590, %v3803
        %v3943 = vmul.f32 %v3591, %v3803
        %v3944 = vmul.f32 %v3592, %v3803
        %v3945 = vmul.f32 %v3593, %v3808
        %v3946 = vmul.f32 %v3594, %v3808
        %v3947 = vmul.f32 %v3595, %v3808
        %v3948 = vmul.f32 %v3596, %v3808
        %v3949 = vmul.f32 %v3597, %v3813
        %v3950 = vmul.f32 %v3598, %v3813
        %v3951 = vmul.f32 %v3599, %v3813
        %v3952 = vmul.f32 %v3600, %v3813
        %v3953 = vmul.f32 %v3601, %v3818
        %v3954 = vmul.f32 %v3602, %v3818
        %v3955 = vmul.f32 %v3603, %v3818
        %v3956 = vmul.f32 %v3604, %v3818
        %v3957 = vmul.f32 %v3605, %v3823
        %v3958 = vmul.f32 %v3606, %v3823
        %v3959 = vmul.f32 %v3607, %v3823
        %v3960 = vmul.f32 %v3608, %v3823
        %v3961 = vmul.f32 %v3609, %v3828
        %v3962 = vmul.f32 %v3610, %v3828
        %v3963 = vmul.f32 %v3611, %v3828
        %v3964 = vmul.f32 %v3612, %v3828
        %v3965 = vmul.f32 %v3613, %v3833
        %v3966 = vmul.f32 %v3614, %v3833
        %v3967 = vmul.f32 %v3615, %v3833
        %v3968 = vmul.f32 %v3616, %v3833
        %v3969 = vmul.f32 %v3617, %v3838
        %v3970 = vmul.f32 %v3618, %v3838
        %v3971 = vmul.f32 %v3619, %v3838
        %v3972 = vmul.f32 %v3620, %v3838
        %v3973 = vmul.f32 %v3621, %v3843
        %v3974 = vmul.f32 %v3622, %v3843
        %v3975 = vmul.f32 %v3623, %v3843
        %v3976 = vmul.f32 %v3624, %v3843
        %v3977 = vmul.f32 %v3625, %v3848
        %v3978 = vmul.f32 %v3626, %v3848
        %v3979 = vmul.f32 %v3627, %v3848
        %v3980 = vmul.f32 %v3628, %v3848
        %v3981 = vmul.f32 %v3629, %v3853
        %v3982 = vmul.f32 %v3630, %v3853
        %v3983 = vmul.f32 %v3631, %v3853
        %v3984 = vmul.f32 %v3632, %v3853
        %v3985 = vmul.f32 %v3633, %v3858
        %v3986 = vmul.f32 %v3634, %v3858
        %v3987 = vmul.f32 %v3635, %v3858
        %v3988 = vmul.f32 %v3636, %v3858
        %v3989 = vmul.f32 %v3637, %v3863
        %v3990 = vmul.f32 %v3638, %v3863
        %v3991 = vmul.f32 %v3639, %v3863
        %v3992 = vmul.f32 %v3640, %v3863
        %v3993 = vadd.f32 %v3865, %v3869
        %v3994 = vadd.f32 %v3993, %v3873
        %v3995 = vadd.f32 %v3994, %v3877
        %v3996 = vadd.f32 %v3995, %v3881
        %v3997 = vadd.f32 %v3996, %v3885
        %v3998 = vadd.f32 %v3997, %v3889
        %v3999 = vadd.f32 %v3998, %v3893
        %v4000 = vadd.f32 %v3999, %v3897
        %v4001 = vadd.f32 %v4000, %v3901
        %v4002 = vadd.f32 %v4001, %v3905
        %v4003 = vadd.f32 %v4002, %v3909
        %v4004 = vadd.f32 %v4003, %v3913
        %v4005 = vadd.f32 %v4004, %v3917
        %v4006 = vadd.f32 %v4005, %v3921
        %v4007 = vadd.f32 %v4006, %v3925
        %v4008 = vadd.f32 %v4007, %v3929
        %v4009 = vadd.f32 %v4008, %v3933
        %v4010 = vadd.f32 %v4009, %v3937
        %v4011 = vadd.f32 %v4010, %v3941
        %v4012 = vadd.f32 %v4011, %v3945
        %v4013 = vadd.f32 %v4012, %v3949
        %v4014 = vadd.f32 %v4013, %v3953
        %v4015 = vadd.f32 %v4014, %v3957
        %v4016 = vadd.f32 %v4015, %v3961
        %v4017 = vadd.f32 %v4016, %v3965
        %v4018 = vadd.f32 %v4017, %v3969
        %v4019 = vadd.f32 %v4018, %v3973
        %v4020 = vadd.f32 %v4019, %v3977
        %v4021 = vadd.f32 %v4020, %v3981
        %v4022 = vadd.f32 %v4021, %v3985
        %v4023 = vadd.f32 %v4022, %v3989
        %v4024 = vrot.slane %v4023, 4
        %v4025 = vadd.f32 %v4023, %v4024
        %v4026 = vrot.slane %v4025, 2
        %v4027 = vadd.f32 %v4025, %v4026
        %v4028 = vrot.slane %v4027, 1
        %v4029 = vadd.f32 %v4027, %v4028
        %v4030 = vadd.f32 %v3866, %v3870
        %v4031 = vadd.f32 %v4030, %v3874
        %v4032 = vadd.f32 %v4031, %v3878
        %v4033 = vadd.f32 %v4032, %v3882
        %v4034 = vadd.f32 %v4033, %v3886
        %v4035 = vadd.f32 %v4034, %v3890
        %v4036 = vadd.f32 %v4035, %v3894
        %v4037 = vadd.f32 %v4036, %v3898
        %v4038 = vadd.f32 %v4037, %v3902
        %v4039 = vadd.f32 %v4038, %v3906
        %v4040 = vadd.f32 %v4039, %v3910
        %v4041 = vadd.f32 %v4040, %v3914
        %v4042 = vadd.f32 %v4041, %v3918
        %v4043 = vadd.f32 %v4042, %v3922
        %v4044 = vadd.f32 %v4043, %v3926
        %v4045 = vadd.f32 %v4044, %v3930
        %v4046 = vadd.f32 %v4045, %v3934
        %v4047 = vadd.f32 %v4046, %v3938
        %v4048 = vadd.f32 %v4047, %v3942
        %v4049 = vadd.f32 %v4048, %v3946
        %v4050 = vadd.f32 %v4049, %v3950
        %v4051 = vadd.f32 %v4050, %v3954
        %v4052 = vadd.f32 %v4051, %v3958
        %v4053 = vadd.f32 %v4052, %v3962
        %v4054 = vadd.f32 %v4053, %v3966
        %v4055 = vadd.f32 %v4054, %v3970
        %v4056 = vadd.f32 %v4055, %v3974
        %v4057 = vadd.f32 %v4056, %v3978
        %v4058 = vadd.f32 %v4057, %v3982
        %v4059 = vadd.f32 %v4058, %v3986
        %v4060 = vadd.f32 %v4059, %v3990
        %v4061 = vrot.slane %v4060, 4
        %v4062 = vadd.f32 %v4060, %v4061
        %v4063 = vrot.slane %v4062, 2
        %v4064 = vadd.f32 %v4062, %v4063
        %v4065 = vrot.slane %v4064, 1
        %v4066 = vadd.f32 %v4064, %v4065
        %v4067 = vadd.f32 %v3867, %v3871
        %v4068 = vadd.f32 %v4067, %v3875
        %v4069 = vadd.f32 %v4068, %v3879
        %v4070 = vadd.f32 %v4069, %v3883
        %v4071 = vadd.f32 %v4070, %v3887
        %v4072 = vadd.f32 %v4071, %v3891
        %v4073 = vadd.f32 %v4072, %v3895
        %v4074 = vadd.f32 %v4073, %v3899
        %v4075 = vadd.f32 %v4074, %v3903
        %v4076 = vadd.f32 %v4075, %v3907
        %v4077 = vadd.f32 %v4076, %v3911
        %v4078 = vadd.f32 %v4077, %v3915
        %v4079 = vadd.f32 %v4078, %v3919
        %v4080 = vadd.f32 %v4079, %v3923
        %v4081 = vadd.f32 %v4080, %v3927
        %v4082 = vadd.f32 %v4081, %v3931
        %v4083 = vadd.f32 %v4082, %v3935
        %v4084 = vadd.f32 %v4083, %v3939
        %v4085 = vadd.f32 %v4084, %v3943
        %v4086 = vadd.f32 %v4085, %v3947
        %v4087 = vadd.f32 %v4086, %v3951
        %v4088 = vadd.f32 %v4087, %v3955
        %v4089 = vadd.f32 %v4088, %v3959
        %v4090 = vadd.f32 %v4089, %v3963
        %v4091 = vadd.f32 %v4090, %v3967
        %v4092 = vadd.f32 %v4091, %v3971
        %v4093 = vadd.f32 %v4092, %v3975
        %v4094 = vadd.f32 %v4093, %v3979
        %v4095 = vadd.f32 %v4094, %v3983
        %v4096 = vadd.f32 %v4095, %v3987
        %v4097 = vadd.f32 %v4096, %v3991
        %v4098 = vrot.slane %v4097, 4
        %v4099 = vadd.f32 %v4097, %v4098
        %v4100 = vrot.slane %v4099, 2
        %v4101 = vadd.f32 %v4099, %v4100
        %v4102 = vrot.slane %v4101, 1
        %v4103 = vadd.f32 %v4101, %v4102
        %v4104 = vadd.f32 %v3868, %v3872
        %v4105 = vadd.f32 %v4104, %v3876
        %v4106 = vadd.f32 %v4105, %v3880
        %v4107 = vadd.f32 %v4106, %v3884
        %v4108 = vadd.f32 %v4107, %v3888
        %v4109 = vadd.f32 %v4108, %v3892
        %v4110 = vadd.f32 %v4109, %v3896
        %v4111 = vadd.f32 %v4110, %v3900
        %v4112 = vadd.f32 %v4111, %v3904
        %v4113 = vadd.f32 %v4112, %v3908
        %v4114 = vadd.f32 %v4113, %v3912
        %v4115 = vadd.f32 %v4114, %v3916
        %v4116 = vadd.f32 %v4115, %v3920
        %v4117 = vadd.f32 %v4116, %v3924
        %v4118 = vadd.f32 %v4117, %v3928
        %v4119 = vadd.f32 %v4118, %v3932
        %v4120 = vadd.f32 %v4119, %v3936
        %v4121 = vadd.f32 %v4120, %v3940
        %v4122 = vadd.f32 %v4121, %v3944
        %v4123 = vadd.f32 %v4122, %v3948
        %v4124 = vadd.f32 %v4123, %v3952
        %v4125 = vadd.f32 %v4124, %v3956
        %v4126 = vadd.f32 %v4125, %v3960
        %v4127 = vadd.f32 %v4126, %v3964
        %v4128 = vadd.f32 %v4127, %v3968
        %v4129 = vadd.f32 %v4128, %v3972
        %v4130 = vadd.f32 %v4129, %v3976
        %v4131 = vadd.f32 %v4130, %v3980
        %v4132 = vadd.f32 %v4131, %v3984
        %v4133 = vadd.f32 %v4132, %v3988
        %v4134 = vadd.f32 %v4133, %v3992
        %v4135 = vrot.slane %v4134, 4
        %v4136 = vadd.f32 %v4134, %v4135
        %v4137 = vrot.slane %v4136, 2
        %v4138 = vadd.f32 %v4136, %v4137
        %v4139 = vrot.slane %v4138, 1
        %v4140 = vadd.f32 %v4138, %v4139
        %v4141 = vld [vmem:[#allocation2] sm:$0x1]
        %4143 = vset.pattern.permute.xlu0 0
        %4144 = vperm.xlu0 %4143, %v4141
        %v4145 = vpop.permute.xlu0 %4144
        %v4147 = vlaneseq
        %v4148 = vshrl.u32 %v4147, 7
        %v4149 = vsub.s32 0, %v4148
        %v4150 = vrot.slane %v4145, %v4149
        %v4151 = vadd.f32 %v4029, %v4150
        %v4152 = vadd.f32 %v4066, %v4150
        %v4153 = vadd.f32 %v4103, %v4150
        %v4154 = vadd.f32 %v4140, %v4150
        %v4159 = vcombine.low %v4151, %v4152
        %v4160 = vcombine.low %v4153, %v4154
        %v4162 = vunpack.c.l.s4 1966171168
        %v4163 = vunpack.c.0.s8 %v4162
        %v4164 = vlaneseq
        %v4165 = vshrl.u32 %v4164, 7
        %v4166 = vsub.s32 %v4163, %v4165
        %v4167 = vrot.slane %v4159, %v4166
        %v4169 = vunpack.c.l.s4 1966171168
        %v4170 = vunpack.c.0.s8 %v4169
        %v4171 = vlaneseq
        %v4172 = vshrl.u32 %v4171, 7
        %v4173 = vsub.s32 %v4170, %v4172
        %v4174 = vrot.slane %v4160, %v4173
        %v4175 = vcombine.low %v4167, %v4174
        %v4177 = vunpack.c.l.s4 1966171168
        %v4178 = vunpack.c.0.s8 %v4177
        %v4179 = vlaneseq
        %v4180 = vshrl.u32 %v4179, 7
        %v4181 = vsub.s32 %v4178, %v4180
        %v4182 = vrot.slane %v4175, %v4181
        %v4184 = vlaneseq
        %vm4185 = vcmp.ge.s32.totalorder %v4184, 0
        %vm4186 = vcmp.lt.s32.totalorder %v4184, 512
        %vm4187 = vmand %vm4185, %vm4186
        %4188 = vst.msk [vmem:[%s340] sm:$0xf] %vm4187, %v4182
        %s4189 = sand.u32 %s232, 1
        %s4190 = scalar_lea.sflag [#allocation4], %s4189
        %s4191 = sand.u32 %s232, 1
        %s4192 = smul.addr %s4191, 4
        %s4193 = scalar_lea.vmem [#allocation3], %s4192
        // Predicated region
        $region57: #{_decoder_mlp_pallas.1} parent=55 // pred_check
          %p4194 = pneg %p242
        $region58: #{_decoder_mlp_pallas.1} parent=55 // pred_check_branch
          %4196 = sbr.rel (%p4194) target = $region60
        $region59: #{_decoder_mlp_pallas.1} parent=55 // pred_region
          %s4197 = smul.u32 4, %s25
          %s4199 = ssub.s32 64, 64
          %4200 = vsyncadd %s4190, %s4199
          %s4201 = smul.addr %s4197, 16
          %s4202 = scalar_lea.hbm %s9, %s4201
          %s4204 = sshll.u32 %s4193, 4
          %s4205 = int_to_ptr.vmem [resolvable:$true] %s4204
          %4207 = dma.vmem_to_hbm [thread:$0]  %s4205, 64, %s4202, %s4190
        $region60: #{_decoder_mlp_pallas.1} parent=55 // pred_fallthru
          _
      $region56: #{_decoder_mlp_pallas.1} parent=5 // pred_fallthru
        _
      %p4208 = scmp.le.s32.totalorder 2, %s20
      // Predicated region
      $region61: #{_decoder_mlp_pallas.1} parent=5 // pred_check
        %p4209 = pneg %p4208
      $region62: #{_decoder_mlp_pallas.1} parent=5 // pred_check_branch
        %4211 = sbr.rel (%p4209) target = $region64
      $region63: #{_decoder_mlp_pallas.1} parent=5 // pred_region
        %s4212 = ssub.s32 %s20, 2
        // Predicated region
        $region65: #{_decoder_mlp_pallas.1} parent=63 // pred_check
          %p4213 = pneg %p248
        $region66: #{_decoder_mlp_pallas.1} parent=63 // pred_check_branch
          %4215 = sbr.rel (%p4213) target = $region68
        $region67: #{_decoder_mlp_pallas.1} parent=63 // pred_region
          %s4216 = sand.u32 %s233, 1
          %s4217 = scalar_lea.sflag [#allocation4], %s4216
          %s4218 = sand.u32 %s233, 1
          %s4219 = smul.addr %s4218, 4
          %s4220 = scalar_lea.vmem [#allocation3], %s4219
          %4221 = dma.done %s4217, 64
        $region68: #{_decoder_mlp_pallas.1} parent=63 // pred_fallthru
          _
      $region64: #{_decoder_mlp_pallas.1} parent=5 // pred_fallthru
        _
    $region6: #{_decoder_mlp_pallas.1} parent=1 // loop_footer
      %s24 = sadd.s32 1, %s20
    $region7: #{_decoder_mlp_pallas.1} parent=1 // loop_footer_branch
      %19 = sbr.rel target = $region3
    $region8: #{_decoder_mlp_pallas.1} parent=1 // loop_exit
      _
    %4222 = vsyncpa [#allocation4], 1
    %s4223 = scalar_lea.sflag [#allocation4], 1
    %4224 = vsyncpa %s4223, 1

</llo_original>
